<compile_context>
chip_gen: v7x
topology: tpu7x:2x2x1
jax: 0.10.0
libtpu: 0.0.40
codegen_flags: <defaults>
</compile_context>

<pallas_src>
import math

import numpy as np
import jax
import jax.numpy as jnp
from jax.experimental import pallas as pl
from jax.experimental.pallas import tpu as pltpu


# ----------------------------------------------------------------------------
# Parameter setup: lower ConvTranspose2d (PyTorch semantics) to a dense matmul
# ----------------------------------------------------------------------------
def convtranspose2d_to_matrix(w, b, hin, win, stride, padding, out_padding,
                              weight_dtype=jnp.bfloat16):
    """w: (Cin, Cout, kh, kw), b: (Cout,).

    Returns (M, bvec, hout, wout) with M: (Cin*hin*win, Cout*hout*wout) (bf16
    for the MXU fast path) and bvec: (Cout*hout*wout,) (f32) such that
        conv_transpose2d(x) == x.reshape(N, -1) @ M + bvec   (then reshape).
    """
    w = np.asarray(w, np.float32)
    b = np.asarray(b, np.float32)
    cin, cout, kh, kw = w.shape
    hout = (hin - 1) * stride - 2 * padding + kh + out_padding
    wout = (win - 1) * stride - 2 * padding + kw + out_padding
    m = np.zeros((cin, hin, win, cout, hout, wout), np.float32)
    for ih in range(hin):
        for iw in range(win):
            for dh in range(kh):
                for dw in range(kw):
                    oh = ih * stride - padding + dh
                    ow = iw * stride - padding + dw
                    if 0 <= oh < hout and 0 <= ow < wout:
                        m[:, ih, iw, :, oh, ow] += w[:, :, dh, dw]
    m = m.reshape(cin * hin * win, cout * hout * wout)
    bvec = np.repeat(b, hout * wout)
    return jnp.asarray(m, weight_dtype), jnp.asarray(bvec, jnp.float32), hout, wout


# ----------------------------------------------------------------------------
# Fused kernel: all layers + self.activation + channel-weighted FC + fc_bias
# ----------------------------------------------------------------------------
def _make_fused_decoder_kernel(n_layers, n_ch, hw, alphas):
    alphas = tuple(float(a) for a in alphas)   # baked as compile-time constants

    def kernel(*refs):
        x_ref = refs[0]
        m_refs = refs[1:1 + n_layers]
        b_refs = refs[1 + n_layers:1 + 2 * n_layers]
        fcw_ref = refs[1 + 2 * n_layers]
        fcb_ref = refs[2 + 2 * n_layers]
        o_ref = refs[3 + 2 * n_layers]

        # bf16 operands into the MXU, f32 accumulation, f32 elementwise math.
        h = x_ref[...].astype(jnp.bfloat16)
        z = None
        for i in range(n_layers):
            z = jnp.dot(h, m_refs[i][...], preferred_element_type=jnp.float32)
            z = z + b_refs[i][...]                      # conv bias (f32)
            a = alphas[i]
            z = jnp.where(z > 0, z, a * z)              # PReLU / self.activation
            if i < n_layers - 1:
                h = z.astype(jnp.bfloat16)

        # z: (tm, n_ch*hw).  y[n, p] = sum_c z[n, c*hw + p] * fc_w[c, p] + fc_b[p]
        y = jnp.zeros((z.shape[0], hw), jnp.float32)
        for c in range(n_ch):                           # hw is lane-aligned (mult of 128)
            y = y + z[:, c * hw:(c + 1) * hw] * fcw_ref[c, :][None, :]
        o_ref[...] = (y + fcb_ref[...]).astype(o_ref.dtype)

    return kernel


def _row_tile(n, cap=256):
    """Row (sublane) tile.

    Multiple of 8 (or the full dim), capped so big N pipelines, and split into
    >=2 grid blocks when possible so both v7x TensorCores get work.  A ragged
    last block is correct here because every output row depends only on its
    own input row.
    """
    cap = max(8, (cap // 8) * 8)
    if n > cap:
        return cap
    if n >= 16 and (n % 2 == 0) and ((n // 2) % 8 == 0):
        return n // 2
    return n


def output_cnn_fc_decoder_forward(x, layer_mats, layer_biases, prelu_alphas,
                                  fc_w, fc_b, *, tm_cap=256,
                                  vmem_limit_bytes=48 * 1024 * 1024):
    """x: (S, B, d_model) -> (B, S, d_output). Eval mode (dropout = identity)."""
    s, b, d = x.shape
    n = s * b
    # torch: x.permute(1, 0, 2).reshape(S*B, C0, H0, W0)  -> flat row index = b*S + s
    h = jnp.transpose(x, (1, 0, 2)).reshape(n, d)

    n_layers = len(layer_mats)
    n_ch, hw = fc_w.shape
    chw = layer_mats[-1].shape[1]
    assert n_ch * hw == chw, "fc_weights shape must match final conv output"

    tm = _row_tile(n, tm_cap)
    grid = (pl.cdiv(n, tm),)

    # All layer matrices stay VMEM-resident (constant index maps) -> check fit.
    weight_bytes = sum(int(np.prod(m.shape)) * m.dtype.itemsize for m in layer_mats)
    act_bytes = 4 * tm * (d + chw + hw) * 4   # rough slack for f32 temporaries
    est = 2 * weight_bytes + act_bytes
    assert est < vmem_limit_bytes, (
        f"resident-weight fused decoder needs ~{est} B VMEM > {vmem_limit_bytes}; "
        "lower tm_cap or switch to a tiled-weight variant")

    in_specs = [pl.BlockSpec((tm, d), lambda i: (i, 0))]
    for m in layer_mats:
        km, nm = m.shape
        in_specs.append(pl.BlockSpec((km, nm), lambda i: (0, 0)))      # resident
    for bv in layer_biases:
        nb = bv.shape[0]
        in_specs.append(pl.BlockSpec((1, nb), lambda i: (0, 0)))       # resident
    in_specs.append(pl.BlockSpec((n_ch, hw), lambda i: (0, 0)))        # fc_w
    in_specs.append(pl.BlockSpec((1, hw), lambda i: (0, 0)))           # fc_b

    kernel = _make_fused_decoder_kernel(n_layers, n_ch, hw, prelu_alphas)

    y = pl.pallas_call(
        kernel,
        out_shape=jax.ShapeDtypeStruct((n, hw), x.dtype),
        grid_spec=pltpu.PrefetchScalarGridSpec(
            num_scalar_prefetch=0,
            grid=grid,
            in_specs=in_specs,
            out_specs=pl.BlockSpec((tm, hw), lambda i: (i, 0)),
        ),
        compiler_params=pltpu.CompilerParams(
            dimension_semantics=("parallel",),
            vmem_limit_bytes=vmem_limit_bytes),
    )(h, *layer_mats, *[bv.reshape(1, -1) for bv in layer_biases],
      fc_w, fc_b.reshape(1, -1))

    return y.reshape(b, s, hw)


# ----------------------------------------------------------------------------
# Pure numpy reference (independent of the matmul lowering) for self-check
# ----------------------------------------------------------------------------
def _ref_conv_transpose2d(x, w, b, stride, padding, out_padding):
    n, cin, hin, win = x.shape
    _, cout, kh, kw = w.shape
    hout = (hin - 1) * stride - 2 * padding + kh + out_padding
    wout = (win - 1) * stride - 2 * padding + kw + out_padding
    out = np.zeros((n, cout, hout, wout), np.float32)
    for ih in range(hin):
        for iw in range(win):
            for dh in range(kh):
                for dw in range(kw):
                    oh = ih * stride - padding + dh
                    ow = iw * stride - padding + dw
                    if 0 <= oh < hout and 0 <= ow < wout:
                        out[:, :, oh, ow] += x[:, :, ih, iw] @ w[:, :, dh, dw]
    return out + b[None, :, None, None]


def _ref_forward(x, conv_ws, conv_bs, strides, pads, outpads, alphas,
                 fc_w, fc_b, interim_dim):
    s, b, d = x.shape
    cin0 = conv_ws[0].shape[0]
    h = np.transpose(x, (1, 0, 2)).reshape(b * s, cin0,
                                           interim_dim[0], interim_dim[1])
    n_layers = len(conv_ws)
    for i in range(n_layers):
        h = _ref_conv_transpose2d(h, conv_ws[i], conv_bs[i],
                                  strides[i], pads[i], outpads[i])
        if i < n_layers - 1:
            a = alphas[i]
            h = np.where(h > 0, h, a * h)       # PReLU (dropout eval = identity)
    a = alphas[-1]
    h = np.where(h > 0, h, a * h)               # self.activation
    n, c, ho, wo = h.shape
    y = (h.reshape(n, c, ho * wo) * fc_w[None]).sum(axis=1) + fc_b[None]
    return y.reshape(b, s, -1)


# ----------------------------------------------------------------------------
# Demo / self-check
# ----------------------------------------------------------------------------
if __name__ == "__main__":
    # channels=[8,16,4], kernel=4, stride=2, pad=1, out_pad=0, interim=[4,4]
    #   spatial: 4x4 -> 8x8 -> 16x16 ;  d_input = 8*4*4 = 128 ; d_output = 256
    S, B = 8, 2
    channels = [8, 16, 4]
    kernel_size = [4, 4]
    stride = [2, 2]
    padding = [1, 1]
    out_padding = [0, 0]
    interim_dim = [4, 4]
    d_input = channels[0] * interim_dim[0] * interim_dim[1]
    d_output = 256

    key = jax.random.PRNGKey(0)
    k_x, k_w0, k_b0, k_w1, k_b1, k_fw, k_fb = jax.random.split(key, 7)

    x = jax.random.normal(k_x, (S, B, d_input), dtype=jnp.float32)

    conv_ws, conv_bs = [], []
    wkeys = [(k_w0, k_b0), (k_w1, k_b1)]
    for i in range(len(channels) - 1):
        cin, cout, ks = channels[i], channels[i + 1], kernel_size[i]
        kw_i, kb_i = wkeys[i]
        w = jax.random.normal(kw_i, (cin, cout, ks, ks), jnp.float32) / math.sqrt(cin * ks * ks)
        bb = jax.random.normal(kb_i, (cout,), jnp.float32) * 0.1
        conv_ws.append(np.asarray(w))
        conv_bs.append(np.asarray(bb))

    # One PReLU per intermediate layer + the outer self.activation (torch init 0.25).
    prelu_alphas = [0.25] * (len(channels) - 2) + [0.25]
    fc_w = jax.random.normal(k_fw, (channels[-1], d_output), jnp.float32)
    fc_b = jax.random.normal(k_fb, (d_output,), jnp.float32)

    # Lower every ConvTranspose2d to a dense (bf16) matmul once (parameter setup).
    layer_mats, layer_biases = [], []
    h_sp, w_sp = interim_dim
    for i in range(len(channels) - 1):
        m_i, b_i, h_sp, w_sp = convtranspose2d_to_matrix(
            conv_ws[i], conv_bs[i], h_sp, w_sp,
            stride[i], padding[i], out_padding[i])
        layer_mats.append(m_i)
        layer_biases.append(b_i)
    assert h_sp * w_sp == d_output, "fc_weights broadcast requires H*W == d_output"

    out = output_cnn_fc_decoder_forward(
        x, layer_mats, layer_biases, prelu_alphas, fc_w, fc_b)
    out = jax.block_until_ready(out)

    ref = _ref_forward(np.asarray(x), conv_ws, conv_bs, stride, padding,
                       out_padding, prelu_alphas, np.asarray(fc_w),
                       np.asarray(fc_b), interim_dim)

    assert out.shape == (B, S, d_output), out.shape
    assert out.dtype == x.dtype
    err = float(np.max(np.abs(np.asarray(out) - ref)))
    assert np.allclose(np.asarray(out), ref, atol=5e-2, rtol=5e-2), f"max abs err {err}"
    print("KERNEL_OK")
</pallas_src>

<mosaic_0001>
module attributes {stable_mosaic.version = 11 : i64} {
  func.func @kernel(%arg0: i32, %arg1: memref<8x128xf32, #tpu.memory_space<vmem>>, %arg2: memref<128x1024xbf16, #tpu.memory_space<vmem>>, %arg3: memref<1024x1024xbf16, #tpu.memory_space<vmem>>, %arg4: memref<1x1024xf32, #tpu.memory_space<vmem>>, %arg5: memref<1x1024xf32, #tpu.memory_space<vmem>>, %arg6: memref<4x256xf32, #tpu.memory_space<vmem>>, %arg7: memref<1x256xf32, #tpu.memory_space<vmem>>, %arg8: memref<8x256xf32, #tpu.memory_space<vmem>>) attributes {dimension_semantics = [#tpu.dimension_semantics<parallel>], iteration_bounds = array<i64: 2>, scalar_prefetch = 0 : i64, scratch_operands = 0 : i64, tpu.core_type = #tpu.core_type<tc>, window_params = [{transform_indices = @transform_0, window_bounds = array<i64: 8, 128>}, {pipeline_mode = #tpu.pipeline_mode<synchronous>, transform_indices = @transform_1, window_bounds = array<i64: 128, 1024>}, {pipeline_mode = #tpu.pipeline_mode<synchronous>, transform_indices = @transform_2, window_bounds = array<i64: 1024, 1024>}, {pipeline_mode = #tpu.pipeline_mode<synchronous>, transform_indices = @transform_3, window_bounds = array<i64: 1, 1024>}, {pipeline_mode = #tpu.pipeline_mode<synchronous>, transform_indices = @transform_4, window_bounds = array<i64: 1, 1024>}, {pipeline_mode = #tpu.pipeline_mode<synchronous>, transform_indices = @transform_5, window_bounds = array<i64: 4, 256>}, {pipeline_mode = #tpu.pipeline_mode<synchronous>, transform_indices = @transform_6, window_bounds = array<i64: 1, 256>}, {transform_indices = @transform_7, window_bounds = array<i64: 8, 256>}]} {
    %c0 = arith.constant 0 : index
    %c0_0 = arith.constant 0 : index
    %0 = vector.load %arg1[%c0, %c0_0] : memref<8x128xf32, #tpu.memory_space<vmem>>, vector<8x128xf32>
    %1 = arith.truncf %0 : vector<8x128xf32> to vector<8x128xbf16>
    %c0_1 = arith.constant 0 : index
    %c0_2 = arith.constant 0 : index
    %2 = vector.load %arg2[%c0_1, %c0_2] : memref<128x1024xbf16, #tpu.memory_space<vmem>>, vector<128x1024xbf16>
    %cst = arith.constant dense<0.000000e+00> : vector<8x1024xf32>
    %3 = tpu.matmul %1, %2, %cst {dimension_numbers = #tpu.dot_dimension_numbers<[1], [0], [0], [1], [0, 0, 1, 1], [], []>} : vector<8x128xbf16>, vector<128x1024xbf16>, vector<8x1024xf32> -> vector<8x1024xf32>
    %c0_3 = arith.constant 0 : index
    %c0_4 = arith.constant 0 : index
    %4 = vector.load %arg4[%c0_3, %c0_4] : memref<1x1024xf32, #tpu.memory_space<vmem>>, vector<1x1024xf32>
    %5 = vector.broadcast %4 : vector<1x1024xf32> to vector<8x1024xf32>
    %6 = arith.addf %3, %5 : vector<8x1024xf32>
    %cst_5 = arith.constant 0.000000e+00 : f32
    %7 = vector.broadcast %cst_5 : f32 to vector<8x1024xf32>
    %8 = arith.cmpf ogt, %6, %7 : vector<8x1024xf32>
    %cst_6 = arith.constant 2.500000e-01 : f32
    %9 = vector.broadcast %cst_6 : f32 to vector<8x1024xf32>
    %10 = arith.mulf %9, %6 : vector<8x1024xf32>
    %11 = arith.select %8, %6, %10 : vector<8x1024xi1>, vector<8x1024xf32>
    %12 = arith.truncf %11 : vector<8x1024xf32> to vector<8x1024xbf16>
    %c0_7 = arith.constant 0 : index
    %c0_8 = arith.constant 0 : index
    %13 = vector.load %arg3[%c0_7, %c0_8] : memref<1024x1024xbf16, #tpu.memory_space<vmem>>, vector<1024x1024xbf16>
    %cst_9 = arith.constant dense<0.000000e+00> : vector<8x1024xf32>
    %14 = tpu.matmul %12, %13, %cst_9 {dimension_numbers = #tpu.dot_dimension_numbers<[1], [0], [0], [1], [0, 0, 1, 1], [], []>} : vector<8x1024xbf16>, vector<1024x1024xbf16>, vector<8x1024xf32> -> vector<8x1024xf32>
    %c0_10 = arith.constant 0 : index
    %c0_11 = arith.constant 0 : index
    %15 = vector.load %arg5[%c0_10, %c0_11] : memref<1x1024xf32, #tpu.memory_space<vmem>>, vector<1x1024xf32>
    %16 = vector.broadcast %15 : vector<1x1024xf32> to vector<8x1024xf32>
    %17 = arith.addf %14, %16 : vector<8x1024xf32>
    %cst_12 = arith.constant 0.000000e+00 : f32
    %18 = vector.broadcast %cst_12 : f32 to vector<8x1024xf32>
    %19 = arith.cmpf ogt, %17, %18 : vector<8x1024xf32>
    %cst_13 = arith.constant 2.500000e-01 : f32
    %20 = vector.broadcast %cst_13 : f32 to vector<8x1024xf32>
    %21 = arith.mulf %20, %17 : vector<8x1024xf32>
    %22 = arith.select %19, %17, %21 : vector<8x1024xi1>, vector<8x1024xf32>
    %cst_14 = arith.constant 0.000000e+00 : f32
    %23 = vector.broadcast %cst_14 : f32 to vector<8x256xf32>
    %24 = vector.extract_strided_slice %22 {offsets = [0, 0], sizes = [8, 256], strides = [1, 1]} : vector<8x1024xf32> to vector<8x256xf32>
    %c0_15 = arith.constant 0 : index
    %c0_16 = arith.constant 0 : index
    %25 = vector.load %arg6[%c0_15, %c0_16] : memref<4x256xf32, #tpu.memory_space<vmem>>, vector<1x256xf32>
    %26 = vector.shape_cast %25 : vector<1x256xf32> to vector<256xf32>
    %27 = vector.shape_cast %26 : vector<256xf32> to vector<1x256xf32>
    %28 = vector.broadcast %27 : vector<1x256xf32> to vector<8x256xf32>
    %29 = arith.mulf %24, %28 : vector<8x256xf32>
    %30 = arith.addf %23, %29 : vector<8x256xf32>
    %31 = vector.extract_strided_slice %22 {offsets = [0, 256], sizes = [8, 256], strides = [1, 1]} : vector<8x1024xf32> to vector<8x256xf32>
    %c1 = arith.constant 1 : index
    %c0_17 = arith.constant 0 : index
    %32 = vector.load %arg6[%c1, %c0_17] : memref<4x256xf32, #tpu.memory_space<vmem>>, vector<1x256xf32>
    %33 = vector.shape_cast %32 : vector<1x256xf32> to vector<256xf32>
    %34 = vector.shape_cast %33 : vector<256xf32> to vector<1x256xf32>
    %35 = vector.broadcast %34 : vector<1x256xf32> to vector<8x256xf32>
    %36 = arith.mulf %31, %35 : vector<8x256xf32>
    %37 = arith.addf %30, %36 : vector<8x256xf32>
    %38 = vector.extract_strided_slice %22 {offsets = [0, 512], sizes = [8, 256], strides = [1, 1]} : vector<8x1024xf32> to vector<8x256xf32>
    %c2 = arith.constant 2 : index
    %c0_18 = arith.constant 0 : index
    %39 = vector.load %arg6[%c2, %c0_18] : memref<4x256xf32, #tpu.memory_space<vmem>>, vector<1x256xf32>
    %40 = vector.shape_cast %39 : vector<1x256xf32> to vector<256xf32>
    %41 = vector.shape_cast %40 : vector<256xf32> to vector<1x256xf32>
    %42 = vector.broadcast %41 : vector<1x256xf32> to vector<8x256xf32>
    %43 = arith.mulf %38, %42 : vector<8x256xf32>
    %44 = arith.addf %37, %43 : vector<8x256xf32>
    %45 = vector.extract_strided_slice %22 {offsets = [0, 768], sizes = [8, 256], strides = [1, 1]} : vector<8x1024xf32> to vector<8x256xf32>
    %c3 = arith.constant 3 : index
    %c0_19 = arith.constant 0 : index
    %46 = vector.load %arg6[%c3, %c0_19] : memref<4x256xf32, #tpu.memory_space<vmem>>, vector<1x256xf32>
    %47 = vector.shape_cast %46 : vector<1x256xf32> to vector<256xf32>
    %48 = vector.shape_cast %47 : vector<256xf32> to vector<1x256xf32>
    %49 = vector.broadcast %48 : vector<1x256xf32> to vector<8x256xf32>
    %50 = arith.mulf %45, %49 : vector<8x256xf32>
    %51 = arith.addf %44, %50 : vector<8x256xf32>
    %c0_20 = arith.constant 0 : index
    %c0_21 = arith.constant 0 : index
    %52 = vector.load %arg7[%c0_20, %c0_21] : memref<1x256xf32, #tpu.memory_space<vmem>>, vector<1x256xf32>
    %53 = vector.broadcast %52 : vector<1x256xf32> to vector<8x256xf32>
    %54 = arith.addf %51, %53 : vector<8x256xf32>
    %c0_22 = arith.constant 0 : index
    %c0_23 = arith.constant 0 : index
    %55 = vector.load %arg8[%c0_22, %c0_23] : memref<8x256xf32, #tpu.memory_space<vmem>>, vector<8x256xf32>
    tpu.vector_store %arg8[%c0_22, %c0_23], %54 {strides = array<i32>} : memref<8x256xf32, #tpu.memory_space<vmem>>, vector<8x256xf32>,
    return
  }
  func.func @transform_0(%arg0: i32) -> (i32, i32) {
    %c0_i32 = arith.constant 0 : i32
    %c0_i32_0 = arith.constant 0 : i32
    return %arg0, %c0_i32 : i32, i32
  }
  func.func @transform_1(%arg0: i32) -> (i32, i32) {
    %c0_i32 = arith.constant 0 : i32
    %c0_i32_0 = arith.constant 0 : i32
    %c0_i32_1 = arith.constant 0 : i32
    return %c0_i32, %c0_i32_0 : i32, i32
  }
  func.func @transform_2(%arg0: i32) -> (i32, i32) {
    %c0_i32 = arith.constant 0 : i32
    %c0_i32_0 = arith.constant 0 : i32
    %c0_i32_1 = arith.constant 0 : i32
    return %c0_i32, %c0_i32_0 : i32, i32
  }
  func.func @transform_3(%arg0: i32) -> (i32, i32) {
    %c0_i32 = arith.constant 0 : i32
    %c0_i32_0 = arith.constant 0 : i32
    %c0_i32_1 = arith.constant 0 : i32
    return %c0_i32, %c0_i32_0 : i32, i32
  }
  func.func @transform_4(%arg0: i32) -> (i32, i32) {
    %c0_i32 = arith.constant 0 : i32
    %c0_i32_0 = arith.constant 0 : i32
    %c0_i32_1 = arith.constant 0 : i32
    return %c0_i32, %c0_i32_0 : i32, i32
  }
  func.func @transform_5(%arg0: i32) -> (i32, i32) {
    %c0_i32 = arith.constant 0 : i32
    %c0_i32_0 = arith.constant 0 : i32
    %c0_i32_1 = arith.constant 0 : i32
    return %c0_i32, %c0_i32_0 : i32, i32
  }
  func.func @transform_6(%arg0: i32) -> (i32, i32) {
    %c0_i32 = arith.constant 0 : i32
    %c0_i32_0 = arith.constant 0 : i32
    %c0_i32_1 = arith.constant 0 : i32
    return %c0_i32, %c0_i32_0 : i32, i32
  }
  func.func @transform_7(%arg0: i32) -> (i32, i32) {
    %c0_i32 = arith.constant 0 : i32
    %c0_i32_0 = arith.constant 0 : i32
    return %arg0, %c0_i32 : i32, i32
  }
}

</mosaic_0001>

<llo_original>
// kernel: tpu_custom_call.1
$region0: #{tpu_custom_call.1}
  #allocation0 [shape = 'u32[]', space=smem, size = 0x4, offset = 0x4, fixed_abs, tag = 'smem constant byte address 0x4 - core index']
  #allocation1 [shape = 'u32[144,128]{1,0:T(1,128)}', space=vmem, size = 0x12000, scoped, tag = 'internal scratch']
  %s0 = inlined_call_operand.hbm [shape: f32[16,128], index: 0, kind: input, shape index: {}]
  %s1 = inlined_call_operand.hbm [shape: bf16[128,1024], index: 1, kind: input, shape index: {}]
  %s2 = inlined_call_operand.hbm [shape: bf16[1024,1024], index: 2, kind: input, shape index: {}]
  %s3 = inlined_call_operand.hbm [shape: f32[1,1024], index: 3, kind: input, shape index: {}]
  %s4 = inlined_call_operand.hbm [shape: f32[1,1024], index: 4, kind: input, shape index: {}]
  %s5 = inlined_call_operand.hbm [shape: f32[4,256], index: 5, kind: input, shape index: {}]
  %s6 = inlined_call_operand.hbm [shape: f32[1,256], index: 6, kind: input, shape index: {}]
  %s7 = inlined_call_operand.hbm [shape: f32[16,256], index: 7, kind: output, shape index: {}]
  %s8 = sld [smem:[#allocation0]]
  $region89: #{tpu_custom_call.1} parent=0
    _
  %s10 = ssub.s32 1, %s8
  %s11 = scalar_select 0, %s10, %s8
  $region1: #{tpu_custom_call.1} parent=0
    #allocation2 [shape = 'u8[8192]{0}', space=vmem, size = 0x2000, scoped, tag = 'input window, operand 0']
    #allocation3 [shape = 's32[2]{0}', space=sflag, size = 0x8, scoped, tag = 'scoped memory for tpu_custom_call.1']
    #allocation4 [shape = 's32[2]{0}', space=sflag, size = 0x8, scoped, tag = 'scoped memory for tpu_custom_call.1']
    #allocation5 [shape = 'u8[262144]{0}', space=vmem, size = 0x40000, scoped, tag = 'input window, operand 1, single buffered']
    #allocation6 [shape = 's32[1]{0}', space=sflag, size = 0x4, scoped, tag = 'scoped memory for tpu_custom_call.1']
    #allocation7 [shape = 'u8[2097152]{0}', space=vmem, size = 0x200000, scoped, tag = 'input window, operand 2, single buffered']
    #allocation8 [shape = 'u8[4096]{0}', space=vmem, size = 0x1000, scoped, tag = 'input window, operand 3, single buffered']
    #allocation9 [shape = 's32[1]{0}', space=sflag, size = 0x4, scoped, tag = 'scoped memory for tpu_custom_call.1']
    #allocation10 [shape = 'u8[4096]{0}', space=vmem, size = 0x1000, scoped, tag = 'input window, operand 4, single buffered']
    #allocation11 [shape = 'u8[4096]{0}', space=vmem, size = 0x1000, scoped, tag = 'input window, operand 5, single buffered']
    #allocation12 [shape = 's32[1]{0}', space=sflag, size = 0x4, scoped, tag = 'scoped memory for tpu_custom_call.1']
    #allocation13 [shape = 'u8[1024]{0}', space=vmem, size = 0x400, scoped, tag = 'input window, operand 6, single buffered']
    #allocation14 [shape = 'u8[16384]{0}', space=vmem, size = 0x4000, scoped, tag = 'output window, operand 0']
    %12 = vsyncpa [#allocation3], 0
    %s13 = scalar_lea.sflag [#allocation3], 1
    %14 = vsyncpa %s13, 0
    %15 = vsyncpa [#allocation6], 0
    %16 = vsyncpa [#allocation9], 0
    %17 = vsyncpa [#allocation12], 0
    %18 = vsyncpa [#allocation4], 0
    %s19 = scalar_lea.sflag [#allocation4], 1
    %20 = vsyncpa %s19, 0
    loop: start=0, step=1, limit=4
    $region2: #{tpu_custom_call.1} parent=1 // loop_pre_header
      _
    $region3: #{tpu_custom_call.1} parent=1 // loop_header
      %s22 = sphi 0, %s26
      %p23 = scmp.ge.s32.totalorder %s22, 4
      %s32 = sphi 0, %s34
      %s35 = sphi 0, %s32
      %s36 = sphi 0, %s35
      %s52 = sphi 0, %s36
      %s56 = sphi 0, %s56
      %s58 = sphi 0, %s56
      %s59 = sphi 0, %s58
      %s73 = sphi 0, %s59
      %s77 = sphi 0, %s77
      %s79 = sphi 0, %s77
      %s80 = sphi 0, %s79
      %s94 = sphi 0, %s80
      %s98 = sphi 0, %s98
      %s100 = sphi 0, %s98
      %s101 = sphi 0, %s100
      %s115 = sphi 0, %s101
      %s119 = sphi 0, %s119
      %s121 = sphi 0, %s119
      %s122 = sphi 0, %s121
      %s136 = sphi 0, %s122
      %s140 = sphi 0, %s140
      %s142 = sphi 0, %s140
      %s143 = sphi 0, %s142
      %s157 = sphi 0, %s143
      %s161 = sphi 0, %s161
      %s163 = sphi 0, %s161
      %s164 = sphi 0, %s163
      %s178 = sphi 0, %s164
      %s184 = sphi 0, %s186
      %s187 = sphi 0, %s184
      %s188 = sphi 0, %s187
      %s204 = sphi 0, %s188
    $region4: #{tpu_custom_call.1} parent=1 // loop_header_branch
      %25 = sbr.rel (%p23) target = $region8
    $region5: #{tpu_custom_call.1} parent=1 // loop_body
      %s27 = ssub.s32 %s22, 1
      %s28 = ssub.s32 %s22, 2
      %s29 = sadd.s32 %s22, 1
      %s30 = ssub.s32 %s22, %s29
      %p31 = scmp.eq.s32.totalorder %s30, 0
      %s33 = sadd.s32 %s32, 1
      %s34 = scalar_select %p31, %s32, %s33
      %p37 = pneg %p31
      %p38 = scmp.eq.s32.totalorder %s22, 1
      %p39 = por %p37, %p38
      %p40 = scmp.ne.s32.totalorder %s32, %s35
      %p41 = scmp.eq.s32.totalorder %s22, 0
      %p42 = por %p40, %p41
      %p43 = scmp.ne.s32.totalorder %s32, %s35
      %p44 = scmp.eq.s32.totalorder %s27, 1
      %p45 = por %p43, %p44
      %p46 = scmp.ne.s32.totalorder %s35, %s36
      %p47 = scmp.eq.s32.totalorder %s27, 0
      %p48 = por %p46, %p47
      %p49 = scmp.ne.s32.totalorder %s35, %s36
      %p50 = scmp.eq.s32.totalorder %s28, 1
      %p51 = por %p49, %p50
      %p53 = scmp.ne.s32.totalorder %s36, %s52
      %p54 = scmp.eq.s32.totalorder %s28, 0
      %p55 = por %p53, %p54
      %s57 = sadd.s32 %s56, 1
      %p60 = scmp.eq.s32.totalorder %s22, 1
      %p61 = scmp.ne.s32.totalorder %s56, %s58
      %p62 = scmp.eq.s32.totalorder %s22, 0
      %p63 = por %p61, %p62
      %p64 = scmp.ne.s32.totalorder %s56, %s58
      %p65 = scmp.eq.s32.totalorder %s27, 1
      %p66 = por %p64, %p65
      %p67 = scmp.ne.s32.totalorder %s58, %s59
      %p68 = scmp.eq.s32.totalorder %s27, 0
      %p69 = por %p67, %p68
      %p70 = scmp.ne.s32.totalorder %s58, %s59
      %p71 = scmp.eq.s32.totalorder %s28, 1
      %p72 = por %p70, %p71
      %p74 = scmp.ne.s32.totalorder %s59, %s73
      %p75 = scmp.eq.s32.totalorder %s28, 0
      %p76 = por %p74, %p75
      %s78 = sadd.s32 %s77, 1
      %p81 = scmp.eq.s32.totalorder %s22, 1
      %p82 = scmp.ne.s32.totalorder %s77, %s79
      %p83 = scmp.eq.s32.totalorder %s22, 0
      %p84 = por %p82, %p83
      %p85 = scmp.ne.s32.totalorder %s77, %s79
      %p86 = scmp.eq.s32.totalorder %s27, 1
      %p87 = por %p85, %p86
      %p88 = scmp.ne.s32.totalorder %s79, %s80
      %p89 = scmp.eq.s32.totalorder %s27, 0
      %p90 = por %p88, %p89
      %p91 = scmp.ne.s32.totalorder %s79, %s80
      %p92 = scmp.eq.s32.totalorder %s28, 1
      %p93 = por %p91, %p92
      %p95 = scmp.ne.s32.totalorder %s80, %s94
      %p96 = scmp.eq.s32.totalorder %s28, 0
      %p97 = por %p95, %p96
      %s99 = sadd.s32 %s98, 1
      %p102 = scmp.eq.s32.totalorder %s22, 1
      %p103 = scmp.ne.s32.totalorder %s98, %s100
      %p104 = scmp.eq.s32.totalorder %s22, 0
      %p105 = por %p103, %p104
      %p106 = scmp.ne.s32.totalorder %s98, %s100
      %p107 = scmp.eq.s32.totalorder %s27, 1
      %p108 = por %p106, %p107
      %p109 = scmp.ne.s32.totalorder %s100, %s101
      %p110 = scmp.eq.s32.totalorder %s27, 0
      %p111 = por %p109, %p110
      %p112 = scmp.ne.s32.totalorder %s100, %s101
      %p113 = scmp.eq.s32.totalorder %s28, 1
      %p114 = por %p112, %p113
      %p116 = scmp.ne.s32.totalorder %s101, %s115
      %p117 = scmp.eq.s32.totalorder %s28, 0
      %p118 = por %p116, %p117
      %s120 = sadd.s32 %s119, 1
      %p123 = scmp.eq.s32.totalorder %s22, 1
      %p124 = scmp.ne.s32.totalorder %s119, %s121
      %p125 = scmp.eq.s32.totalorder %s22, 0
      %p126 = por %p124, %p125
      %p127 = scmp.ne.s32.totalorder %s119, %s121
      %p128 = scmp.eq.s32.totalorder %s27, 1
      %p129 = por %p127, %p128
      %p130 = scmp.ne.s32.totalorder %s121, %s122
      %p131 = scmp.eq.s32.totalorder %s27, 0
      %p132 = por %p130, %p131
      %p133 = scmp.ne.s32.totalorder %s121, %s122
      %p134 = scmp.eq.s32.totalorder %s28, 1
      %p135 = por %p133, %p134
      %p137 = scmp.ne.s32.totalorder %s122, %s136
      %p138 = scmp.eq.s32.totalorder %s28, 0
      %p139 = por %p137, %p138
      %s141 = sadd.s32 %s140, 1
      %p144 = scmp.eq.s32.totalorder %s22, 1
      %p145 = scmp.ne.s32.totalorder %s140, %s142
      %p146 = scmp.eq.s32.totalorder %s22, 0
      %p147 = por %p145, %p146
      %p148 = scmp.ne.s32.totalorder %s140, %s142
      %p149 = scmp.eq.s32.totalorder %s27, 1
      %p150 = por %p148, %p149
      %p151 = scmp.ne.s32.totalorder %s142, %s143
      %p152 = scmp.eq.s32.totalorder %s27, 0
      %p153 = por %p151, %p152
      %p154 = scmp.ne.s32.totalorder %s142, %s143
      %p155 = scmp.eq.s32.totalorder %s28, 1
      %p156 = por %p154, %p155
      %p158 = scmp.ne.s32.totalorder %s143, %s157
      %p159 = scmp.eq.s32.totalorder %s28, 0
      %p160 = por %p158, %p159
      %s162 = sadd.s32 %s161, 1
      %p165 = scmp.eq.s32.totalorder %s22, 1
      %p166 = scmp.ne.s32.totalorder %s161, %s163
      %p167 = scmp.eq.s32.totalorder %s22, 0
      %p168 = por %p166, %p167
      %p169 = scmp.ne.s32.totalorder %s161, %s163
      %p170 = scmp.eq.s32.totalorder %s27, 1
      %p171 = por %p169, %p170
      %p172 = scmp.ne.s32.totalorder %s163, %s164
      %p173 = scmp.eq.s32.totalorder %s27, 0
      %p174 = por %p172, %p173
      %p175 = scmp.ne.s32.totalorder %s163, %s164
      %p176 = scmp.eq.s32.totalorder %s28, 1
      %p177 = por %p175, %p176
      %p179 = scmp.ne.s32.totalorder %s164, %s178
      %p180 = scmp.eq.s32.totalorder %s28, 0
      %p181 = por %p179, %p180
      %s182 = ssub.s32 %s22, %s29
      %p183 = scmp.eq.s32.totalorder %s182, 0
      %s185 = sadd.s32 %s184, 1
      %s186 = scalar_select %p183, %s184, %s185
      %p189 = pneg %p183
      %p190 = scmp.eq.s32.totalorder %s22, 1
      %p191 = por %p189, %p190
      %p192 = scmp.ne.s32.totalorder %s184, %s187
      %p193 = scmp.eq.s32.totalorder %s22, 0
      %p194 = por %p192, %p193
      %p195 = scmp.ne.s32.totalorder %s184, %s187
      %p196 = scmp.eq.s32.totalorder %s27, 1
      %p197 = por %p195, %p196
      %p198 = scmp.ne.s32.totalorder %s187, %s188
      %p199 = scmp.eq.s32.totalorder %s27, 0
      %p200 = por %p198, %p199
      %p201 = scmp.ne.s32.totalorder %s187, %s188
      %p202 = scmp.eq.s32.totalorder %s28, 1
      %p203 = por %p201, %p202
      %p205 = scmp.ne.s32.totalorder %s188, %s204
      %p206 = scmp.eq.s32.totalorder %s28, 0
      %p207 = por %p205, %p206
      %p208 = scmp.le.s32.totalorder 1, %s22
      %p209 = scmp.lt.s32.totalorder %s22, 3
      %p210 = pnand %p208, %p209
      %p211 = pneg %p210
      // Predicated region
      $region9: #{tpu_custom_call.1} parent=5 // pred_check
        _
      $region10: #{tpu_custom_call.1} parent=5 // pred_check_branch
        %213 = sbr.rel (%p210) target = $region12
      $region11: #{tpu_custom_call.1} parent=5 // pred_region
        %s214 = ssub.s32 %s22, 1
        // Predicated region
        $region13: #{tpu_custom_call.1} parent=11 // pred_check
          %p215 = pneg %p69
        $region14: #{tpu_custom_call.1} parent=11 // pred_check_branch
          %217 = sbr.rel (%p215) target = $region16
        $region15: #{tpu_custom_call.1} parent=11 // pred_region
          %s219 = ssub.s32 8192, 8192
          %220 = vsyncadd [#allocation6], %s219
          %s221 = sshll.u32 [#allocation5], 4
          %s222 = int_to_ptr.vmem [resolvable:$true] %s221
          %227 = dma.hbm_to_vmem [thread:$0]  %s1, 8192, %s222, [#allocation6], 512, 512, 32
        $region16: #{tpu_custom_call.1} parent=11 // pred_fallthru
          _
        // Predicated region
        $region17: #{tpu_custom_call.1} parent=11 // pred_check
          %p228 = pneg %p90
        $region18: #{tpu_custom_call.1} parent=11 // pred_check_branch
          %230 = sbr.rel (%p228) target = $region20
        $region19: #{tpu_custom_call.1} parent=11 // pred_region
          %s232 = ssub.s32 65536, 65536
          %233 = vsyncadd [#allocation6], %s232
          %s234 = sshll.u32 [#allocation7], 4
          %s235 = int_to_ptr.vmem [resolvable:$true] %s234
          %240 = dma.hbm_to_vmem [thread:$0]  %s2, 65536, %s235, [#allocation6], 512, 512, 32
        $region20: #{tpu_custom_call.1} parent=11 // pred_fallthru
          _
        // Predicated region
        $region21: #{tpu_custom_call.1} parent=11 // pred_check
          %p241 = pneg %p111
        $region22: #{tpu_custom_call.1} parent=11 // pred_check_branch
          %243 = sbr.rel (%p241) target = $region24
        $region23: #{tpu_custom_call.1} parent=11 // pred_region
          %s245 = ssub.s32 128, 128
          %246 = vsyncadd [#allocation9], %s245
          %s248 = sshll.u32 [#allocation8], 4
          %s249 = int_to_ptr.vmem [resolvable:$true] %s248
          %251 = dma.hbm_to_vmem [thread:$0]  %s3, 128, %s249, [#allocation9]
        $region24: #{tpu_custom_call.1} parent=11 // pred_fallthru
          _
        // Predicated region
        $region25: #{tpu_custom_call.1} parent=11 // pred_check
          %p252 = pneg %p132
        $region26: #{tpu_custom_call.1} parent=11 // pred_check_branch
          %254 = sbr.rel (%p252) target = $region28
        $region27: #{tpu_custom_call.1} parent=11 // pred_region
          %s256 = ssub.s32 128, 128
          %257 = vsyncadd [#allocation9], %s256
          %s259 = sshll.u32 [#allocation10], 4
          %s260 = int_to_ptr.vmem [resolvable:$true] %s259
          %262 = dma.hbm_to_vmem [thread:$0]  %s4, 128, %s260, [#allocation9]
        $region28: #{tpu_custom_call.1} parent=11 // pred_fallthru
          _
        // Predicated region
        $region29: #{tpu_custom_call.1} parent=11 // pred_check
          %p263 = pneg %p153
        $region30: #{tpu_custom_call.1} parent=11 // pred_check_branch
          %265 = sbr.rel (%p263) target = $region32
        $region31: #{tpu_custom_call.1} parent=11 // pred_region
          %s267 = ssub.s32 128, 128
          %268 = vsyncadd [#allocation12], %s267
          %s270 = sshll.u32 [#allocation11], 4
          %s271 = int_to_ptr.vmem [resolvable:$true] %s270
          %273 = dma.hbm_to_vmem [thread:$0]  %s5, 128, %s271, [#allocation12]
        $region32: #{tpu_custom_call.1} parent=11 // pred_fallthru
          _
        // Predicated region
        $region33: #{tpu_custom_call.1} parent=11 // pred_check
          %p274 = pneg %p174
        $region34: #{tpu_custom_call.1} parent=11 // pred_check_branch
          %276 = sbr.rel (%p274) target = $region36
        $region35: #{tpu_custom_call.1} parent=11 // pred_region
          %s278 = ssub.s32 32, 32
          %279 = vsyncadd [#allocation12], %s278
          %s281 = sshll.u32 [#allocation13], 4
          %s282 = int_to_ptr.vmem [resolvable:$true] %s281
          %284 = dma.hbm_to_vmem [thread:$0]  %s6, 32, %s282, [#allocation12]
        $region36: #{tpu_custom_call.1} parent=11 // pred_fallthru
          _
      $region12: #{tpu_custom_call.1} parent=5 // pred_fallthru
        _
      %p285 = scmp.lt.s32.totalorder %s22, 2
      // Predicated region
      $region37: #{tpu_custom_call.1} parent=5 // pred_check
        %p286 = pneg %p285
      $region38: #{tpu_custom_call.1} parent=5 // pred_check_branch
        %288 = sbr.rel (%p286) target = $region40
      $region39: #{tpu_custom_call.1} parent=5 // pred_region
        // Predicated region
        $region41: #{tpu_custom_call.1} parent=39 // pred_check
          %p289 = pneg %p42
        $region42: #{tpu_custom_call.1} parent=39 // pred_check_branch
          %291 = sbr.rel (%p289) target = $region44
        $region43: #{tpu_custom_call.1} parent=39 // pred_region
          %s292 = sand.u32 %s32, 1
          %s293 = scalar_lea.sflag [#allocation3], %s292
          %s294 = sand.u32 %s32, 1
          %s295 = smul.addr %s294, 8
          %s296 = scalar_lea.vmem [#allocation2], %s295
          %s298 = ssub.s32 128, 128
          %299 = vsyncadd %s293, %s298
          %s300 = smul.addr %s22, 128
          %s301 = scalar_lea.hbm %s0, %s300
          %s303 = sshll.u32 %s296, 4
          %s304 = int_to_ptr.vmem [resolvable:$true] %s303
          %306 = dma.hbm_to_vmem [thread:$0]  %s301, 128, %s304, %s293
        $region44: #{tpu_custom_call.1} parent=39 // pred_fallthru
          _
      $region40: #{tpu_custom_call.1} parent=5 // pred_fallthru
        _
      %p307 = scmp.le.s32.totalorder 1, %s22
      %p308 = scmp.lt.s32.totalorder %s22, 3
      %p309 = pnand %p307, %p308
      %p310 = pneg %p309
      // Predicated region
      $region45: #{tpu_custom_call.1} parent=5 // pred_check
        _
      $region46: #{tpu_custom_call.1} parent=5 // pred_check_branch
        %312 = sbr.rel (%p309) target = $region48
      $region47: #{tpu_custom_call.1} parent=5 // pred_region
        %s313 = ssub.s32 %s22, 1
        %s314 = sand.u32 %s35, 1
        %s315 = scalar_lea.sflag [#allocation3], %s314
        %s316 = sand.u32 %s35, 1
        %s317 = smul.addr %s316, 8
        %s318 = scalar_lea.vmem [#allocation2], %s317
        // Predicated region
        $region49: #{tpu_custom_call.1} parent=47 // pred_check
          %p319 = pneg %p48
        $region50: #{tpu_custom_call.1} parent=47 // pred_check_branch
          %321 = sbr.rel (%p319) target = $region52
        $region51: #{tpu_custom_call.1} parent=47 // pred_region
          %322 = dma.done %s315, 128
        $region52: #{tpu_custom_call.1} parent=47 // pred_fallthru
          _
        // Predicated region
        $region53: #{tpu_custom_call.1} parent=47 // pred_check
          %p323 = pneg %p69
        $region54: #{tpu_custom_call.1} parent=47 // pred_check_branch
          %325 = sbr.rel (%p323) target = $region56
        $region55: #{tpu_custom_call.1} parent=47 // pred_region
          %326 = dma.done [#allocation6], 8192
        $region56: #{tpu_custom_call.1} parent=47 // pred_fallthru
          _
        // Predicated region
        $region57: #{tpu_custom_call.1} parent=47 // pred_check
          %p327 = pneg %p90
        $region58: #{tpu_custom_call.1} parent=47 // pred_check_branch
          %329 = sbr.rel (%p327) target = $region60
        $region59: #{tpu_custom_call.1} parent=47 // pred_region
          %330 = dma.done [#allocation6], 65536
        $region60: #{tpu_custom_call.1} parent=47 // pred_fallthru
          _
        // Predicated region
        $region61: #{tpu_custom_call.1} parent=47 // pred_check
          %p331 = pneg %p111
        $region62: #{tpu_custom_call.1} parent=47 // pred_check_branch
          %333 = sbr.rel (%p331) target = $region64
        $region63: #{tpu_custom_call.1} parent=47 // pred_region
          %334 = dma.done [#allocation9], 128
        $region64: #{tpu_custom_call.1} parent=47 // pred_fallthru
          _
        // Predicated region
        $region65: #{tpu_custom_call.1} parent=47 // pred_check
          %p335 = pneg %p132
        $region66: #{tpu_custom_call.1} parent=47 // pred_check_branch
          %337 = sbr.rel (%p335) target = $region68
        $region67: #{tpu_custom_call.1} parent=47 // pred_region
          %338 = dma.done [#allocation9], 128
        $region68: #{tpu_custom_call.1} parent=47 // pred_fallthru
          _
        // Predicated region
        $region69: #{tpu_custom_call.1} parent=47 // pred_check
          %p339 = pneg %p153
        $region70: #{tpu_custom_call.1} parent=47 // pred_check_branch
          %341 = sbr.rel (%p339) target = $region72
        $region71: #{tpu_custom_call.1} parent=47 // pred_region
          %342 = dma.done [#allocation12], 128
        $region72: #{tpu_custom_call.1} parent=47 // pred_fallthru
          _
        // Predicated region
        $region73: #{tpu_custom_call.1} parent=47 // pred_check
          %p343 = pneg %p174
        $region74: #{tpu_custom_call.1} parent=47 // pred_check_branch
          %345 = sbr.rel (%p343) target = $region76
        $region75: #{tpu_custom_call.1} parent=47 // pred_region
          %346 = dma.done [#allocation12], 32
        $region76: #{tpu_custom_call.1} parent=47 // pred_fallthru
          _
        %s347 = sand.u32 %s35, 1
        %s348 = scalar_lea.sflag [#allocation3], %s347
        %s349 = sand.u32 %s35, 1
        %s350 = smul.addr %s349, 8
        %s351 = scalar_lea.vmem [#allocation2], %s350
        %p352 = pneg %p48
        %p353 = pneg %p45
        %p354 = pneg %p69
        %p355 = pneg %p66
        %p356 = pneg %p90
        %p357 = pneg %p87
        %p358 = pneg %p111
        %p359 = pneg %p108
        %p360 = pneg %p132
        %p361 = pneg %p129
        %p362 = pneg %p153
        %p363 = pneg %p150
        %p364 = pneg %p174
        %p365 = pneg %p171
        %p366 = pneg %p200
        %p367 = pneg %p197
        %s368 = sand.u32 %s187, 1
        %s369 = scalar_lea.sflag [#allocation4], %s368
        %s370 = sand.u32 %s187, 1
        %s371 = smul.addr %s370, 16
        %s372 = scalar_lea.vmem [#allocation14], %s371
        %v374 = vld [vmem:[%s318] sm:$0xff]
        %v375 = vpack.c.bf16 %v374, %v374
        %v376 = vld [vmem:[#allocation5] sm:$0xff]
        %v377 = vld [vmem:[#allocation5 + $0x8] sm:$0xff]
        %v378 = vld [vmem:[#allocation5 + $0x10] sm:$0xff]
        %v379 = vld [vmem:[#allocation5 + $0x18] sm:$0xff]
        %v380 = vld [vmem:[#allocation5 + $0x20] sm:$0xff]
        %v381 = vld [vmem:[#allocation5 + $0x28] sm:$0xff]
        %v382 = vld [vmem:[#allocation5 + $0x30] sm:$0xff]
        %v383 = vld [vmem:[#allocation5 + $0x38] sm:$0xff]
        %v384 = vld [vmem:[#allocation5 + $0x40] sm:$0xff]
        %v385 = vld [vmem:[#allocation5 + $0x48] sm:$0xff]
        %v386 = vld [vmem:[#allocation5 + $0x50] sm:$0xff]
        %v387 = vld [vmem:[#allocation5 + $0x58] sm:$0xff]
        %v388 = vld [vmem:[#allocation5 + $0x60] sm:$0xff]
        %v389 = vld [vmem:[#allocation5 + $0x68] sm:$0xff]
        %v390 = vld [vmem:[#allocation5 + $0x70] sm:$0xff]
        %v391 = vld [vmem:[#allocation5 + $0x78] sm:$0xff]
        %v392 = vld [vmem:[#allocation5 + $0x80] sm:$0xff]
        %v393 = vld [vmem:[#allocation5 + $0x88] sm:$0xff]
        %v394 = vld [vmem:[#allocation5 + $0x90] sm:$0xff]
        %v395 = vld [vmem:[#allocation5 + $0x98] sm:$0xff]
        %v396 = vld [vmem:[#allocation5 + $0xa0] sm:$0xff]
        %v397 = vld [vmem:[#allocation5 + $0xa8] sm:$0xff]
        %v398 = vld [vmem:[#allocation5 + $0xb0] sm:$0xff]
        %v399 = vld [vmem:[#allocation5 + $0xb8] sm:$0xff]
        %v400 = vld [vmem:[#allocation5 + $0xc0] sm:$0xff]
        %v401 = vld [vmem:[#allocation5 + $0xc8] sm:$0xff]
        %v402 = vld [vmem:[#allocation5 + $0xd0] sm:$0xff]
        %v403 = vld [vmem:[#allocation5 + $0xd8] sm:$0xff]
        %v404 = vld [vmem:[#allocation5 + $0xe0] sm:$0xff]
        %v405 = vld [vmem:[#allocation5 + $0xe8] sm:$0xff]
        %v406 = vld [vmem:[#allocation5 + $0xf0] sm:$0xff]
        %v407 = vld [vmem:[#allocation5 + $0xf8] sm:$0xff]
        %v408 = vld [vmem:[#allocation5 + $0x100] sm:$0xff]
        %v409 = vld [vmem:[#allocation5 + $0x108] sm:$0xff]
        %v410 = vld [vmem:[#allocation5 + $0x110] sm:$0xff]
        %v411 = vld [vmem:[#allocation5 + $0x118] sm:$0xff]
        %v412 = vld [vmem:[#allocation5 + $0x120] sm:$0xff]
        %v413 = vld [vmem:[#allocation5 + $0x128] sm:$0xff]
        %v414 = vld [vmem:[#allocation5 + $0x130] sm:$0xff]
        %v415 = vld [vmem:[#allocation5 + $0x138] sm:$0xff]
        %v416 = vld [vmem:[#allocation5 + $0x140] sm:$0xff]
        %v417 = vld [vmem:[#allocation5 + $0x148] sm:$0xff]
        %v418 = vld [vmem:[#allocation5 + $0x150] sm:$0xff]
        %v419 = vld [vmem:[#allocation5 + $0x158] sm:$0xff]
        %v420 = vld [vmem:[#allocation5 + $0x160] sm:$0xff]
        %v421 = vld [vmem:[#allocation5 + $0x168] sm:$0xff]
        %v422 = vld [vmem:[#allocation5 + $0x170] sm:$0xff]
        %v423 = vld [vmem:[#allocation5 + $0x178] sm:$0xff]
        %v424 = vld [vmem:[#allocation5 + $0x180] sm:$0xff]
        %v425 = vld [vmem:[#allocation5 + $0x188] sm:$0xff]
        %v426 = vld [vmem:[#allocation5 + $0x190] sm:$0xff]
        %v427 = vld [vmem:[#allocation5 + $0x198] sm:$0xff]
        %v428 = vld [vmem:[#allocation5 + $0x1a0] sm:$0xff]
        %v429 = vld [vmem:[#allocation5 + $0x1a8] sm:$0xff]
        %v430 = vld [vmem:[#allocation5 + $0x1b0] sm:$0xff]
        %v431 = vld [vmem:[#allocation5 + $0x1b8] sm:$0xff]
        %v432 = vld [vmem:[#allocation5 + $0x1c0] sm:$0xff]
        %v433 = vld [vmem:[#allocation5 + $0x1c8] sm:$0xff]
        %v434 = vld [vmem:[#allocation5 + $0x1d0] sm:$0xff]
        %v435 = vld [vmem:[#allocation5 + $0x1d8] sm:$0xff]
        %v436 = vld [vmem:[#allocation5 + $0x1e0] sm:$0xff]
        %v437 = vld [vmem:[#allocation5 + $0x1e8] sm:$0xff]
        %v438 = vld [vmem:[#allocation5 + $0x1f0] sm:$0xff]
        %v439 = vld [vmem:[#allocation5 + $0x1f8] sm:$0xff]
        %v440 = vld [vmem:[#allocation8] sm:$0xff]
        %v442 = vlaneseq
        %v443 = vshrl.u32 %v442, 7
        %v444 = vsub.s32 0, %v443
        %v445 = vrot.slane %v440, %v444
        %v446 = vlaneseq
        %v447 = vshrl.u32 %v446, 7
        %v448 = vsub.s32 1, %v447
        %v449 = vrot.slane %v440, %v448
        %v450 = vlaneseq
        %v451 = vshrl.u32 %v450, 7
        %v452 = vsub.s32 2, %v451
        %v453 = vrot.slane %v440, %v452
        %v454 = vlaneseq
        %v455 = vshrl.u32 %v454, 7
        %v456 = vsub.s32 3, %v455
        %v457 = vrot.slane %v440, %v456
        %v458 = vlaneseq
        %v459 = vshrl.u32 %v458, 7
        %v460 = vsub.s32 4, %v459
        %v461 = vrot.slane %v440, %v460
        %v462 = vlaneseq
        %v463 = vshrl.u32 %v462, 7
        %v464 = vsub.s32 5, %v463
        %v465 = vrot.slane %v440, %v464
        %v466 = vlaneseq
        %v467 = vshrl.u32 %v466, 7
        %v468 = vsub.s32 6, %v467
        %v469 = vrot.slane %v440, %v468
        %v470 = vlaneseq
        %v471 = vshrl.u32 %v470, 7
        %v472 = vsub.s32 7, %v471
        %v473 = vrot.slane %v440, %v472
        %v546 = vunpack.c.l.b16 %v376
        %v547 = vunpack.c.h.b16 %v376
        %v548 = vunpack.c.l.b16 %v377
        %v549 = vunpack.c.h.b16 %v377
        %v550 = vunpack.c.l.b16 %v378
        %v551 = vunpack.c.h.b16 %v378
        %v552 = vunpack.c.l.b16 %v379
        %v553 = vunpack.c.h.b16 %v379
        %v554 = vunpack.c.l.b16 %v380
        %v555 = vunpack.c.h.b16 %v380
        %v556 = vunpack.c.l.b16 %v381
        %v557 = vunpack.c.h.b16 %v381
        %v558 = vunpack.c.l.b16 %v382
        %v559 = vunpack.c.h.b16 %v382
        %v560 = vunpack.c.l.b16 %v383
        %v561 = vunpack.c.h.b16 %v383
        %v562 = vunpack.c.l.b16 %v384
        %v563 = vunpack.c.h.b16 %v384
        %v564 = vunpack.c.l.b16 %v385
        %v565 = vunpack.c.h.b16 %v385
        %v566 = vunpack.c.l.b16 %v386
        %v567 = vunpack.c.h.b16 %v386
        %v568 = vunpack.c.l.b16 %v387
        %v569 = vunpack.c.h.b16 %v387
        %v570 = vunpack.c.l.b16 %v388
        %v571 = vunpack.c.h.b16 %v388
        %v572 = vunpack.c.l.b16 %v389
        %v573 = vunpack.c.h.b16 %v389
        %v574 = vunpack.c.l.b16 %v390
        %v575 = vunpack.c.h.b16 %v390
        %v576 = vunpack.c.l.b16 %v391
        %v577 = vunpack.c.h.b16 %v391
        %v578 = vunpack.c.l.b16 %v392
        %v579 = vunpack.c.h.b16 %v392
        %v580 = vunpack.c.l.b16 %v393
        %v581 = vunpack.c.h.b16 %v393
        %v582 = vunpack.c.l.b16 %v394
        %v583 = vunpack.c.h.b16 %v394
        %v584 = vunpack.c.l.b16 %v395
        %v585 = vunpack.c.h.b16 %v395
        %v586 = vunpack.c.l.b16 %v396
        %v587 = vunpack.c.h.b16 %v396
        %v588 = vunpack.c.l.b16 %v397
        %v589 = vunpack.c.h.b16 %v397
        %v590 = vunpack.c.l.b16 %v398
        %v591 = vunpack.c.h.b16 %v398
        %v592 = vunpack.c.l.b16 %v399
        %v593 = vunpack.c.h.b16 %v399
        %v594 = vunpack.c.l.b16 %v400
        %v595 = vunpack.c.h.b16 %v400
        %v596 = vunpack.c.l.b16 %v401
        %v597 = vunpack.c.h.b16 %v401
        %v598 = vunpack.c.l.b16 %v402
        %v599 = vunpack.c.h.b16 %v402
        %v600 = vunpack.c.l.b16 %v403
        %v601 = vunpack.c.h.b16 %v403
        %v602 = vunpack.c.l.b16 %v404
        %v603 = vunpack.c.h.b16 %v404
        %v604 = vunpack.c.l.b16 %v405
        %v605 = vunpack.c.h.b16 %v405
        %v606 = vunpack.c.l.b16 %v406
        %v607 = vunpack.c.h.b16 %v406
        %v608 = vunpack.c.l.b16 %v407
        %v609 = vunpack.c.h.b16 %v407
        %v610 = vunpack.c.l.b16 %v408
        %v611 = vunpack.c.h.b16 %v408
        %v612 = vunpack.c.l.b16 %v409
        %v613 = vunpack.c.h.b16 %v409
        %v614 = vunpack.c.l.b16 %v410
        %v615 = vunpack.c.h.b16 %v410
        %v616 = vunpack.c.l.b16 %v411
        %v617 = vunpack.c.h.b16 %v411
        %v618 = vunpack.c.l.b16 %v412
        %v619 = vunpack.c.h.b16 %v412
        %v620 = vunpack.c.l.b16 %v413
        %v621 = vunpack.c.h.b16 %v413
        %v622 = vunpack.c.l.b16 %v414
        %v623 = vunpack.c.h.b16 %v414
        %v624 = vunpack.c.l.b16 %v415
        %v625 = vunpack.c.h.b16 %v415
        %v626 = vunpack.c.l.b16 %v416
        %v627 = vunpack.c.h.b16 %v416
        %v628 = vunpack.c.l.b16 %v417
        %v629 = vunpack.c.h.b16 %v417
        %v630 = vunpack.c.l.b16 %v418
        %v631 = vunpack.c.h.b16 %v418
        %v632 = vunpack.c.l.b16 %v419
        %v633 = vunpack.c.h.b16 %v419
        %v634 = vunpack.c.l.b16 %v420
        %v635 = vunpack.c.h.b16 %v420
        %v636 = vunpack.c.l.b16 %v421
        %v637 = vunpack.c.h.b16 %v421
        %v638 = vunpack.c.l.b16 %v422
        %v639 = vunpack.c.h.b16 %v422
        %v640 = vunpack.c.l.b16 %v423
        %v641 = vunpack.c.h.b16 %v423
        %v642 = vunpack.c.l.b16 %v424
        %v643 = vunpack.c.h.b16 %v424
        %v644 = vunpack.c.l.b16 %v425
        %v645 = vunpack.c.h.b16 %v425
        %v646 = vunpack.c.l.b16 %v426
        %v647 = vunpack.c.h.b16 %v426
        %v648 = vunpack.c.l.b16 %v427
        %v649 = vunpack.c.h.b16 %v427
        %v650 = vunpack.c.l.b16 %v428
        %v651 = vunpack.c.h.b16 %v428
        %v652 = vunpack.c.l.b16 %v429
        %v653 = vunpack.c.h.b16 %v429
        %v654 = vunpack.c.l.b16 %v430
        %v655 = vunpack.c.h.b16 %v430
        %v656 = vunpack.c.l.b16 %v431
        %v657 = vunpack.c.h.b16 %v431
        %v658 = vunpack.c.l.b16 %v432
        %v659 = vunpack.c.h.b16 %v432
        %v660 = vunpack.c.l.b16 %v433
        %v661 = vunpack.c.h.b16 %v433
        %v662 = vunpack.c.l.b16 %v434
        %v663 = vunpack.c.h.b16 %v434
        %v664 = vunpack.c.l.b16 %v435
        %v665 = vunpack.c.h.b16 %v435
        %v666 = vunpack.c.l.b16 %v436
        %v667 = vunpack.c.h.b16 %v436
        %v668 = vunpack.c.l.b16 %v437
        %v669 = vunpack.c.h.b16 %v437
        %v670 = vunpack.c.l.b16 %v438
        %v671 = vunpack.c.h.b16 %v438
        %v672 = vunpack.c.l.b16 %v439
        %v673 = vunpack.c.h.b16 %v439
        %v674 = vpack.c.b16 %v554, %v546
        %v675 = vpack.c.b16 %v555, %v547
        %v676 = vpack.c.b16 %v556, %v548
        %v677 = vpack.c.b16 %v557, %v549
        %v678 = vpack.c.b16 %v558, %v550
        %v679 = vpack.c.b16 %v559, %v551
        %v680 = vpack.c.b16 %v560, %v552
        %v681 = vpack.c.b16 %v561, %v553
        %v682 = vpack.c.b16 %v570, %v562
        %v683 = vpack.c.b16 %v571, %v563
        %v684 = vpack.c.b16 %v572, %v564
        %v685 = vpack.c.b16 %v573, %v565
        %v686 = vpack.c.b16 %v574, %v566
        %v687 = vpack.c.b16 %v575, %v567
        %v688 = vpack.c.b16 %v576, %v568
        %v689 = vpack.c.b16 %v577, %v569
        %v690 = vpack.c.b16 %v586, %v578
        %v691 = vpack.c.b16 %v587, %v579
        %v692 = vpack.c.b16 %v588, %v580
        %v693 = vpack.c.b16 %v589, %v581
        %v694 = vpack.c.b16 %v590, %v582
        %v695 = vpack.c.b16 %v591, %v583
        %v696 = vpack.c.b16 %v592, %v584
        %v697 = vpack.c.b16 %v593, %v585
        %v698 = vpack.c.b16 %v602, %v594
        %v699 = vpack.c.b16 %v603, %v595
        %v700 = vpack.c.b16 %v604, %v596
        %v701 = vpack.c.b16 %v605, %v597
        %v702 = vpack.c.b16 %v606, %v598
        %v703 = vpack.c.b16 %v607, %v599
        %v704 = vpack.c.b16 %v608, %v600
        %v705 = vpack.c.b16 %v609, %v601
        %v706 = vpack.c.b16 %v618, %v610
        %v707 = vpack.c.b16 %v619, %v611
        %v708 = vpack.c.b16 %v620, %v612
        %v709 = vpack.c.b16 %v621, %v613
        %v710 = vpack.c.b16 %v622, %v614
        %v711 = vpack.c.b16 %v623, %v615
        %v712 = vpack.c.b16 %v624, %v616
        %v713 = vpack.c.b16 %v625, %v617
        %v714 = vpack.c.b16 %v634, %v626
        %v715 = vpack.c.b16 %v635, %v627
        %v716 = vpack.c.b16 %v636, %v628
        %v717 = vpack.c.b16 %v637, %v629
        %v718 = vpack.c.b16 %v638, %v630
        %v719 = vpack.c.b16 %v639, %v631
        %v720 = vpack.c.b16 %v640, %v632
        %v721 = vpack.c.b16 %v641, %v633
        %v722 = vpack.c.b16 %v650, %v642
        %v723 = vpack.c.b16 %v651, %v643
        %v724 = vpack.c.b16 %v652, %v644
        %v725 = vpack.c.b16 %v653, %v645
        %v726 = vpack.c.b16 %v654, %v646
        %v727 = vpack.c.b16 %v655, %v647
        %v728 = vpack.c.b16 %v656, %v648
        %v729 = vpack.c.b16 %v657, %v649
        %v730 = vpack.c.b16 %v666, %v658
        %v731 = vpack.c.b16 %v667, %v659
        %v732 = vpack.c.b16 %v668, %v660
        %v733 = vpack.c.b16 %v669, %v661
        %v734 = vpack.c.b16 %v670, %v662
        %v735 = vpack.c.b16 %v671, %v663
        %v736 = vpack.c.b16 %v672, %v664
        %v737 = vpack.c.b16 %v673, %v665
        %802 = vmatprep.subr.bf16.mxu0 %v675
        %803 = vmatpush1.bf16.msra.mxu0 %v674
        %804 = vmatprep.subr.bf16.mxu0 %v683
        %805 = vmatpush1.bf16.msra.mxu0 %v682
        %806 = vmatprep.subr.bf16.mxu0 %v691
        %807 = vmatpush1.bf16.msra.mxu0 %v690
        %808 = vmatprep.subr.bf16.mxu0 %v699
        %809 = vmatpush1.bf16.msra.mxu0 %v698
        %810 = vmatprep.subr.bf16.mxu0 %v707
        %811 = vmatpush1.bf16.msra.mxu0 %v706
        %812 = vmatprep.subr.bf16.mxu0 %v715
        %813 = vmatpush1.bf16.msra.mxu0 %v714
        %814 = vmatprep.subr.bf16.mxu0 %v723
        %815 = vmatpush1.bf16.msra.mxu0 %v722
        %816 = vmatprep.subr.bf16.mxu0 %v731
        %817 = vmatpush1.bf16.msra.mxu0 %v730
        %818 = vmatprep.subr.bf16.mxu0 0
        %819 = vmatpush1.bf16.msra.mxu0 0
        %820 = vmatprep.subr.bf16.mxu0 0
        %821 = vmatpush1.bf16.msra.mxu0 0
        %822 = vmatprep.subr.bf16.mxu0 0
        %823 = vmatpush1.bf16.msra.mxu0 0
        %824 = vmatprep.subr.bf16.mxu0 0
        %825 = vmatpush1.bf16.msra.mxu0 0
        %826 = vmatprep.subr.bf16.mxu0 0
        %827 = vmatpush1.bf16.msra.mxu0 0
        %828 = vmatprep.subr.bf16.mxu0 0
        %829 = vmatpush1.bf16.msra.mxu0 0
        %830 = vmatprep.subr.bf16.mxu0 0
        %831 = vmatpush1.bf16.msra.mxu0 0
        %832 = vmatprep.subr.bf16.mxu0 0
        %833 = vmatpush1.bf16.msra.mxu0 0
        %834 = vmatprep.mubr.bf16.mxu0 0
        %835 = vmatmul.mubr.bf16.gmra.mrb[0].mxu0 %v375
        %v836 = vpop.f32.mrb[0].mxu0
        %v837 = vadd.f32 %v445, %v836
        %v838 = vpop.f32.mrb[0].mxu0
        %v839 = vadd.f32 %v449, %v838
        %v840 = vpop.f32.mrb[0].mxu0
        %v841 = vpop.f32.mrb[0].mxu0
        %842 = vdwg.mxu0
        %843 = vmatprep.subr.bf16.mxu0 %v677
        %844 = vmatpush1.bf16.msra.mxu0 %v676
        %845 = vmatprep.subr.bf16.mxu0 %v685
        %846 = vmatpush1.bf16.msra.mxu0 %v684
        %847 = vmatprep.subr.bf16.mxu0 %v693
        %848 = vmatpush1.bf16.msra.mxu0 %v692
        %849 = vmatprep.subr.bf16.mxu0 %v701
        %850 = vmatpush1.bf16.msra.mxu0 %v700
        %851 = vmatprep.subr.bf16.mxu0 %v709
        %852 = vmatpush1.bf16.msra.mxu0 %v708
        %853 = vmatprep.subr.bf16.mxu0 %v717
        %854 = vmatpush1.bf16.msra.mxu0 %v716
        %855 = vmatprep.subr.bf16.mxu0 %v725
        %856 = vmatpush1.bf16.msra.mxu0 %v724
        %857 = vmatprep.subr.bf16.mxu0 %v733
        %858 = vmatpush1.bf16.msra.mxu0 %v732
        %859 = vmatprep.subr.bf16.mxu0 0
        %860 = vmatpush1.bf16.msra.mxu0 0
        %861 = vmatprep.subr.bf16.mxu0 0
        %862 = vmatpush1.bf16.msra.mxu0 0
        %863 = vmatprep.subr.bf16.mxu0 0
        %864 = vmatpush1.bf16.msra.mxu0 0
        %865 = vmatprep.subr.bf16.mxu0 0
        %866 = vmatpush1.bf16.msra.mxu0 0
        %867 = vmatprep.subr.bf16.mxu0 0
        %868 = vmatpush1.bf16.msra.mxu0 0
        %869 = vmatprep.subr.bf16.mxu0 0
        %870 = vmatpush1.bf16.msra.mxu0 0
        %871 = vmatprep.subr.bf16.mxu0 0
        %872 = vmatpush1.bf16.msra.mxu0 0
        %873 = vmatprep.subr.bf16.mxu0 0
        %874 = vmatpush1.bf16.msra.mxu0 0
        %875 = vmatprep.mubr.bf16.mxu0 0
        %876 = vmatmul.mubr.bf16.gmra.mrb[0].mxu0 %v375
        %v877 = vpop.f32.mrb[0].mxu0
        %v878 = vadd.f32 %v453, %v877
        %v879 = vpop.f32.mrb[0].mxu0
        %v880 = vadd.f32 %v457, %v879
        %v881 = vpop.f32.mrb[0].mxu0
        %v882 = vpop.f32.mrb[0].mxu0
        %883 = vdwg.mxu0
        %884 = vmatprep.subr.bf16.mxu0 %v679
        %885 = vmatpush1.bf16.msra.mxu0 %v678
        %886 = vmatprep.subr.bf16.mxu0 %v687
        %887 = vmatpush1.bf16.msra.mxu0 %v686
        %888 = vmatprep.subr.bf16.mxu0 %v695
        %889 = vmatpush1.bf16.msra.mxu0 %v694
        %890 = vmatprep.subr.bf16.mxu0 %v703
        %891 = vmatpush1.bf16.msra.mxu0 %v702
        %892 = vmatprep.subr.bf16.mxu0 %v711
        %893 = vmatpush1.bf16.msra.mxu0 %v710
        %894 = vmatprep.subr.bf16.mxu0 %v719
        %895 = vmatpush1.bf16.msra.mxu0 %v718
        %896 = vmatprep.subr.bf16.mxu0 %v727
        %897 = vmatpush1.bf16.msra.mxu0 %v726
        %898 = vmatprep.subr.bf16.mxu0 %v735
        %899 = vmatpush1.bf16.msra.mxu0 %v734
        %900 = vmatprep.subr.bf16.mxu0 0
        %901 = vmatpush1.bf16.msra.mxu0 0
        %902 = vmatprep.subr.bf16.mxu0 0
        %903 = vmatpush1.bf16.msra.mxu0 0
        %904 = vmatprep.subr.bf16.mxu0 0
        %905 = vmatpush1.bf16.msra.mxu0 0
        %906 = vmatprep.subr.bf16.mxu0 0
        %907 = vmatpush1.bf16.msra.mxu0 0
        %908 = vmatprep.subr.bf16.mxu0 0
        %909 = vmatpush1.bf16.msra.mxu0 0
        %910 = vmatprep.subr.bf16.mxu0 0
        %911 = vmatpush1.bf16.msra.mxu0 0
        %912 = vmatprep.subr.bf16.mxu0 0
        %913 = vmatpush1.bf16.msra.mxu0 0
        %914 = vmatprep.subr.bf16.mxu0 0
        %915 = vmatpush1.bf16.msra.mxu0 0
        %916 = vmatprep.mubr.bf16.mxu0 0
        %917 = vmatmul.mubr.bf16.gmra.mrb[0].mxu0 %v375
        %v918 = vpop.f32.mrb[0].mxu0
        %v919 = vadd.f32 %v461, %v918
        %v920 = vpop.f32.mrb[0].mxu0
        %v921 = vadd.f32 %v465, %v920
        %v922 = vpop.f32.mrb[0].mxu0
        %v923 = vpop.f32.mrb[0].mxu0
        %924 = vdwg.mxu0
        %925 = vmatprep.subr.bf16.mxu0 %v681
        %926 = vmatpush1.bf16.msra.mxu0 %v680
        %927 = vmatprep.subr.bf16.mxu0 %v689
        %928 = vmatpush1.bf16.msra.mxu0 %v688
        %929 = vmatprep.subr.bf16.mxu0 %v697
        %930 = vmatpush1.bf16.msra.mxu0 %v696
        %931 = vmatprep.subr.bf16.mxu0 %v705
        %932 = vmatpush1.bf16.msra.mxu0 %v704
        %933 = vmatprep.subr.bf16.mxu0 %v713
        %934 = vmatpush1.bf16.msra.mxu0 %v712
        %935 = vmatprep.subr.bf16.mxu0 %v721
        %936 = vmatpush1.bf16.msra.mxu0 %v720
        %937 = vmatprep.subr.bf16.mxu0 %v729
        %938 = vmatpush1.bf16.msra.mxu0 %v728
        %939 = vmatprep.subr.bf16.mxu0 %v737
        %940 = vmatpush1.bf16.msra.mxu0 %v736
        %941 = vmatprep.subr.bf16.mxu0 0
        %942 = vmatpush1.bf16.msra.mxu0 0
        %943 = vmatprep.subr.bf16.mxu0 0
        %944 = vmatpush1.bf16.msra.mxu0 0
        %945 = vmatprep.subr.bf16.mxu0 0
        %946 = vmatpush1.bf16.msra.mxu0 0
        %947 = vmatprep.subr.bf16.mxu0 0
        %948 = vmatpush1.bf16.msra.mxu0 0
        %949 = vmatprep.subr.bf16.mxu0 0
        %950 = vmatpush1.bf16.msra.mxu0 0
        %951 = vmatprep.subr.bf16.mxu0 0
        %952 = vmatpush1.bf16.msra.mxu0 0
        %953 = vmatprep.subr.bf16.mxu0 0
        %954 = vmatpush1.bf16.msra.mxu0 0
        %955 = vmatprep.subr.bf16.mxu0 0
        %956 = vmatpush1.bf16.msra.mxu0 0
        %957 = vmatprep.mubr.bf16.mxu0 0
        %958 = vmatmul.mubr.bf16.gmra.mrb[0].mxu0 %v375
        %v959 = vpop.f32.mrb[0].mxu0
        %v960 = vadd.f32 %v469, %v959
        %v961 = vpop.f32.mrb[0].mxu0
        %v962 = vadd.f32 %v473, %v961
        %v963 = vpop.f32.mrb[0].mxu0
        %v964 = vpop.f32.mrb[0].mxu0
        %965 = vdwg.mxu0
        %vm966 = vcmp.gt.f32.partialorder %v837, 0.0
        %vm967 = vcmp.gt.f32.partialorder %v839, 0.0
        %vm968 = vcmp.gt.f32.partialorder %v878, 0.0
        %vm969 = vcmp.gt.f32.partialorder %v880, 0.0
        %vm970 = vcmp.gt.f32.partialorder %v919, 0.0
        %vm971 = vcmp.gt.f32.partialorder %v921, 0.0
        %vm972 = vcmp.gt.f32.partialorder %v960, 0.0
        %vm973 = vcmp.gt.f32.partialorder %v962, 0.0
        %v974 = vmul.f32 %v837, 0.25
        %v975 = vmul.f32 %v839, 0.25
        %v976 = vmul.f32 %v878, 0.25
        %v977 = vmul.f32 %v880, 0.25
        %v978 = vmul.f32 %v919, 0.25
        %v979 = vmul.f32 %v921, 0.25
        %v980 = vmul.f32 %v960, 0.25
        %v981 = vmul.f32 %v962, 0.25
        %v982 = vsel %vm966, %v837, %v974
        %v983 = vsel %vm967, %v839, %v975
        %v984 = vsel %vm968, %v878, %v976
        %v985 = vsel %vm969, %v880, %v977
        %v986 = vsel %vm970, %v919, %v978
        %v987 = vsel %vm971, %v921, %v979
        %v988 = vsel %vm972, %v960, %v980
        %v989 = vsel %vm973, %v962, %v981
        %v990 = vpack.c.bf16 %v982, %v982
        %v991 = vpack.c.bf16 %v983, %v983
        %v992 = vpack.c.bf16 %v984, %v984
        %v993 = vpack.c.bf16 %v985, %v985
        %v994 = vpack.c.bf16 %v986, %v986
        %v995 = vpack.c.bf16 %v987, %v987
        %v996 = vpack.c.bf16 %v988, %v988
        %v997 = vpack.c.bf16 %v989, %v989
        %v998 = vld [vmem:[#allocation7] sm:$0xff]
        %v999 = vld [vmem:[#allocation7 + $0x8] sm:$0xff]
        %v1000 = vld [vmem:[#allocation7 + $0x10] sm:$0xff]
        %v1001 = vld [vmem:[#allocation7 + $0x18] sm:$0xff]
        %v1002 = vld [vmem:[#allocation7 + $0x20] sm:$0xff]
        %v1003 = vld [vmem:[#allocation7 + $0x28] sm:$0xff]
        %v1004 = vld [vmem:[#allocation7 + $0x30] sm:$0xff]
        %v1005 = vld [vmem:[#allocation7 + $0x38] sm:$0xff]
        %v1006 = vld [vmem:[#allocation7 + $0x40] sm:$0xff]
        %v1007 = vld [vmem:[#allocation7 + $0x48] sm:$0xff]
        %v1008 = vld [vmem:[#allocation7 + $0x50] sm:$0xff]
        %v1009 = vld [vmem:[#allocation7 + $0x58] sm:$0xff]
        %v1010 = vld [vmem:[#allocation7 + $0x60] sm:$0xff]
        %v1011 = vld [vmem:[#allocation7 + $0x68] sm:$0xff]
        %v1012 = vld [vmem:[#allocation7 + $0x70] sm:$0xff]
        %v1013 = vld [vmem:[#allocation7 + $0x78] sm:$0xff]
        %v1014 = vld [vmem:[#allocation7 + $0x80] sm:$0xff]
        %v1015 = vld [vmem:[#allocation7 + $0x88] sm:$0xff]
        %v1016 = vld [vmem:[#allocation7 + $0x90] sm:$0xff]
        %v1017 = vld [vmem:[#allocation7 + $0x98] sm:$0xff]
        %v1018 = vld [vmem:[#allocation7 + $0xa0] sm:$0xff]
        %v1019 = vld [vmem:[#allocation7 + $0xa8] sm:$0xff]
        %v1020 = vld [vmem:[#allocation7 + $0xb0] sm:$0xff]
        %v1021 = vld [vmem:[#allocation7 + $0xb8] sm:$0xff]
        %v1022 = vld [vmem:[#allocation7 + $0xc0] sm:$0xff]
        %v1023 = vld [vmem:[#allocation7 + $0xc8] sm:$0xff]
        %v1024 = vld [vmem:[#allocation7 + $0xd0] sm:$0xff]
        %v1025 = vld [vmem:[#allocation7 + $0xd8] sm:$0xff]
        %v1026 = vld [vmem:[#allocation7 + $0xe0] sm:$0xff]
        %v1027 = vld [vmem:[#allocation7 + $0xe8] sm:$0xff]
        %v1028 = vld [vmem:[#allocation7 + $0xf0] sm:$0xff]
        %v1029 = vld [vmem:[#allocation7 + $0xf8] sm:$0xff]
        %v1030 = vld [vmem:[#allocation7 + $0x100] sm:$0xff]
        %v1031 = vld [vmem:[#allocation7 + $0x108] sm:$0xff]
        %v1032 = vld [vmem:[#allocation7 + $0x110] sm:$0xff]
        %v1033 = vld [vmem:[#allocation7 + $0x118] sm:$0xff]
        %v1034 = vld [vmem:[#allocation7 + $0x120] sm:$0xff]
        %v1035 = vld [vmem:[#allocation7 + $0x128] sm:$0xff]
        %v1036 = vld [vmem:[#allocation7 + $0x130] sm:$0xff]
        %v1037 = vld [vmem:[#allocation7 + $0x138] sm:$0xff]
        %v1038 = vld [vmem:[#allocation7 + $0x140] sm:$0xff]
        %v1039 = vld [vmem:[#allocation7 + $0x148] sm:$0xff]
        %v1040 = vld [vmem:[#allocation7 + $0x150] sm:$0xff]
        %v1041 = vld [vmem:[#allocation7 + $0x158] sm:$0xff]
        %v1042 = vld [vmem:[#allocation7 + $0x160] sm:$0xff]
        %v1043 = vld [vmem:[#allocation7 + $0x168] sm:$0xff]
        %v1044 = vld [vmem:[#allocation7 + $0x170] sm:$0xff]
        %v1045 = vld [vmem:[#allocation7 + $0x178] sm:$0xff]
        %v1046 = vld [vmem:[#allocation7 + $0x180] sm:$0xff]
        %v1047 = vld [vmem:[#allocation7 + $0x188] sm:$0xff]
        %v1048 = vld [vmem:[#allocation7 + $0x190] sm:$0xff]
        %v1049 = vld [vmem:[#allocation7 + $0x198] sm:$0xff]
        %v1050 = vld [vmem:[#allocation7 + $0x1a0] sm:$0xff]
        %v1051 = vld [vmem:[#allocation7 + $0x1a8] sm:$0xff]
        %v1052 = vld [vmem:[#allocation7 + $0x1b0] sm:$0xff]
        %v1053 = vld [vmem:[#allocation7 + $0x1b8] sm:$0xff]
        %v1054 = vld [vmem:[#allocation7 + $0x1c0] sm:$0xff]
        %v1055 = vld [vmem:[#allocation7 + $0x1c8] sm:$0xff]
        %v1056 = vld [vmem:[#allocation7 + $0x1d0] sm:$0xff]
        %v1057 = vld [vmem:[#allocation7 + $0x1d8] sm:$0xff]
        %v1058 = vld [vmem:[#allocation7 + $0x1e0] sm:$0xff]
        %v1059 = vld [vmem:[#allocation7 + $0x1e8] sm:$0xff]
        %v1060 = vld [vmem:[#allocation7 + $0x1f0] sm:$0xff]
        %v1061 = vld [vmem:[#allocation7 + $0x1f8] sm:$0xff]
        %v1062 = vld [vmem:[#allocation7 + $0x200] sm:$0xff]
        %v1063 = vld [vmem:[#allocation7 + $0x208] sm:$0xff]
        %v1064 = vld [vmem:[#allocation7 + $0x210] sm:$0xff]
        %v1065 = vld [vmem:[#allocation7 + $0x218] sm:$0xff]
        %v1066 = vld [vmem:[#allocation7 + $0x220] sm:$0xff]
        %v1067 = vld [vmem:[#allocation7 + $0x228] sm:$0xff]
        %v1068 = vld [vmem:[#allocation7 + $0x230] sm:$0xff]
        %v1069 = vld [vmem:[#allocation7 + $0x238] sm:$0xff]
        %v1070 = vld [vmem:[#allocation7 + $0x240] sm:$0xff]
        %v1071 = vld [vmem:[#allocation7 + $0x248] sm:$0xff]
        %v1072 = vld [vmem:[#allocation7 + $0x250] sm:$0xff]
        %v1073 = vld [vmem:[#allocation7 + $0x258] sm:$0xff]
        %v1074 = vld [vmem:[#allocation7 + $0x260] sm:$0xff]
        %v1075 = vld [vmem:[#allocation7 + $0x268] sm:$0xff]
        %v1076 = vld [vmem:[#allocation7 + $0x270] sm:$0xff]
        %v1077 = vld [vmem:[#allocation7 + $0x278] sm:$0xff]
        %v1078 = vld [vmem:[#allocation7 + $0x280] sm:$0xff]
        %v1079 = vld [vmem:[#allocation7 + $0x288] sm:$0xff]
        %v1080 = vld [vmem:[#allocation7 + $0x290] sm:$0xff]
        %v1081 = vld [vmem:[#allocation7 + $0x298] sm:$0xff]
        %v1082 = vld [vmem:[#allocation7 + $0x2a0] sm:$0xff]
        %v1083 = vld [vmem:[#allocation7 + $0x2a8] sm:$0xff]
        %v1084 = vld [vmem:[#allocation7 + $0x2b0] sm:$0xff]
        %v1085 = vld [vmem:[#allocation7 + $0x2b8] sm:$0xff]
        %v1086 = vld [vmem:[#allocation7 + $0x2c0] sm:$0xff]
        %v1087 = vld [vmem:[#allocation7 + $0x2c8] sm:$0xff]
        %v1088 = vld [vmem:[#allocation7 + $0x2d0] sm:$0xff]
        %v1089 = vld [vmem:[#allocation7 + $0x2d8] sm:$0xff]
        %v1090 = vld [vmem:[#allocation7 + $0x2e0] sm:$0xff]
        %v1091 = vld [vmem:[#allocation7 + $0x2e8] sm:$0xff]
        %v1092 = vld [vmem:[#allocation7 + $0x2f0] sm:$0xff]
        %v1093 = vld [vmem:[#allocation7 + $0x2f8] sm:$0xff]
        %v1094 = vld [vmem:[#allocation7 + $0x300] sm:$0xff]
        %v1095 = vld [vmem:[#allocation7 + $0x308] sm:$0xff]
        %v1096 = vld [vmem:[#allocation7 + $0x310] sm:$0xff]
        %v1097 = vld [vmem:[#allocation7 + $0x318] sm:$0xff]
        %v1098 = vld [vmem:[#allocation7 + $0x320] sm:$0xff]
        %v1099 = vld [vmem:[#allocation7 + $0x328] sm:$0xff]
        %v1100 = vld [vmem:[#allocation7 + $0x330] sm:$0xff]
        %v1101 = vld [vmem:[#allocation7 + $0x338] sm:$0xff]
        %v1102 = vld [vmem:[#allocation7 + $0x340] sm:$0xff]
        %v1103 = vld [vmem:[#allocation7 + $0x348] sm:$0xff]
        %v1104 = vld [vmem:[#allocation7 + $0x350] sm:$0xff]
        %v1105 = vld [vmem:[#allocation7 + $0x358] sm:$0xff]
        %v1106 = vld [vmem:[#allocation7 + $0x360] sm:$0xff]
        %v1107 = vld [vmem:[#allocation7 + $0x368] sm:$0xff]
        %v1108 = vld [vmem:[#allocation7 + $0x370] sm:$0xff]
        %v1109 = vld [vmem:[#allocation7 + $0x378] sm:$0xff]
        %v1110 = vld [vmem:[#allocation7 + $0x380] sm:$0xff]
        %v1111 = vld [vmem:[#allocation7 + $0x388] sm:$0xff]
        %v1112 = vld [vmem:[#allocation7 + $0x390] sm:$0xff]
        %v1113 = vld [vmem:[#allocation7 + $0x398] sm:$0xff]
        %v1114 = vld [vmem:[#allocation7 + $0x3a0] sm:$0xff]
        %v1115 = vld [vmem:[#allocation7 + $0x3a8] sm:$0xff]
        %v1116 = vld [vmem:[#allocation7 + $0x3b0] sm:$0xff]
        %v1117 = vld [vmem:[#allocation7 + $0x3b8] sm:$0xff]
        %v1118 = vld [vmem:[#allocation7 + $0x3c0] sm:$0xff]
        %v1119 = vld [vmem:[#allocation7 + $0x3c8] sm:$0xff]
        %v1120 = vld [vmem:[#allocation7 + $0x3d0] sm:$0xff]
        %v1121 = vld [vmem:[#allocation7 + $0x3d8] sm:$0xff]
        %v1122 = vld [vmem:[#allocation7 + $0x3e0] sm:$0xff]
        %v1123 = vld [vmem:[#allocation7 + $0x3e8] sm:$0xff]
        %v1124 = vld [vmem:[#allocation7 + $0x3f0] sm:$0xff]
        %v1125 = vld [vmem:[#allocation7 + $0x3f8] sm:$0xff]
        %v1126 = vld [vmem:[#allocation7 + $0x400] sm:$0xff]
        %v1127 = vld [vmem:[#allocation7 + $0x408] sm:$0xff]
        %v1128 = vld [vmem:[#allocation7 + $0x410] sm:$0xff]
        %v1129 = vld [vmem:[#allocation7 + $0x418] sm:$0xff]
        %v1130 = vld [vmem:[#allocation7 + $0x420] sm:$0xff]
        %v1131 = vld [vmem:[#allocation7 + $0x428] sm:$0xff]
        %v1132 = vld [vmem:[#allocation7 + $0x430] sm:$0xff]
        %v1133 = vld [vmem:[#allocation7 + $0x438] sm:$0xff]
        %v1134 = vld [vmem:[#allocation7 + $0x440] sm:$0xff]
        %v1135 = vld [vmem:[#allocation7 + $0x448] sm:$0xff]
        %v1136 = vld [vmem:[#allocation7 + $0x450] sm:$0xff]
        %v1137 = vld [vmem:[#allocation7 + $0x458] sm:$0xff]
        %v1138 = vld [vmem:[#allocation7 + $0x460] sm:$0xff]
        %v1139 = vld [vmem:[#allocation7 + $0x468] sm:$0xff]
        %v1140 = vld [vmem:[#allocation7 + $0x470] sm:$0xff]
        %v1141 = vld [vmem:[#allocation7 + $0x478] sm:$0xff]
        %v1142 = vld [vmem:[#allocation7 + $0x480] sm:$0xff]
        %v1143 = vld [vmem:[#allocation7 + $0x488] sm:$0xff]
        %v1144 = vld [vmem:[#allocation7 + $0x490] sm:$0xff]
        %v1145 = vld [vmem:[#allocation7 + $0x498] sm:$0xff]
        %v1146 = vld [vmem:[#allocation7 + $0x4a0] sm:$0xff]
        %v1147 = vld [vmem:[#allocation7 + $0x4a8] sm:$0xff]
        %v1148 = vld [vmem:[#allocation7 + $0x4b0] sm:$0xff]
        %v1149 = vld [vmem:[#allocation7 + $0x4b8] sm:$0xff]
        %v1150 = vld [vmem:[#allocation7 + $0x4c0] sm:$0xff]
        %v1151 = vld [vmem:[#allocation7 + $0x4c8] sm:$0xff]
        %v1152 = vld [vmem:[#allocation7 + $0x4d0] sm:$0xff]
        %v1153 = vld [vmem:[#allocation7 + $0x4d8] sm:$0xff]
        %v1154 = vld [vmem:[#allocation7 + $0x4e0] sm:$0xff]
        %v1155 = vld [vmem:[#allocation7 + $0x4e8] sm:$0xff]
        %v1156 = vld [vmem:[#allocation7 + $0x4f0] sm:$0xff]
        %v1157 = vld [vmem:[#allocation7 + $0x4f8] sm:$0xff]
        %v1158 = vld [vmem:[#allocation7 + $0x500] sm:$0xff]
        %v1159 = vld [vmem:[#allocation7 + $0x508] sm:$0xff]
        %v1160 = vld [vmem:[#allocation7 + $0x510] sm:$0xff]
        %v1161 = vld [vmem:[#allocation7 + $0x518] sm:$0xff]
        %v1162 = vld [vmem:[#allocation7 + $0x520] sm:$0xff]
        %v1163 = vld [vmem:[#allocation7 + $0x528] sm:$0xff]
        %v1164 = vld [vmem:[#allocation7 + $0x530] sm:$0xff]
        %v1165 = vld [vmem:[#allocation7 + $0x538] sm:$0xff]
        %v1166 = vld [vmem:[#allocation7 + $0x540] sm:$0xff]
        %v1167 = vld [vmem:[#allocation7 + $0x548] sm:$0xff]
        %v1168 = vld [vmem:[#allocation7 + $0x550] sm:$0xff]
        %v1169 = vld [vmem:[#allocation7 + $0x558] sm:$0xff]
        %v1170 = vld [vmem:[#allocation7 + $0x560] sm:$0xff]
        %v1171 = vld [vmem:[#allocation7 + $0x568] sm:$0xff]
        %v1172 = vld [vmem:[#allocation7 + $0x570] sm:$0xff]
        %v1173 = vld [vmem:[#allocation7 + $0x578] sm:$0xff]
        %v1174 = vld [vmem:[#allocation7 + $0x580] sm:$0xff]
        %v1175 = vld [vmem:[#allocation7 + $0x588] sm:$0xff]
        %v1176 = vld [vmem:[#allocation7 + $0x590] sm:$0xff]
        %v1177 = vld [vmem:[#allocation7 + $0x598] sm:$0xff]
        %v1178 = vld [vmem:[#allocation7 + $0x5a0] sm:$0xff]
        %v1179 = vld [vmem:[#allocation7 + $0x5a8] sm:$0xff]
        %v1180 = vld [vmem:[#allocation7 + $0x5b0] sm:$0xff]
        %v1181 = vld [vmem:[#allocation7 + $0x5b8] sm:$0xff]
        %v1182 = vld [vmem:[#allocation7 + $0x5c0] sm:$0xff]
        %v1183 = vld [vmem:[#allocation7 + $0x5c8] sm:$0xff]
        %v1184 = vld [vmem:[#allocation7 + $0x5d0] sm:$0xff]
        %v1185 = vld [vmem:[#allocation7 + $0x5d8] sm:$0xff]
        %v1186 = vld [vmem:[#allocation7 + $0x5e0] sm:$0xff]
        %v1187 = vld [vmem:[#allocation7 + $0x5e8] sm:$0xff]
        %v1188 = vld [vmem:[#allocation7 + $0x5f0] sm:$0xff]
        %v1189 = vld [vmem:[#allocation7 + $0x5f8] sm:$0xff]
        %v1190 = vld [vmem:[#allocation7 + $0x600] sm:$0xff]
        %v1191 = vld [vmem:[#allocation7 + $0x608] sm:$0xff]
        %v1192 = vld [vmem:[#allocation7 + $0x610] sm:$0xff]
        %v1193 = vld [vmem:[#allocation7 + $0x618] sm:$0xff]
        %v1194 = vld [vmem:[#allocation7 + $0x620] sm:$0xff]
        %v1195 = vld [vmem:[#allocation7 + $0x628] sm:$0xff]
        %v1196 = vld [vmem:[#allocation7 + $0x630] sm:$0xff]
        %v1197 = vld [vmem:[#allocation7 + $0x638] sm:$0xff]
        %v1198 = vld [vmem:[#allocation7 + $0x640] sm:$0xff]
        %v1199 = vld [vmem:[#allocation7 + $0x648] sm:$0xff]
        %v1200 = vld [vmem:[#allocation7 + $0x650] sm:$0xff]
        %v1201 = vld [vmem:[#allocation7 + $0x658] sm:$0xff]
        %v1202 = vld [vmem:[#allocation7 + $0x660] sm:$0xff]
        %v1203 = vld [vmem:[#allocation7 + $0x668] sm:$0xff]
        %v1204 = vld [vmem:[#allocation7 + $0x670] sm:$0xff]
        %v1205 = vld [vmem:[#allocation7 + $0x678] sm:$0xff]
        %v1206 = vld [vmem:[#allocation7 + $0x680] sm:$0xff]
        %v1207 = vld [vmem:[#allocation7 + $0x688] sm:$0xff]
        %v1208 = vld [vmem:[#allocation7 + $0x690] sm:$0xff]
        %v1209 = vld [vmem:[#allocation7 + $0x698] sm:$0xff]
        %v1210 = vld [vmem:[#allocation7 + $0x6a0] sm:$0xff]
        %v1211 = vld [vmem:[#allocation7 + $0x6a8] sm:$0xff]
        %v1212 = vld [vmem:[#allocation7 + $0x6b0] sm:$0xff]
        %v1213 = vld [vmem:[#allocation7 + $0x6b8] sm:$0xff]
        %v1214 = vld [vmem:[#allocation7 + $0x6c0] sm:$0xff]
        %v1215 = vld [vmem:[#allocation7 + $0x6c8] sm:$0xff]
        %v1216 = vld [vmem:[#allocation7 + $0x6d0] sm:$0xff]
        %v1217 = vld [vmem:[#allocation7 + $0x6d8] sm:$0xff]
        %v1218 = vld [vmem:[#allocation7 + $0x6e0] sm:$0xff]
        %v1219 = vld [vmem:[#allocation7 + $0x6e8] sm:$0xff]
        %v1220 = vld [vmem:[#allocation7 + $0x6f0] sm:$0xff]
        %v1221 = vld [vmem:[#allocation7 + $0x6f8] sm:$0xff]
        %v1222 = vld [vmem:[#allocation7 + $0x700] sm:$0xff]
        %v1223 = vld [vmem:[#allocation7 + $0x708] sm:$0xff]
        %v1224 = vld [vmem:[#allocation7 + $0x710] sm:$0xff]
        %v1225 = vld [vmem:[#allocation7 + $0x718] sm:$0xff]
        %v1226 = vld [vmem:[#allocation7 + $0x720] sm:$0xff]
        %v1227 = vld [vmem:[#allocation7 + $0x728] sm:$0xff]
        %v1228 = vld [vmem:[#allocation7 + $0x730] sm:$0xff]
        %v1229 = vld [vmem:[#allocation7 + $0x738] sm:$0xff]
        %v1230 = vld [vmem:[#allocation7 + $0x740] sm:$0xff]
        %v1231 = vld [vmem:[#allocation7 + $0x748] sm:$0xff]
        %v1232 = vld [vmem:[#allocation7 + $0x750] sm:$0xff]
        %v1233 = vld [vmem:[#allocation7 + $0x758] sm:$0xff]
        %v1234 = vld [vmem:[#allocation7 + $0x760] sm:$0xff]
        %v1235 = vld [vmem:[#allocation7 + $0x768] sm:$0xff]
        %v1236 = vld [vmem:[#allocation7 + $0x770] sm:$0xff]
        %v1237 = vld [vmem:[#allocation7 + $0x778] sm:$0xff]
        %v1238 = vld [vmem:[#allocation7 + $0x780] sm:$0xff]
        %v1239 = vld [vmem:[#allocation7 + $0x788] sm:$0xff]
        %v1240 = vld [vmem:[#allocation7 + $0x790] sm:$0xff]
        %v1241 = vld [vmem:[#allocation7 + $0x798] sm:$0xff]
        %v1242 = vld [vmem:[#allocation7 + $0x7a0] sm:$0xff]
        %v1243 = vld [vmem:[#allocation7 + $0x7a8] sm:$0xff]
        %v1244 = vld [vmem:[#allocation7 + $0x7b0] sm:$0xff]
        %v1245 = vld [vmem:[#allocation7 + $0x7b8] sm:$0xff]
        %v1246 = vld [vmem:[#allocation7 + $0x7c0] sm:$0xff]
        %v1247 = vld [vmem:[#allocation7 + $0x7c8] sm:$0xff]
        %v1248 = vld [vmem:[#allocation7 + $0x7d0] sm:$0xff]
        %v1249 = vld [vmem:[#allocation7 + $0x7d8] sm:$0xff]
        %v1250 = vld [vmem:[#allocation7 + $0x7e0] sm:$0xff]
        %v1251 = vld [vmem:[#allocation7 + $0x7e8] sm:$0xff]
        %v1252 = vld [vmem:[#allocation7 + $0x7f0] sm:$0xff]
        %v1253 = vld [vmem:[#allocation7 + $0x7f8] sm:$0xff]
        %v1254 = vld [vmem:[#allocation7 + $0x800] sm:$0xff]
        %v1255 = vld [vmem:[#allocation7 + $0x808] sm:$0xff]
        %v1256 = vld [vmem:[#allocation7 + $0x810] sm:$0xff]
        %v1257 = vld [vmem:[#allocation7 + $0x818] sm:$0xff]
        %v1258 = vld [vmem:[#allocation7 + $0x820] sm:$0xff]
        %v1259 = vld [vmem:[#allocation7 + $0x828] sm:$0xff]
        %v1260 = vld [vmem:[#allocation7 + $0x830] sm:$0xff]
        %v1261 = vld [vmem:[#allocation7 + $0x838] sm:$0xff]
        %v1262 = vld [vmem:[#allocation7 + $0x840] sm:$0xff]
        %v1263 = vld [vmem:[#allocation7 + $0x848] sm:$0xff]
        %v1264 = vld [vmem:[#allocation7 + $0x850] sm:$0xff]
        %v1265 = vld [vmem:[#allocation7 + $0x858] sm:$0xff]
        %v1266 = vld [vmem:[#allocation7 + $0x860] sm:$0xff]
        %v1267 = vld [vmem:[#allocation7 + $0x868] sm:$0xff]
        %v1268 = vld [vmem:[#allocation7 + $0x870] sm:$0xff]
        %v1269 = vld [vmem:[#allocation7 + $0x878] sm:$0xff]
        %v1270 = vld [vmem:[#allocation7 + $0x880] sm:$0xff]
        %v1271 = vld [vmem:[#allocation7 + $0x888] sm:$0xff]
        %v1272 = vld [vmem:[#allocation7 + $0x890] sm:$0xff]
        %v1273 = vld [vmem:[#allocation7 + $0x898] sm:$0xff]
        %v1274 = vld [vmem:[#allocation7 + $0x8a0] sm:$0xff]
        %v1275 = vld [vmem:[#allocation7 + $0x8a8] sm:$0xff]
        %v1276 = vld [vmem:[#allocation7 + $0x8b0] sm:$0xff]
        %v1277 = vld [vmem:[#allocation7 + $0x8b8] sm:$0xff]
        %v1278 = vld [vmem:[#allocation7 + $0x8c0] sm:$0xff]
        %v1279 = vld [vmem:[#allocation7 + $0x8c8] sm:$0xff]
        %v1280 = vld [vmem:[#allocation7 + $0x8d0] sm:$0xff]
        %v1281 = vld [vmem:[#allocation7 + $0x8d8] sm:$0xff]
        %v1282 = vld [vmem:[#allocation7 + $0x8e0] sm:$0xff]
        %v1283 = vld [vmem:[#allocation7 + $0x8e8] sm:$0xff]
        %v1284 = vld [vmem:[#allocation7 + $0x8f0] sm:$0xff]
        %v1285 = vld [vmem:[#allocation7 + $0x8f8] sm:$0xff]
        %v1286 = vld [vmem:[#allocation7 + $0x900] sm:$0xff]
        %v1287 = vld [vmem:[#allocation7 + $0x908] sm:$0xff]
        %v1288 = vld [vmem:[#allocation7 + $0x910] sm:$0xff]
        %v1289 = vld [vmem:[#allocation7 + $0x918] sm:$0xff]
        %v1290 = vld [vmem:[#allocation7 + $0x920] sm:$0xff]
        %v1291 = vld [vmem:[#allocation7 + $0x928] sm:$0xff]
        %v1292 = vld [vmem:[#allocation7 + $0x930] sm:$0xff]
        %v1293 = vld [vmem:[#allocation7 + $0x938] sm:$0xff]
        %v1294 = vld [vmem:[#allocation7 + $0x940] sm:$0xff]
        %v1295 = vld [vmem:[#allocation7 + $0x948] sm:$0xff]
        %v1296 = vld [vmem:[#allocation7 + $0x950] sm:$0xff]
        %v1297 = vld [vmem:[#allocation7 + $0x958] sm:$0xff]
        %v1298 = vld [vmem:[#allocation7 + $0x960] sm:$0xff]
        %v1299 = vld [vmem:[#allocation7 + $0x968] sm:$0xff]
        %v1300 = vld [vmem:[#allocation7 + $0x970] sm:$0xff]
        %v1301 = vld [vmem:[#allocation7 + $0x978] sm:$0xff]
        %v1302 = vld [vmem:[#allocation7 + $0x980] sm:$0xff]
        %v1303 = vld [vmem:[#allocation7 + $0x988] sm:$0xff]
        %v1304 = vld [vmem:[#allocation7 + $0x990] sm:$0xff]
        %v1305 = vld [vmem:[#allocation7 + $0x998] sm:$0xff]
        %v1306 = vld [vmem:[#allocation7 + $0x9a0] sm:$0xff]
        %v1307 = vld [vmem:[#allocation7 + $0x9a8] sm:$0xff]
        %v1308 = vld [vmem:[#allocation7 + $0x9b0] sm:$0xff]
        %v1309 = vld [vmem:[#allocation7 + $0x9b8] sm:$0xff]
        %v1310 = vld [vmem:[#allocation7 + $0x9c0] sm:$0xff]
        %v1311 = vld [vmem:[#allocation7 + $0x9c8] sm:$0xff]
        %v1312 = vld [vmem:[#allocation7 + $0x9d0] sm:$0xff]
        %v1313 = vld [vmem:[#allocation7 + $0x9d8] sm:$0xff]
        %v1314 = vld [vmem:[#allocation7 + $0x9e0] sm:$0xff]
        %v1315 = vld [vmem:[#allocation7 + $0x9e8] sm:$0xff]
        %v1316 = vld [vmem:[#allocation7 + $0x9f0] sm:$0xff]
        %v1317 = vld [vmem:[#allocation7 + $0x9f8] sm:$0xff]
        %v1318 = vld [vmem:[#allocation7 + $0xa00] sm:$0xff]
        %v1319 = vld [vmem:[#allocation7 + $0xa08] sm:$0xff]
        %v1320 = vld [vmem:[#allocation7 + $0xa10] sm:$0xff]
        %v1321 = vld [vmem:[#allocation7 + $0xa18] sm:$0xff]
        %v1322 = vld [vmem:[#allocation7 + $0xa20] sm:$0xff]
        %v1323 = vld [vmem:[#allocation7 + $0xa28] sm:$0xff]
        %v1324 = vld [vmem:[#allocation7 + $0xa30] sm:$0xff]
        %v1325 = vld [vmem:[#allocation7 + $0xa38] sm:$0xff]
        %v1326 = vld [vmem:[#allocation7 + $0xa40] sm:$0xff]
        %v1327 = vld [vmem:[#allocation7 + $0xa48] sm:$0xff]
        %v1328 = vld [vmem:[#allocation7 + $0xa50] sm:$0xff]
        %v1329 = vld [vmem:[#allocation7 + $0xa58] sm:$0xff]
        %v1330 = vld [vmem:[#allocation7 + $0xa60] sm:$0xff]
        %v1331 = vld [vmem:[#allocation7 + $0xa68] sm:$0xff]
        %v1332 = vld [vmem:[#allocation7 + $0xa70] sm:$0xff]
        %v1333 = vld [vmem:[#allocation7 + $0xa78] sm:$0xff]
        %v1334 = vld [vmem:[#allocation7 + $0xa80] sm:$0xff]
        %v1335 = vld [vmem:[#allocation7 + $0xa88] sm:$0xff]
        %v1336 = vld [vmem:[#allocation7 + $0xa90] sm:$0xff]
        %v1337 = vld [vmem:[#allocation7 + $0xa98] sm:$0xff]
        %v1338 = vld [vmem:[#allocation7 + $0xaa0] sm:$0xff]
        %v1339 = vld [vmem:[#allocation7 + $0xaa8] sm:$0xff]
        %v1340 = vld [vmem:[#allocation7 + $0xab0] sm:$0xff]
        %v1341 = vld [vmem:[#allocation7 + $0xab8] sm:$0xff]
        %v1342 = vld [vmem:[#allocation7 + $0xac0] sm:$0xff]
        %v1343 = vld [vmem:[#allocation7 + $0xac8] sm:$0xff]
        %v1344 = vld [vmem:[#allocation7 + $0xad0] sm:$0xff]
        %v1345 = vld [vmem:[#allocation7 + $0xad8] sm:$0xff]
        %v1346 = vld [vmem:[#allocation7 + $0xae0] sm:$0xff]
        %v1347 = vld [vmem:[#allocation7 + $0xae8] sm:$0xff]
        %v1348 = vld [vmem:[#allocation7 + $0xaf0] sm:$0xff]
        %v1349 = vld [vmem:[#allocation7 + $0xaf8] sm:$0xff]
        %v1350 = vld [vmem:[#allocation7 + $0xb00] sm:$0xff]
        %v1351 = vld [vmem:[#allocation7 + $0xb08] sm:$0xff]
        %v1352 = vld [vmem:[#allocation7 + $0xb10] sm:$0xff]
        %v1353 = vld [vmem:[#allocation7 + $0xb18] sm:$0xff]
        %v1354 = vld [vmem:[#allocation7 + $0xb20] sm:$0xff]
        %v1355 = vld [vmem:[#allocation7 + $0xb28] sm:$0xff]
        %v1356 = vld [vmem:[#allocation7 + $0xb30] sm:$0xff]
        %v1357 = vld [vmem:[#allocation7 + $0xb38] sm:$0xff]
        %v1358 = vld [vmem:[#allocation7 + $0xb40] sm:$0xff]
        %v1359 = vld [vmem:[#allocation7 + $0xb48] sm:$0xff]
        %v1360 = vld [vmem:[#allocation7 + $0xb50] sm:$0xff]
        %v1361 = vld [vmem:[#allocation7 + $0xb58] sm:$0xff]
        %v1362 = vld [vmem:[#allocation7 + $0xb60] sm:$0xff]
        %v1363 = vld [vmem:[#allocation7 + $0xb68] sm:$0xff]
        %v1364 = vld [vmem:[#allocation7 + $0xb70] sm:$0xff]
        %v1365 = vld [vmem:[#allocation7 + $0xb78] sm:$0xff]
        %v1366 = vld [vmem:[#allocation7 + $0xb80] sm:$0xff]
        %v1367 = vld [vmem:[#allocation7 + $0xb88] sm:$0xff]
        %v1368 = vld [vmem:[#allocation7 + $0xb90] sm:$0xff]
        %v1369 = vld [vmem:[#allocation7 + $0xb98] sm:$0xff]
        %v1370 = vld [vmem:[#allocation7 + $0xba0] sm:$0xff]
        %v1371 = vld [vmem:[#allocation7 + $0xba8] sm:$0xff]
        %v1372 = vld [vmem:[#allocation7 + $0xbb0] sm:$0xff]
        %v1373 = vld [vmem:[#allocation7 + $0xbb8] sm:$0xff]
        %v1374 = vld [vmem:[#allocation7 + $0xbc0] sm:$0xff]
        %v1375 = vld [vmem:[#allocation7 + $0xbc8] sm:$0xff]
        %v1376 = vld [vmem:[#allocation7 + $0xbd0] sm:$0xff]
        %v1377 = vld [vmem:[#allocation7 + $0xbd8] sm:$0xff]
        %v1378 = vld [vmem:[#allocation7 + $0xbe0] sm:$0xff]
        %v1379 = vld [vmem:[#allocation7 + $0xbe8] sm:$0xff]
        %v1380 = vld [vmem:[#allocation7 + $0xbf0] sm:$0xff]
        %v1381 = vld [vmem:[#allocation7 + $0xbf8] sm:$0xff]
        %v1382 = vld [vmem:[#allocation7 + $0xc00] sm:$0xff]
        %v1383 = vld [vmem:[#allocation7 + $0xc08] sm:$0xff]
        %v1384 = vld [vmem:[#allocation7 + $0xc10] sm:$0xff]
        %v1385 = vld [vmem:[#allocation7 + $0xc18] sm:$0xff]
        %v1386 = vld [vmem:[#allocation7 + $0xc20] sm:$0xff]
        %v1387 = vld [vmem:[#allocation7 + $0xc28] sm:$0xff]
        %v1388 = vld [vmem:[#allocation7 + $0xc30] sm:$0xff]
        %v1389 = vld [vmem:[#allocation7 + $0xc38] sm:$0xff]
        %v1390 = vld [vmem:[#allocation7 + $0xc40] sm:$0xff]
        %v1391 = vld [vmem:[#allocation7 + $0xc48] sm:$0xff]
        %v1392 = vld [vmem:[#allocation7 + $0xc50] sm:$0xff]
        %v1393 = vld [vmem:[#allocation7 + $0xc58] sm:$0xff]
        %v1394 = vld [vmem:[#allocation7 + $0xc60] sm:$0xff]
        %v1395 = vld [vmem:[#allocation7 + $0xc68] sm:$0xff]
        %v1396 = vld [vmem:[#allocation7 + $0xc70] sm:$0xff]
        %v1397 = vld [vmem:[#allocation7 + $0xc78] sm:$0xff]
        %v1398 = vld [vmem:[#allocation7 + $0xc80] sm:$0xff]
        %v1399 = vld [vmem:[#allocation7 + $0xc88] sm:$0xff]
        %v1400 = vld [vmem:[#allocation7 + $0xc90] sm:$0xff]
        %v1401 = vld [vmem:[#allocation7 + $0xc98] sm:$0xff]
        %v1402 = vld [vmem:[#allocation7 + $0xca0] sm:$0xff]
        %v1403 = vld [vmem:[#allocation7 + $0xca8] sm:$0xff]
        %v1404 = vld [vmem:[#allocation7 + $0xcb0] sm:$0xff]
        %v1405 = vld [vmem:[#allocation7 + $0xcb8] sm:$0xff]
        %v1406 = vld [vmem:[#allocation7 + $0xcc0] sm:$0xff]
        %v1407 = vld [vmem:[#allocation7 + $0xcc8] sm:$0xff]
        %v1408 = vld [vmem:[#allocation7 + $0xcd0] sm:$0xff]
        %v1409 = vld [vmem:[#allocation7 + $0xcd8] sm:$0xff]
        %v1410 = vld [vmem:[#allocation7 + $0xce0] sm:$0xff]
        %v1411 = vld [vmem:[#allocation7 + $0xce8] sm:$0xff]
        %v1412 = vld [vmem:[#allocation7 + $0xcf0] sm:$0xff]
        %v1413 = vld [vmem:[#allocation7 + $0xcf8] sm:$0xff]
        %v1414 = vld [vmem:[#allocation7 + $0xd00] sm:$0xff]
        %v1415 = vld [vmem:[#allocation7 + $0xd08] sm:$0xff]
        %v1416 = vld [vmem:[#allocation7 + $0xd10] sm:$0xff]
        %v1417 = vld [vmem:[#allocation7 + $0xd18] sm:$0xff]
        %v1418 = vld [vmem:[#allocation7 + $0xd20] sm:$0xff]
        %v1419 = vld [vmem:[#allocation7 + $0xd28] sm:$0xff]
        %v1420 = vld [vmem:[#allocation7 + $0xd30] sm:$0xff]
        %v1421 = vld [vmem:[#allocation7 + $0xd38] sm:$0xff]
        %v1422 = vld [vmem:[#allocation7 + $0xd40] sm:$0xff]
        %v1423 = vld [vmem:[#allocation7 + $0xd48] sm:$0xff]
        %v1424 = vld [vmem:[#allocation7 + $0xd50] sm:$0xff]
        %v1425 = vld [vmem:[#allocation7 + $0xd58] sm:$0xff]
        %v1426 = vld [vmem:[#allocation7 + $0xd60] sm:$0xff]
        %v1427 = vld [vmem:[#allocation7 + $0xd68] sm:$0xff]
        %v1428 = vld [vmem:[#allocation7 + $0xd70] sm:$0xff]
        %v1429 = vld [vmem:[#allocation7 + $0xd78] sm:$0xff]
        %v1430 = vld [vmem:[#allocation7 + $0xd80] sm:$0xff]
        %v1431 = vld [vmem:[#allocation7 + $0xd88] sm:$0xff]
        %v1432 = vld [vmem:[#allocation7 + $0xd90] sm:$0xff]
        %v1433 = vld [vmem:[#allocation7 + $0xd98] sm:$0xff]
        %v1434 = vld [vmem:[#allocation7 + $0xda0] sm:$0xff]
        %v1435 = vld [vmem:[#allocation7 + $0xda8] sm:$0xff]
        %v1436 = vld [vmem:[#allocation7 + $0xdb0] sm:$0xff]
        %v1437 = vld [vmem:[#allocation7 + $0xdb8] sm:$0xff]
        %v1438 = vld [vmem:[#allocation7 + $0xdc0] sm:$0xff]
        %v1439 = vld [vmem:[#allocation7 + $0xdc8] sm:$0xff]
        %v1440 = vld [vmem:[#allocation7 + $0xdd0] sm:$0xff]
        %v1441 = vld [vmem:[#allocation7 + $0xdd8] sm:$0xff]
        %v1442 = vld [vmem:[#allocation7 + $0xde0] sm:$0xff]
        %v1443 = vld [vmem:[#allocation7 + $0xde8] sm:$0xff]
        %v1444 = vld [vmem:[#allocation7 + $0xdf0] sm:$0xff]
        %v1445 = vld [vmem:[#allocation7 + $0xdf8] sm:$0xff]
        %v1446 = vld [vmem:[#allocation7 + $0xe00] sm:$0xff]
        %v1447 = vld [vmem:[#allocation7 + $0xe08] sm:$0xff]
        %v1448 = vld [vmem:[#allocation7 + $0xe10] sm:$0xff]
        %v1449 = vld [vmem:[#allocation7 + $0xe18] sm:$0xff]
        %v1450 = vld [vmem:[#allocation7 + $0xe20] sm:$0xff]
        %v1451 = vld [vmem:[#allocation7 + $0xe28] sm:$0xff]
        %v1452 = vld [vmem:[#allocation7 + $0xe30] sm:$0xff]
        %v1453 = vld [vmem:[#allocation7 + $0xe38] sm:$0xff]
        %v1454 = vld [vmem:[#allocation7 + $0xe40] sm:$0xff]
        %v1455 = vld [vmem:[#allocation7 + $0xe48] sm:$0xff]
        %v1456 = vld [vmem:[#allocation7 + $0xe50] sm:$0xff]
        %v1457 = vld [vmem:[#allocation7 + $0xe58] sm:$0xff]
        %v1458 = vld [vmem:[#allocation7 + $0xe60] sm:$0xff]
        %v1459 = vld [vmem:[#allocation7 + $0xe68] sm:$0xff]
        %v1460 = vld [vmem:[#allocation7 + $0xe70] sm:$0xff]
        %v1461 = vld [vmem:[#allocation7 + $0xe78] sm:$0xff]
        %v1462 = vld [vmem:[#allocation7 + $0xe80] sm:$0xff]
        %v1463 = vld [vmem:[#allocation7 + $0xe88] sm:$0xff]
        %v1464 = vld [vmem:[#allocation7 + $0xe90] sm:$0xff]
        %v1465 = vld [vmem:[#allocation7 + $0xe98] sm:$0xff]
        %v1466 = vld [vmem:[#allocation7 + $0xea0] sm:$0xff]
        %v1467 = vld [vmem:[#allocation7 + $0xea8] sm:$0xff]
        %v1468 = vld [vmem:[#allocation7 + $0xeb0] sm:$0xff]
        %v1469 = vld [vmem:[#allocation7 + $0xeb8] sm:$0xff]
        %v1470 = vld [vmem:[#allocation7 + $0xec0] sm:$0xff]
        %v1471 = vld [vmem:[#allocation7 + $0xec8] sm:$0xff]
        %v1472 = vld [vmem:[#allocation7 + $0xed0] sm:$0xff]
        %v1473 = vld [vmem:[#allocation7 + $0xed8] sm:$0xff]
        %v1474 = vld [vmem:[#allocation7 + $0xee0] sm:$0xff]
        %v1475 = vld [vmem:[#allocation7 + $0xee8] sm:$0xff]
        %v1476 = vld [vmem:[#allocation7 + $0xef0] sm:$0xff]
        %v1477 = vld [vmem:[#allocation7 + $0xef8] sm:$0xff]
        %v1478 = vld [vmem:[#allocation7 + $0xf00] sm:$0xff]
        %v1479 = vld [vmem:[#allocation7 + $0xf08] sm:$0xff]
        %v1480 = vld [vmem:[#allocation7 + $0xf10] sm:$0xff]
        %v1481 = vld [vmem:[#allocation7 + $0xf18] sm:$0xff]
        %v1482 = vld [vmem:[#allocation7 + $0xf20] sm:$0xff]
        %v1483 = vld [vmem:[#allocation7 + $0xf28] sm:$0xff]
        %v1484 = vld [vmem:[#allocation7 + $0xf30] sm:$0xff]
        %v1485 = vld [vmem:[#allocation7 + $0xf38] sm:$0xff]
        %v1486 = vld [vmem:[#allocation7 + $0xf40] sm:$0xff]
        %v1487 = vld [vmem:[#allocation7 + $0xf48] sm:$0xff]
        %v1488 = vld [vmem:[#allocation7 + $0xf50] sm:$0xff]
        %v1489 = vld [vmem:[#allocation7 + $0xf58] sm:$0xff]
        %v1490 = vld [vmem:[#allocation7 + $0xf60] sm:$0xff]
        %v1491 = vld [vmem:[#allocation7 + $0xf68] sm:$0xff]
        %v1492 = vld [vmem:[#allocation7 + $0xf70] sm:$0xff]
        %v1493 = vld [vmem:[#allocation7 + $0xf78] sm:$0xff]
        %v1494 = vld [vmem:[#allocation7 + $0xf80] sm:$0xff]
        %v1495 = vld [vmem:[#allocation7 + $0xf88] sm:$0xff]
        %v1496 = vld [vmem:[#allocation7 + $0xf90] sm:$0xff]
        %v1497 = vld [vmem:[#allocation7 + $0xf98] sm:$0xff]
        %v1498 = vld [vmem:[#allocation7 + $0xfa0] sm:$0xff]
        %v1499 = vld [vmem:[#allocation7 + $0xfa8] sm:$0xff]
        %v1500 = vld [vmem:[#allocation7 + $0xfb0] sm:$0xff]
        %v1501 = vld [vmem:[#allocation7 + $0xfb8] sm:$0xff]
        %v1502 = vld [vmem:[#allocation7 + $0xfc0] sm:$0xff]
        %v1503 = vld [vmem:[#allocation7 + $0xfc8] sm:$0xff]
        %v1504 = vld [vmem:[#allocation7 + $0xfd0] sm:$0xff]
        %v1505 = vld [vmem:[#allocation7 + $0xfd8] sm:$0xff]
        %v1506 = vld [vmem:[#allocation7 + $0xfe0] sm:$0xff]
        %v1507 = vld [vmem:[#allocation7 + $0xfe8] sm:$0xff]
        %v1508 = vld [vmem:[#allocation7 + $0xff0] sm:$0xff]
        %v1509 = vld [vmem:[#allocation7 + $0xff8] sm:$0xff]
        %v1510 = vld [vmem:[#allocation10] sm:$0xff]
        %v1512 = vlaneseq
        %v1513 = vshrl.u32 %v1512, 7
        %v1514 = vsub.s32 0, %v1513
        %v1515 = vrot.slane %v1510, %v1514
        %v1516 = vlaneseq
        %v1517 = vshrl.u32 %v1516, 7
        %v1518 = vsub.s32 1, %v1517
        %v1519 = vrot.slane %v1510, %v1518
        %v1520 = vlaneseq
        %v1521 = vshrl.u32 %v1520, 7
        %v1522 = vsub.s32 2, %v1521
        %v1523 = vrot.slane %v1510, %v1522
        %v1524 = vlaneseq
        %v1525 = vshrl.u32 %v1524, 7
        %v1526 = vsub.s32 3, %v1525
        %v1527 = vrot.slane %v1510, %v1526
        %v1528 = vlaneseq
        %v1529 = vshrl.u32 %v1528, 7
        %v1530 = vsub.s32 4, %v1529
        %v1531 = vrot.slane %v1510, %v1530
        %v1532 = vlaneseq
        %v1533 = vshrl.u32 %v1532, 7
        %v1534 = vsub.s32 5, %v1533
        %v1535 = vrot.slane %v1510, %v1534
        %v1536 = vlaneseq
        %v1537 = vshrl.u32 %v1536, 7
        %v1538 = vsub.s32 6, %v1537
        %v1539 = vrot.slane %v1510, %v1538
        %v1540 = vlaneseq
        %v1541 = vshrl.u32 %v1540, 7
        %v1542 = vsub.s32 7, %v1541
        %v1543 = vrot.slane %v1510, %v1542
        %v2064 = vunpack.c.l.b16 %v998
        %v2065 = vunpack.c.h.b16 %v998
        %v2066 = vunpack.c.l.b16 %v999
        %v2067 = vunpack.c.h.b16 %v999
        %v2068 = vunpack.c.l.b16 %v1000
        %v2069 = vunpack.c.h.b16 %v1000
        %v2070 = vunpack.c.l.b16 %v1001
        %v2071 = vunpack.c.h.b16 %v1001
        %v2072 = vunpack.c.l.b16 %v1002
        %v2073 = vunpack.c.h.b16 %v1002
        %v2074 = vunpack.c.l.b16 %v1003
        %v2075 = vunpack.c.h.b16 %v1003
        %v2076 = vunpack.c.l.b16 %v1004
        %v2077 = vunpack.c.h.b16 %v1004
        %v2078 = vunpack.c.l.b16 %v1005
        %v2079 = vunpack.c.h.b16 %v1005
        %v2080 = vunpack.c.l.b16 %v1006
        %v2081 = vunpack.c.h.b16 %v1006
        %v2082 = vunpack.c.l.b16 %v1007
        %v2083 = vunpack.c.h.b16 %v1007
        %v2084 = vunpack.c.l.b16 %v1008
        %v2085 = vunpack.c.h.b16 %v1008
        %v2086 = vunpack.c.l.b16 %v1009
        %v2087 = vunpack.c.h.b16 %v1009
        %v2088 = vunpack.c.l.b16 %v1010
        %v2089 = vunpack.c.h.b16 %v1010
        %v2090 = vunpack.c.l.b16 %v1011
        %v2091 = vunpack.c.h.b16 %v1011
        %v2092 = vunpack.c.l.b16 %v1012
        %v2093 = vunpack.c.h.b16 %v1012
        %v2094 = vunpack.c.l.b16 %v1013
        %v2095 = vunpack.c.h.b16 %v1013
        %v2096 = vunpack.c.l.b16 %v1014
        %v2097 = vunpack.c.h.b16 %v1014
        %v2098 = vunpack.c.l.b16 %v1015
        %v2099 = vunpack.c.h.b16 %v1015
        %v2100 = vunpack.c.l.b16 %v1016
        %v2101 = vunpack.c.h.b16 %v1016
        %v2102 = vunpack.c.l.b16 %v1017
        %v2103 = vunpack.c.h.b16 %v1017
        %v2104 = vunpack.c.l.b16 %v1018
        %v2105 = vunpack.c.h.b16 %v1018
        %v2106 = vunpack.c.l.b16 %v1019
        %v2107 = vunpack.c.h.b16 %v1019
        %v2108 = vunpack.c.l.b16 %v1020
        %v2109 = vunpack.c.h.b16 %v1020
        %v2110 = vunpack.c.l.b16 %v1021
        %v2111 = vunpack.c.h.b16 %v1021
        %v2112 = vunpack.c.l.b16 %v1022
        %v2113 = vunpack.c.h.b16 %v1022
        %v2114 = vunpack.c.l.b16 %v1023
        %v2115 = vunpack.c.h.b16 %v1023
        %v2116 = vunpack.c.l.b16 %v1024
        %v2117 = vunpack.c.h.b16 %v1024
        %v2118 = vunpack.c.l.b16 %v1025
        %v2119 = vunpack.c.h.b16 %v1025
        %v2120 = vunpack.c.l.b16 %v1026
        %v2121 = vunpack.c.h.b16 %v1026
        %v2122 = vunpack.c.l.b16 %v1027
        %v2123 = vunpack.c.h.b16 %v1027
        %v2124 = vunpack.c.l.b16 %v1028
        %v2125 = vunpack.c.h.b16 %v1028
        %v2126 = vunpack.c.l.b16 %v1029
        %v2127 = vunpack.c.h.b16 %v1029
        %v2128 = vunpack.c.l.b16 %v1030
        %v2129 = vunpack.c.h.b16 %v1030
        %v2130 = vunpack.c.l.b16 %v1031
        %v2131 = vunpack.c.h.b16 %v1031
        %v2132 = vunpack.c.l.b16 %v1032
        %v2133 = vunpack.c.h.b16 %v1032
        %v2134 = vunpack.c.l.b16 %v1033
        %v2135 = vunpack.c.h.b16 %v1033
        %v2136 = vunpack.c.l.b16 %v1034
        %v2137 = vunpack.c.h.b16 %v1034
        %v2138 = vunpack.c.l.b16 %v1035
        %v2139 = vunpack.c.h.b16 %v1035
        %v2140 = vunpack.c.l.b16 %v1036
        %v2141 = vunpack.c.h.b16 %v1036
        %v2142 = vunpack.c.l.b16 %v1037
        %v2143 = vunpack.c.h.b16 %v1037
        %v2144 = vunpack.c.l.b16 %v1038
        %v2145 = vunpack.c.h.b16 %v1038
        %v2146 = vunpack.c.l.b16 %v1039
        %v2147 = vunpack.c.h.b16 %v1039
        %v2148 = vunpack.c.l.b16 %v1040
        %v2149 = vunpack.c.h.b16 %v1040
        %v2150 = vunpack.c.l.b16 %v1041
        %v2151 = vunpack.c.h.b16 %v1041
        %v2152 = vunpack.c.l.b16 %v1042
        %v2153 = vunpack.c.h.b16 %v1042
        %v2154 = vunpack.c.l.b16 %v1043
        %v2155 = vunpack.c.h.b16 %v1043
        %v2156 = vunpack.c.l.b16 %v1044
        %v2157 = vunpack.c.h.b16 %v1044
        %v2158 = vunpack.c.l.b16 %v1045
        %v2159 = vunpack.c.h.b16 %v1045
        %v2160 = vunpack.c.l.b16 %v1046
        %v2161 = vunpack.c.h.b16 %v1046
        %v2162 = vunpack.c.l.b16 %v1047
        %v2163 = vunpack.c.h.b16 %v1047
        %v2164 = vunpack.c.l.b16 %v1048
        %v2165 = vunpack.c.h.b16 %v1048
        %v2166 = vunpack.c.l.b16 %v1049
        %v2167 = vunpack.c.h.b16 %v1049
        %v2168 = vunpack.c.l.b16 %v1050
        %v2169 = vunpack.c.h.b16 %v1050
        %v2170 = vunpack.c.l.b16 %v1051
        %v2171 = vunpack.c.h.b16 %v1051
        %v2172 = vunpack.c.l.b16 %v1052
        %v2173 = vunpack.c.h.b16 %v1052
        %v2174 = vunpack.c.l.b16 %v1053
        %v2175 = vunpack.c.h.b16 %v1053
        %v2176 = vunpack.c.l.b16 %v1054
        %v2177 = vunpack.c.h.b16 %v1054
        %v2178 = vunpack.c.l.b16 %v1055
        %v2179 = vunpack.c.h.b16 %v1055
        %v2180 = vunpack.c.l.b16 %v1056
        %v2181 = vunpack.c.h.b16 %v1056
        %v2182 = vunpack.c.l.b16 %v1057
        %v2183 = vunpack.c.h.b16 %v1057
        %v2184 = vunpack.c.l.b16 %v1058
        %v2185 = vunpack.c.h.b16 %v1058
        %v2186 = vunpack.c.l.b16 %v1059
        %v2187 = vunpack.c.h.b16 %v1059
        %v2188 = vunpack.c.l.b16 %v1060
        %v2189 = vunpack.c.h.b16 %v1060
        %v2190 = vunpack.c.l.b16 %v1061
        %v2191 = vunpack.c.h.b16 %v1061
        %v2192 = vunpack.c.l.b16 %v1062
        %v2193 = vunpack.c.h.b16 %v1062
        %v2194 = vunpack.c.l.b16 %v1063
        %v2195 = vunpack.c.h.b16 %v1063
        %v2196 = vunpack.c.l.b16 %v1064
        %v2197 = vunpack.c.h.b16 %v1064
        %v2198 = vunpack.c.l.b16 %v1065
        %v2199 = vunpack.c.h.b16 %v1065
        %v2200 = vunpack.c.l.b16 %v1066
        %v2201 = vunpack.c.h.b16 %v1066
        %v2202 = vunpack.c.l.b16 %v1067
        %v2203 = vunpack.c.h.b16 %v1067
        %v2204 = vunpack.c.l.b16 %v1068
        %v2205 = vunpack.c.h.b16 %v1068
        %v2206 = vunpack.c.l.b16 %v1069
        %v2207 = vunpack.c.h.b16 %v1069
        %v2208 = vunpack.c.l.b16 %v1070
        %v2209 = vunpack.c.h.b16 %v1070
        %v2210 = vunpack.c.l.b16 %v1071
        %v2211 = vunpack.c.h.b16 %v1071
        %v2212 = vunpack.c.l.b16 %v1072
        %v2213 = vunpack.c.h.b16 %v1072
        %v2214 = vunpack.c.l.b16 %v1073
        %v2215 = vunpack.c.h.b16 %v1073
        %v2216 = vunpack.c.l.b16 %v1074
        %v2217 = vunpack.c.h.b16 %v1074
        %v2218 = vunpack.c.l.b16 %v1075
        %v2219 = vunpack.c.h.b16 %v1075
        %v2220 = vunpack.c.l.b16 %v1076
        %v2221 = vunpack.c.h.b16 %v1076
        %v2222 = vunpack.c.l.b16 %v1077
        %v2223 = vunpack.c.h.b16 %v1077
        %v2224 = vunpack.c.l.b16 %v1078
        %v2225 = vunpack.c.h.b16 %v1078
        %v2226 = vunpack.c.l.b16 %v1079
        %v2227 = vunpack.c.h.b16 %v1079
        %v2228 = vunpack.c.l.b16 %v1080
        %v2229 = vunpack.c.h.b16 %v1080
        %v2230 = vunpack.c.l.b16 %v1081
        %v2231 = vunpack.c.h.b16 %v1081
        %v2232 = vunpack.c.l.b16 %v1082
        %v2233 = vunpack.c.h.b16 %v1082
        %v2234 = vunpack.c.l.b16 %v1083
        %v2235 = vunpack.c.h.b16 %v1083
        %v2236 = vunpack.c.l.b16 %v1084
        %v2237 = vunpack.c.h.b16 %v1084
        %v2238 = vunpack.c.l.b16 %v1085
        %v2239 = vunpack.c.h.b16 %v1085
        %v2240 = vunpack.c.l.b16 %v1086
        %v2241 = vunpack.c.h.b16 %v1086
        %v2242 = vunpack.c.l.b16 %v1087
        %v2243 = vunpack.c.h.b16 %v1087
        %v2244 = vunpack.c.l.b16 %v1088
        %v2245 = vunpack.c.h.b16 %v1088
        %v2246 = vunpack.c.l.b16 %v1089
        %v2247 = vunpack.c.h.b16 %v1089
        %v2248 = vunpack.c.l.b16 %v1090
        %v2249 = vunpack.c.h.b16 %v1090
        %v2250 = vunpack.c.l.b16 %v1091
        %v2251 = vunpack.c.h.b16 %v1091
        %v2252 = vunpack.c.l.b16 %v1092
        %v2253 = vunpack.c.h.b16 %v1092
        %v2254 = vunpack.c.l.b16 %v1093
        %v2255 = vunpack.c.h.b16 %v1093
        %v2256 = vunpack.c.l.b16 %v1094
        %v2257 = vunpack.c.h.b16 %v1094
        %v2258 = vunpack.c.l.b16 %v1095
        %v2259 = vunpack.c.h.b16 %v1095
        %v2260 = vunpack.c.l.b16 %v1096
        %v2261 = vunpack.c.h.b16 %v1096
        %v2262 = vunpack.c.l.b16 %v1097
        %v2263 = vunpack.c.h.b16 %v1097
        %v2264 = vunpack.c.l.b16 %v1098
        %v2265 = vunpack.c.h.b16 %v1098
        %v2266 = vunpack.c.l.b16 %v1099
        %v2267 = vunpack.c.h.b16 %v1099
        %v2268 = vunpack.c.l.b16 %v1100
        %v2269 = vunpack.c.h.b16 %v1100
        %v2270 = vunpack.c.l.b16 %v1101
        %v2271 = vunpack.c.h.b16 %v1101
        %v2272 = vunpack.c.l.b16 %v1102
        %v2273 = vunpack.c.h.b16 %v1102
        %v2274 = vunpack.c.l.b16 %v1103
        %v2275 = vunpack.c.h.b16 %v1103
        %v2276 = vunpack.c.l.b16 %v1104
        %v2277 = vunpack.c.h.b16 %v1104
        %v2278 = vunpack.c.l.b16 %v1105
        %v2279 = vunpack.c.h.b16 %v1105
        %v2280 = vunpack.c.l.b16 %v1106
        %v2281 = vunpack.c.h.b16 %v1106
        %v2282 = vunpack.c.l.b16 %v1107
        %v2283 = vunpack.c.h.b16 %v1107
        %v2284 = vunpack.c.l.b16 %v1108
        %v2285 = vunpack.c.h.b16 %v1108
        %v2286 = vunpack.c.l.b16 %v1109
        %v2287 = vunpack.c.h.b16 %v1109
        %v2288 = vunpack.c.l.b16 %v1110
        %v2289 = vunpack.c.h.b16 %v1110
        %v2290 = vunpack.c.l.b16 %v1111
        %v2291 = vunpack.c.h.b16 %v1111
        %v2292 = vunpack.c.l.b16 %v1112
        %v2293 = vunpack.c.h.b16 %v1112
        %v2294 = vunpack.c.l.b16 %v1113
        %v2295 = vunpack.c.h.b16 %v1113
        %v2296 = vunpack.c.l.b16 %v1114
        %v2297 = vunpack.c.h.b16 %v1114
        %v2298 = vunpack.c.l.b16 %v1115
        %v2299 = vunpack.c.h.b16 %v1115
        %v2300 = vunpack.c.l.b16 %v1116
        %v2301 = vunpack.c.h.b16 %v1116
        %v2302 = vunpack.c.l.b16 %v1117
        %v2303 = vunpack.c.h.b16 %v1117
        %v2304 = vunpack.c.l.b16 %v1118
        %v2305 = vunpack.c.h.b16 %v1118
        %v2306 = vunpack.c.l.b16 %v1119
        %v2307 = vunpack.c.h.b16 %v1119
        %v2308 = vunpack.c.l.b16 %v1120
        %v2309 = vunpack.c.h.b16 %v1120
        %v2310 = vunpack.c.l.b16 %v1121
        %v2311 = vunpack.c.h.b16 %v1121
        %v2312 = vunpack.c.l.b16 %v1122
        %v2313 = vunpack.c.h.b16 %v1122
        %v2314 = vunpack.c.l.b16 %v1123
        %v2315 = vunpack.c.h.b16 %v1123
        %v2316 = vunpack.c.l.b16 %v1124
        %v2317 = vunpack.c.h.b16 %v1124
        %v2318 = vunpack.c.l.b16 %v1125
        %v2319 = vunpack.c.h.b16 %v1125
        %v2320 = vunpack.c.l.b16 %v1126
        %v2321 = vunpack.c.h.b16 %v1126
        %v2322 = vunpack.c.l.b16 %v1127
        %v2323 = vunpack.c.h.b16 %v1127
        %v2324 = vunpack.c.l.b16 %v1128
        %v2325 = vunpack.c.h.b16 %v1128
        %v2326 = vunpack.c.l.b16 %v1129
        %v2327 = vunpack.c.h.b16 %v1129
        %v2328 = vunpack.c.l.b16 %v1130
        %v2329 = vunpack.c.h.b16 %v1130
        %v2330 = vunpack.c.l.b16 %v1131
        %v2331 = vunpack.c.h.b16 %v1131
        %v2332 = vunpack.c.l.b16 %v1132
        %v2333 = vunpack.c.h.b16 %v1132
        %v2334 = vunpack.c.l.b16 %v1133
        %v2335 = vunpack.c.h.b16 %v1133
        %v2336 = vunpack.c.l.b16 %v1134
        %v2337 = vunpack.c.h.b16 %v1134
        %v2338 = vunpack.c.l.b16 %v1135
        %v2339 = vunpack.c.h.b16 %v1135
        %v2340 = vunpack.c.l.b16 %v1136
        %v2341 = vunpack.c.h.b16 %v1136
        %v2342 = vunpack.c.l.b16 %v1137
        %v2343 = vunpack.c.h.b16 %v1137
        %v2344 = vunpack.c.l.b16 %v1138
        %v2345 = vunpack.c.h.b16 %v1138
        %v2346 = vunpack.c.l.b16 %v1139
        %v2347 = vunpack.c.h.b16 %v1139
        %v2348 = vunpack.c.l.b16 %v1140
        %v2349 = vunpack.c.h.b16 %v1140
        %v2350 = vunpack.c.l.b16 %v1141
        %v2351 = vunpack.c.h.b16 %v1141
        %v2352 = vunpack.c.l.b16 %v1142
        %v2353 = vunpack.c.h.b16 %v1142
        %v2354 = vunpack.c.l.b16 %v1143
        %v2355 = vunpack.c.h.b16 %v1143
        %v2356 = vunpack.c.l.b16 %v1144
        %v2357 = vunpack.c.h.b16 %v1144
        %v2358 = vunpack.c.l.b16 %v1145
        %v2359 = vunpack.c.h.b16 %v1145
        %v2360 = vunpack.c.l.b16 %v1146
        %v2361 = vunpack.c.h.b16 %v1146
        %v2362 = vunpack.c.l.b16 %v1147
        %v2363 = vunpack.c.h.b16 %v1147
        %v2364 = vunpack.c.l.b16 %v1148
        %v2365 = vunpack.c.h.b16 %v1148
        %v2366 = vunpack.c.l.b16 %v1149
        %v2367 = vunpack.c.h.b16 %v1149
        %v2368 = vunpack.c.l.b16 %v1150
        %v2369 = vunpack.c.h.b16 %v1150
        %v2370 = vunpack.c.l.b16 %v1151
        %v2371 = vunpack.c.h.b16 %v1151
        %v2372 = vunpack.c.l.b16 %v1152
        %v2373 = vunpack.c.h.b16 %v1152
        %v2374 = vunpack.c.l.b16 %v1153
        %v2375 = vunpack.c.h.b16 %v1153
        %v2376 = vunpack.c.l.b16 %v1154
        %v2377 = vunpack.c.h.b16 %v1154
        %v2378 = vunpack.c.l.b16 %v1155
        %v2379 = vunpack.c.h.b16 %v1155
        %v2380 = vunpack.c.l.b16 %v1156
        %v2381 = vunpack.c.h.b16 %v1156
        %v2382 = vunpack.c.l.b16 %v1157
        %v2383 = vunpack.c.h.b16 %v1157
        %v2384 = vunpack.c.l.b16 %v1158
        %v2385 = vunpack.c.h.b16 %v1158
        %v2386 = vunpack.c.l.b16 %v1159
        %v2387 = vunpack.c.h.b16 %v1159
        %v2388 = vunpack.c.l.b16 %v1160
        %v2389 = vunpack.c.h.b16 %v1160
        %v2390 = vunpack.c.l.b16 %v1161
        %v2391 = vunpack.c.h.b16 %v1161
        %v2392 = vunpack.c.l.b16 %v1162
        %v2393 = vunpack.c.h.b16 %v1162
        %v2394 = vunpack.c.l.b16 %v1163
        %v2395 = vunpack.c.h.b16 %v1163
        %v2396 = vunpack.c.l.b16 %v1164
        %v2397 = vunpack.c.h.b16 %v1164
        %v2398 = vunpack.c.l.b16 %v1165
        %v2399 = vunpack.c.h.b16 %v1165
        %v2400 = vunpack.c.l.b16 %v1166
        %v2401 = vunpack.c.h.b16 %v1166
        %v2402 = vunpack.c.l.b16 %v1167
        %v2403 = vunpack.c.h.b16 %v1167
        %v2404 = vunpack.c.l.b16 %v1168
        %v2405 = vunpack.c.h.b16 %v1168
        %v2406 = vunpack.c.l.b16 %v1169
        %v2407 = vunpack.c.h.b16 %v1169
        %v2408 = vunpack.c.l.b16 %v1170
        %v2409 = vunpack.c.h.b16 %v1170
        %v2410 = vunpack.c.l.b16 %v1171
        %v2411 = vunpack.c.h.b16 %v1171
        %v2412 = vunpack.c.l.b16 %v1172
        %v2413 = vunpack.c.h.b16 %v1172
        %v2414 = vunpack.c.l.b16 %v1173
        %v2415 = vunpack.c.h.b16 %v1173
        %v2416 = vunpack.c.l.b16 %v1174
        %v2417 = vunpack.c.h.b16 %v1174
        %v2418 = vunpack.c.l.b16 %v1175
        %v2419 = vunpack.c.h.b16 %v1175
        %v2420 = vunpack.c.l.b16 %v1176
        %v2421 = vunpack.c.h.b16 %v1176
        %v2422 = vunpack.c.l.b16 %v1177
        %v2423 = vunpack.c.h.b16 %v1177
        %v2424 = vunpack.c.l.b16 %v1178
        %v2425 = vunpack.c.h.b16 %v1178
        %v2426 = vunpack.c.l.b16 %v1179
        %v2427 = vunpack.c.h.b16 %v1179
        %v2428 = vunpack.c.l.b16 %v1180
        %v2429 = vunpack.c.h.b16 %v1180
        %v2430 = vunpack.c.l.b16 %v1181
        %v2431 = vunpack.c.h.b16 %v1181
        %v2432 = vunpack.c.l.b16 %v1182
        %v2433 = vunpack.c.h.b16 %v1182
        %v2434 = vunpack.c.l.b16 %v1183
        %v2435 = vunpack.c.h.b16 %v1183
        %v2436 = vunpack.c.l.b16 %v1184
        %v2437 = vunpack.c.h.b16 %v1184
        %v2438 = vunpack.c.l.b16 %v1185
        %v2439 = vunpack.c.h.b16 %v1185
        %v2440 = vunpack.c.l.b16 %v1186
        %v2441 = vunpack.c.h.b16 %v1186
        %v2442 = vunpack.c.l.b16 %v1187
        %v2443 = vunpack.c.h.b16 %v1187
        %v2444 = vunpack.c.l.b16 %v1188
        %v2445 = vunpack.c.h.b16 %v1188
        %v2446 = vunpack.c.l.b16 %v1189
        %v2447 = vunpack.c.h.b16 %v1189
        %v2448 = vunpack.c.l.b16 %v1190
        %v2449 = vunpack.c.h.b16 %v1190
        %v2450 = vunpack.c.l.b16 %v1191
        %v2451 = vunpack.c.h.b16 %v1191
        %v2452 = vunpack.c.l.b16 %v1192
        %v2453 = vunpack.c.h.b16 %v1192
        %v2454 = vunpack.c.l.b16 %v1193
        %v2455 = vunpack.c.h.b16 %v1193
        %v2456 = vunpack.c.l.b16 %v1194
        %v2457 = vunpack.c.h.b16 %v1194
        %v2458 = vunpack.c.l.b16 %v1195
        %v2459 = vunpack.c.h.b16 %v1195
        %v2460 = vunpack.c.l.b16 %v1196
        %v2461 = vunpack.c.h.b16 %v1196
        %v2462 = vunpack.c.l.b16 %v1197
        %v2463 = vunpack.c.h.b16 %v1197
        %v2464 = vunpack.c.l.b16 %v1198
        %v2465 = vunpack.c.h.b16 %v1198
        %v2466 = vunpack.c.l.b16 %v1199
        %v2467 = vunpack.c.h.b16 %v1199
        %v2468 = vunpack.c.l.b16 %v1200
        %v2469 = vunpack.c.h.b16 %v1200
        %v2470 = vunpack.c.l.b16 %v1201
        %v2471 = vunpack.c.h.b16 %v1201
        %v2472 = vunpack.c.l.b16 %v1202
        %v2473 = vunpack.c.h.b16 %v1202
        %v2474 = vunpack.c.l.b16 %v1203
        %v2475 = vunpack.c.h.b16 %v1203
        %v2476 = vunpack.c.l.b16 %v1204
        %v2477 = vunpack.c.h.b16 %v1204
        %v2478 = vunpack.c.l.b16 %v1205
        %v2479 = vunpack.c.h.b16 %v1205
        %v2480 = vunpack.c.l.b16 %v1206
        %v2481 = vunpack.c.h.b16 %v1206
        %v2482 = vunpack.c.l.b16 %v1207
        %v2483 = vunpack.c.h.b16 %v1207
        %v2484 = vunpack.c.l.b16 %v1208
        %v2485 = vunpack.c.h.b16 %v1208
        %v2486 = vunpack.c.l.b16 %v1209
        %v2487 = vunpack.c.h.b16 %v1209
        %v2488 = vunpack.c.l.b16 %v1210
        %v2489 = vunpack.c.h.b16 %v1210
        %v2490 = vunpack.c.l.b16 %v1211
        %v2491 = vunpack.c.h.b16 %v1211
        %v2492 = vunpack.c.l.b16 %v1212
        %v2493 = vunpack.c.h.b16 %v1212
        %v2494 = vunpack.c.l.b16 %v1213
        %v2495 = vunpack.c.h.b16 %v1213
        %v2496 = vunpack.c.l.b16 %v1214
        %v2497 = vunpack.c.h.b16 %v1214
        %v2498 = vunpack.c.l.b16 %v1215
        %v2499 = vunpack.c.h.b16 %v1215
        %v2500 = vunpack.c.l.b16 %v1216
        %v2501 = vunpack.c.h.b16 %v1216
        %v2502 = vunpack.c.l.b16 %v1217
        %v2503 = vunpack.c.h.b16 %v1217
        %v2504 = vunpack.c.l.b16 %v1218
        %v2505 = vunpack.c.h.b16 %v1218
        %v2506 = vunpack.c.l.b16 %v1219
        %v2507 = vunpack.c.h.b16 %v1219
        %v2508 = vunpack.c.l.b16 %v1220
        %v2509 = vunpack.c.h.b16 %v1220
        %v2510 = vunpack.c.l.b16 %v1221
        %v2511 = vunpack.c.h.b16 %v1221
        %v2512 = vunpack.c.l.b16 %v1222
        %v2513 = vunpack.c.h.b16 %v1222
        %v2514 = vunpack.c.l.b16 %v1223
        %v2515 = vunpack.c.h.b16 %v1223
        %v2516 = vunpack.c.l.b16 %v1224
        %v2517 = vunpack.c.h.b16 %v1224
        %v2518 = vunpack.c.l.b16 %v1225
        %v2519 = vunpack.c.h.b16 %v1225
        %v2520 = vunpack.c.l.b16 %v1226
        %v2521 = vunpack.c.h.b16 %v1226
        %v2522 = vunpack.c.l.b16 %v1227
        %v2523 = vunpack.c.h.b16 %v1227
        %v2524 = vunpack.c.l.b16 %v1228
        %v2525 = vunpack.c.h.b16 %v1228
        %v2526 = vunpack.c.l.b16 %v1229
        %v2527 = vunpack.c.h.b16 %v1229
        %v2528 = vunpack.c.l.b16 %v1230
        %v2529 = vunpack.c.h.b16 %v1230
        %v2530 = vunpack.c.l.b16 %v1231
        %v2531 = vunpack.c.h.b16 %v1231
        %v2532 = vunpack.c.l.b16 %v1232
        %v2533 = vunpack.c.h.b16 %v1232
        %v2534 = vunpack.c.l.b16 %v1233
        %v2535 = vunpack.c.h.b16 %v1233
        %v2536 = vunpack.c.l.b16 %v1234
        %v2537 = vunpack.c.h.b16 %v1234
        %v2538 = vunpack.c.l.b16 %v1235
        %v2539 = vunpack.c.h.b16 %v1235
        %v2540 = vunpack.c.l.b16 %v1236
        %v2541 = vunpack.c.h.b16 %v1236
        %v2542 = vunpack.c.l.b16 %v1237
        %v2543 = vunpack.c.h.b16 %v1237
        %v2544 = vunpack.c.l.b16 %v1238
        %v2545 = vunpack.c.h.b16 %v1238
        %v2546 = vunpack.c.l.b16 %v1239
        %v2547 = vunpack.c.h.b16 %v1239
        %v2548 = vunpack.c.l.b16 %v1240
        %v2549 = vunpack.c.h.b16 %v1240
        %v2550 = vunpack.c.l.b16 %v1241
        %v2551 = vunpack.c.h.b16 %v1241
        %v2552 = vunpack.c.l.b16 %v1242
        %v2553 = vunpack.c.h.b16 %v1242
        %v2554 = vunpack.c.l.b16 %v1243
        %v2555 = vunpack.c.h.b16 %v1243
        %v2556 = vunpack.c.l.b16 %v1244
        %v2557 = vunpack.c.h.b16 %v1244
        %v2558 = vunpack.c.l.b16 %v1245
        %v2559 = vunpack.c.h.b16 %v1245
        %v2560 = vunpack.c.l.b16 %v1246
        %v2561 = vunpack.c.h.b16 %v1246
        %v2562 = vunpack.c.l.b16 %v1247
        %v2563 = vunpack.c.h.b16 %v1247
        %v2564 = vunpack.c.l.b16 %v1248
        %v2565 = vunpack.c.h.b16 %v1248
        %v2566 = vunpack.c.l.b16 %v1249
        %v2567 = vunpack.c.h.b16 %v1249
        %v2568 = vunpack.c.l.b16 %v1250
        %v2569 = vunpack.c.h.b16 %v1250
        %v2570 = vunpack.c.l.b16 %v1251
        %v2571 = vunpack.c.h.b16 %v1251
        %v2572 = vunpack.c.l.b16 %v1252
        %v2573 = vunpack.c.h.b16 %v1252
        %v2574 = vunpack.c.l.b16 %v1253
        %v2575 = vunpack.c.h.b16 %v1253
        %v2576 = vunpack.c.l.b16 %v1254
        %v2577 = vunpack.c.h.b16 %v1254
        %v2578 = vunpack.c.l.b16 %v1255
        %v2579 = vunpack.c.h.b16 %v1255
        %v2580 = vunpack.c.l.b16 %v1256
        %v2581 = vunpack.c.h.b16 %v1256
        %v2582 = vunpack.c.l.b16 %v1257
        %v2583 = vunpack.c.h.b16 %v1257
        %v2584 = vunpack.c.l.b16 %v1258
        %v2585 = vunpack.c.h.b16 %v1258
        %v2586 = vunpack.c.l.b16 %v1259
        %v2587 = vunpack.c.h.b16 %v1259
        %v2588 = vunpack.c.l.b16 %v1260
        %v2589 = vunpack.c.h.b16 %v1260
        %v2590 = vunpack.c.l.b16 %v1261
        %v2591 = vunpack.c.h.b16 %v1261
        %v2592 = vunpack.c.l.b16 %v1262
        %v2593 = vunpack.c.h.b16 %v1262
        %v2594 = vunpack.c.l.b16 %v1263
        %v2595 = vunpack.c.h.b16 %v1263
        %v2596 = vunpack.c.l.b16 %v1264
        %v2597 = vunpack.c.h.b16 %v1264
        %v2598 = vunpack.c.l.b16 %v1265
        %v2599 = vunpack.c.h.b16 %v1265
        %v2600 = vunpack.c.l.b16 %v1266
        %v2601 = vunpack.c.h.b16 %v1266
        %v2602 = vunpack.c.l.b16 %v1267
        %v2603 = vunpack.c.h.b16 %v1267
        %v2604 = vunpack.c.l.b16 %v1268
        %v2605 = vunpack.c.h.b16 %v1268
        %v2606 = vunpack.c.l.b16 %v1269
        %v2607 = vunpack.c.h.b16 %v1269
        %v2608 = vunpack.c.l.b16 %v1270
        %v2609 = vunpack.c.h.b16 %v1270
        %v2610 = vunpack.c.l.b16 %v1271
        %v2611 = vunpack.c.h.b16 %v1271
        %v2612 = vunpack.c.l.b16 %v1272
        %v2613 = vunpack.c.h.b16 %v1272
        %v2614 = vunpack.c.l.b16 %v1273
        %v2615 = vunpack.c.h.b16 %v1273
        %v2616 = vunpack.c.l.b16 %v1274
        %v2617 = vunpack.c.h.b16 %v1274
        %v2618 = vunpack.c.l.b16 %v1275
        %v2619 = vunpack.c.h.b16 %v1275
        %v2620 = vunpack.c.l.b16 %v1276
        %v2621 = vunpack.c.h.b16 %v1276
        %v2622 = vunpack.c.l.b16 %v1277
        %v2623 = vunpack.c.h.b16 %v1277
        %v2624 = vunpack.c.l.b16 %v1278
        %v2625 = vunpack.c.h.b16 %v1278
        %v2626 = vunpack.c.l.b16 %v1279
        %v2627 = vunpack.c.h.b16 %v1279
        %v2628 = vunpack.c.l.b16 %v1280
        %v2629 = vunpack.c.h.b16 %v1280
        %v2630 = vunpack.c.l.b16 %v1281
        %v2631 = vunpack.c.h.b16 %v1281
        %v2632 = vunpack.c.l.b16 %v1282
        %v2633 = vunpack.c.h.b16 %v1282
        %v2634 = vunpack.c.l.b16 %v1283
        %v2635 = vunpack.c.h.b16 %v1283
        %v2636 = vunpack.c.l.b16 %v1284
        %v2637 = vunpack.c.h.b16 %v1284
        %v2638 = vunpack.c.l.b16 %v1285
        %v2639 = vunpack.c.h.b16 %v1285
        %v2640 = vunpack.c.l.b16 %v1286
        %v2641 = vunpack.c.h.b16 %v1286
        %v2642 = vunpack.c.l.b16 %v1287
        %v2643 = vunpack.c.h.b16 %v1287
        %v2644 = vunpack.c.l.b16 %v1288
        %v2645 = vunpack.c.h.b16 %v1288
        %v2646 = vunpack.c.l.b16 %v1289
        %v2647 = vunpack.c.h.b16 %v1289
        %v2648 = vunpack.c.l.b16 %v1290
        %v2649 = vunpack.c.h.b16 %v1290
        %v2650 = vunpack.c.l.b16 %v1291
        %v2651 = vunpack.c.h.b16 %v1291
        %v2652 = vunpack.c.l.b16 %v1292
        %v2653 = vunpack.c.h.b16 %v1292
        %v2654 = vunpack.c.l.b16 %v1293
        %v2655 = vunpack.c.h.b16 %v1293
        %v2656 = vunpack.c.l.b16 %v1294
        %v2657 = vunpack.c.h.b16 %v1294
        %v2658 = vunpack.c.l.b16 %v1295
        %v2659 = vunpack.c.h.b16 %v1295
        %v2660 = vunpack.c.l.b16 %v1296
        %v2661 = vunpack.c.h.b16 %v1296
        %v2662 = vunpack.c.l.b16 %v1297
        %v2663 = vunpack.c.h.b16 %v1297
        %v2664 = vunpack.c.l.b16 %v1298
        %v2665 = vunpack.c.h.b16 %v1298
        %v2666 = vunpack.c.l.b16 %v1299
        %v2667 = vunpack.c.h.b16 %v1299
        %v2668 = vunpack.c.l.b16 %v1300
        %v2669 = vunpack.c.h.b16 %v1300
        %v2670 = vunpack.c.l.b16 %v1301
        %v2671 = vunpack.c.h.b16 %v1301
        %v2672 = vunpack.c.l.b16 %v1302
        %v2673 = vunpack.c.h.b16 %v1302
        %v2674 = vunpack.c.l.b16 %v1303
        %v2675 = vunpack.c.h.b16 %v1303
        %v2676 = vunpack.c.l.b16 %v1304
        %v2677 = vunpack.c.h.b16 %v1304
        %v2678 = vunpack.c.l.b16 %v1305
        %v2679 = vunpack.c.h.b16 %v1305
        %v2680 = vunpack.c.l.b16 %v1306
        %v2681 = vunpack.c.h.b16 %v1306
        %v2682 = vunpack.c.l.b16 %v1307
        %v2683 = vunpack.c.h.b16 %v1307
        %v2684 = vunpack.c.l.b16 %v1308
        %v2685 = vunpack.c.h.b16 %v1308
        %v2686 = vunpack.c.l.b16 %v1309
        %v2687 = vunpack.c.h.b16 %v1309
        %v2688 = vunpack.c.l.b16 %v1310
        %v2689 = vunpack.c.h.b16 %v1310
        %v2690 = vunpack.c.l.b16 %v1311
        %v2691 = vunpack.c.h.b16 %v1311
        %v2692 = vunpack.c.l.b16 %v1312
        %v2693 = vunpack.c.h.b16 %v1312
        %v2694 = vunpack.c.l.b16 %v1313
        %v2695 = vunpack.c.h.b16 %v1313
        %v2696 = vunpack.c.l.b16 %v1314
        %v2697 = vunpack.c.h.b16 %v1314
        %v2698 = vunpack.c.l.b16 %v1315
        %v2699 = vunpack.c.h.b16 %v1315
        %v2700 = vunpack.c.l.b16 %v1316
        %v2701 = vunpack.c.h.b16 %v1316
        %v2702 = vunpack.c.l.b16 %v1317
        %v2703 = vunpack.c.h.b16 %v1317
        %v2704 = vunpack.c.l.b16 %v1318
        %v2705 = vunpack.c.h.b16 %v1318
        %v2706 = vunpack.c.l.b16 %v1319
        %v2707 = vunpack.c.h.b16 %v1319
        %v2708 = vunpack.c.l.b16 %v1320
        %v2709 = vunpack.c.h.b16 %v1320
        %v2710 = vunpack.c.l.b16 %v1321
        %v2711 = vunpack.c.h.b16 %v1321
        %v2712 = vunpack.c.l.b16 %v1322
        %v2713 = vunpack.c.h.b16 %v1322
        %v2714 = vunpack.c.l.b16 %v1323
        %v2715 = vunpack.c.h.b16 %v1323
        %v2716 = vunpack.c.l.b16 %v1324
        %v2717 = vunpack.c.h.b16 %v1324
        %v2718 = vunpack.c.l.b16 %v1325
        %v2719 = vunpack.c.h.b16 %v1325
        %v2720 = vunpack.c.l.b16 %v1326
        %v2721 = vunpack.c.h.b16 %v1326
        %v2722 = vunpack.c.l.b16 %v1327
        %v2723 = vunpack.c.h.b16 %v1327
        %v2724 = vunpack.c.l.b16 %v1328
        %v2725 = vunpack.c.h.b16 %v1328
        %v2726 = vunpack.c.l.b16 %v1329
        %v2727 = vunpack.c.h.b16 %v1329
        %v2728 = vunpack.c.l.b16 %v1330
        %v2729 = vunpack.c.h.b16 %v1330
        %v2730 = vunpack.c.l.b16 %v1331
        %v2731 = vunpack.c.h.b16 %v1331
        %v2732 = vunpack.c.l.b16 %v1332
        %v2733 = vunpack.c.h.b16 %v1332
        %v2734 = vunpack.c.l.b16 %v1333
        %v2735 = vunpack.c.h.b16 %v1333
        %v2736 = vunpack.c.l.b16 %v1334
        %v2737 = vunpack.c.h.b16 %v1334
        %v2738 = vunpack.c.l.b16 %v1335
        %v2739 = vunpack.c.h.b16 %v1335
        %v2740 = vunpack.c.l.b16 %v1336
        %v2741 = vunpack.c.h.b16 %v1336
        %v2742 = vunpack.c.l.b16 %v1337
        %v2743 = vunpack.c.h.b16 %v1337
        %v2744 = vunpack.c.l.b16 %v1338
        %v2745 = vunpack.c.h.b16 %v1338
        %v2746 = vunpack.c.l.b16 %v1339
        %v2747 = vunpack.c.h.b16 %v1339
        %v2748 = vunpack.c.l.b16 %v1340
        %v2749 = vunpack.c.h.b16 %v1340
        %v2750 = vunpack.c.l.b16 %v1341
        %v2751 = vunpack.c.h.b16 %v1341
        %v2752 = vunpack.c.l.b16 %v1342
        %v2753 = vunpack.c.h.b16 %v1342
        %v2754 = vunpack.c.l.b16 %v1343
        %v2755 = vunpack.c.h.b16 %v1343
        %v2756 = vunpack.c.l.b16 %v1344
        %v2757 = vunpack.c.h.b16 %v1344
        %v2758 = vunpack.c.l.b16 %v1345
        %v2759 = vunpack.c.h.b16 %v1345
        %v2760 = vunpack.c.l.b16 %v1346
        %v2761 = vunpack.c.h.b16 %v1346
        %v2762 = vunpack.c.l.b16 %v1347
        %v2763 = vunpack.c.h.b16 %v1347
        %v2764 = vunpack.c.l.b16 %v1348
        %v2765 = vunpack.c.h.b16 %v1348
        %v2766 = vunpack.c.l.b16 %v1349
        %v2767 = vunpack.c.h.b16 %v1349
        %v2768 = vunpack.c.l.b16 %v1350
        %v2769 = vunpack.c.h.b16 %v1350
        %v2770 = vunpack.c.l.b16 %v1351
        %v2771 = vunpack.c.h.b16 %v1351
        %v2772 = vunpack.c.l.b16 %v1352
        %v2773 = vunpack.c.h.b16 %v1352
        %v2774 = vunpack.c.l.b16 %v1353
        %v2775 = vunpack.c.h.b16 %v1353
        %v2776 = vunpack.c.l.b16 %v1354
        %v2777 = vunpack.c.h.b16 %v1354
        %v2778 = vunpack.c.l.b16 %v1355
        %v2779 = vunpack.c.h.b16 %v1355
        %v2780 = vunpack.c.l.b16 %v1356
        %v2781 = vunpack.c.h.b16 %v1356
        %v2782 = vunpack.c.l.b16 %v1357
        %v2783 = vunpack.c.h.b16 %v1357
        %v2784 = vunpack.c.l.b16 %v1358
        %v2785 = vunpack.c.h.b16 %v1358
        %v2786 = vunpack.c.l.b16 %v1359
        %v2787 = vunpack.c.h.b16 %v1359
        %v2788 = vunpack.c.l.b16 %v1360
        %v2789 = vunpack.c.h.b16 %v1360
        %v2790 = vunpack.c.l.b16 %v1361
        %v2791 = vunpack.c.h.b16 %v1361
        %v2792 = vunpack.c.l.b16 %v1362
        %v2793 = vunpack.c.h.b16 %v1362
        %v2794 = vunpack.c.l.b16 %v1363
        %v2795 = vunpack.c.h.b16 %v1363
        %v2796 = vunpack.c.l.b16 %v1364
        %v2797 = vunpack.c.h.b16 %v1364
        %v2798 = vunpack.c.l.b16 %v1365
        %v2799 = vunpack.c.h.b16 %v1365
        %v2800 = vunpack.c.l.b16 %v1366
        %v2801 = vunpack.c.h.b16 %v1366
        %v2802 = vunpack.c.l.b16 %v1367
        %v2803 = vunpack.c.h.b16 %v1367
        %v2804 = vunpack.c.l.b16 %v1368
        %v2805 = vunpack.c.h.b16 %v1368
        %v2806 = vunpack.c.l.b16 %v1369
        %v2807 = vunpack.c.h.b16 %v1369
        %v2808 = vunpack.c.l.b16 %v1370
        %v2809 = vunpack.c.h.b16 %v1370
        %v2810 = vunpack.c.l.b16 %v1371
        %v2811 = vunpack.c.h.b16 %v1371
        %v2812 = vunpack.c.l.b16 %v1372
        %v2813 = vunpack.c.h.b16 %v1372
        %v2814 = vunpack.c.l.b16 %v1373
        %v2815 = vunpack.c.h.b16 %v1373
        %v2816 = vunpack.c.l.b16 %v1374
        %v2817 = vunpack.c.h.b16 %v1374
        %v2818 = vunpack.c.l.b16 %v1375
        %v2819 = vunpack.c.h.b16 %v1375
        %v2820 = vunpack.c.l.b16 %v1376
        %v2821 = vunpack.c.h.b16 %v1376
        %v2822 = vunpack.c.l.b16 %v1377
        %v2823 = vunpack.c.h.b16 %v1377
        %v2824 = vunpack.c.l.b16 %v1378
        %v2825 = vunpack.c.h.b16 %v1378
        %v2826 = vunpack.c.l.b16 %v1379
        %v2827 = vunpack.c.h.b16 %v1379
        %v2828 = vunpack.c.l.b16 %v1380
        %v2829 = vunpack.c.h.b16 %v1380
        %v2830 = vunpack.c.l.b16 %v1381
        %v2831 = vunpack.c.h.b16 %v1381
        %v2832 = vunpack.c.l.b16 %v1382
        %v2833 = vunpack.c.h.b16 %v1382
        %v2834 = vunpack.c.l.b16 %v1383
        %v2835 = vunpack.c.h.b16 %v1383
        %v2836 = vunpack.c.l.b16 %v1384
        %v2837 = vunpack.c.h.b16 %v1384
        %v2838 = vunpack.c.l.b16 %v1385
        %v2839 = vunpack.c.h.b16 %v1385
        %v2840 = vunpack.c.l.b16 %v1386
        %v2841 = vunpack.c.h.b16 %v1386
        %v2842 = vunpack.c.l.b16 %v1387
        %v2843 = vunpack.c.h.b16 %v1387
        %v2844 = vunpack.c.l.b16 %v1388
        %v2845 = vunpack.c.h.b16 %v1388
        %v2846 = vunpack.c.l.b16 %v1389
        %v2847 = vunpack.c.h.b16 %v1389
        %v2848 = vunpack.c.l.b16 %v1390
        %v2849 = vunpack.c.h.b16 %v1390
        %v2850 = vunpack.c.l.b16 %v1391
        %v2851 = vunpack.c.h.b16 %v1391
        %v2852 = vunpack.c.l.b16 %v1392
        %v2853 = vunpack.c.h.b16 %v1392
        %v2854 = vunpack.c.l.b16 %v1393
        %v2855 = vunpack.c.h.b16 %v1393
        %v2856 = vunpack.c.l.b16 %v1394
        %v2857 = vunpack.c.h.b16 %v1394
        %v2858 = vunpack.c.l.b16 %v1395
        %v2859 = vunpack.c.h.b16 %v1395
        %v2860 = vunpack.c.l.b16 %v1396
        %v2861 = vunpack.c.h.b16 %v1396
        %v2862 = vunpack.c.l.b16 %v1397
        %v2863 = vunpack.c.h.b16 %v1397
        %v2864 = vunpack.c.l.b16 %v1398
        %v2865 = vunpack.c.h.b16 %v1398
        %v2866 = vunpack.c.l.b16 %v1399
        %v2867 = vunpack.c.h.b16 %v1399
        %v2868 = vunpack.c.l.b16 %v1400
        %v2869 = vunpack.c.h.b16 %v1400
        %v2870 = vunpack.c.l.b16 %v1401
        %v2871 = vunpack.c.h.b16 %v1401
        %v2872 = vunpack.c.l.b16 %v1402
        %v2873 = vunpack.c.h.b16 %v1402
        %v2874 = vunpack.c.l.b16 %v1403
        %v2875 = vunpack.c.h.b16 %v1403
        %v2876 = vunpack.c.l.b16 %v1404
        %v2877 = vunpack.c.h.b16 %v1404
        %v2878 = vunpack.c.l.b16 %v1405
        %v2879 = vunpack.c.h.b16 %v1405
        %v2880 = vunpack.c.l.b16 %v1406
        %v2881 = vunpack.c.h.b16 %v1406
        %v2882 = vunpack.c.l.b16 %v1407
        %v2883 = vunpack.c.h.b16 %v1407
        %v2884 = vunpack.c.l.b16 %v1408
        %v2885 = vunpack.c.h.b16 %v1408
        %v2886 = vunpack.c.l.b16 %v1409
        %v2887 = vunpack.c.h.b16 %v1409
        %v2888 = vunpack.c.l.b16 %v1410
        %v2889 = vunpack.c.h.b16 %v1410
        %v2890 = vunpack.c.l.b16 %v1411
        %v2891 = vunpack.c.h.b16 %v1411
        %v2892 = vunpack.c.l.b16 %v1412
        %v2893 = vunpack.c.h.b16 %v1412
        %v2894 = vunpack.c.l.b16 %v1413
        %v2895 = vunpack.c.h.b16 %v1413
        %v2896 = vunpack.c.l.b16 %v1414
        %v2897 = vunpack.c.h.b16 %v1414
        %v2898 = vunpack.c.l.b16 %v1415
        %v2899 = vunpack.c.h.b16 %v1415
        %v2900 = vunpack.c.l.b16 %v1416
        %v2901 = vunpack.c.h.b16 %v1416
        %v2902 = vunpack.c.l.b16 %v1417
        %v2903 = vunpack.c.h.b16 %v1417
        %v2904 = vunpack.c.l.b16 %v1418
        %v2905 = vunpack.c.h.b16 %v1418
        %v2906 = vunpack.c.l.b16 %v1419
        %v2907 = vunpack.c.h.b16 %v1419
        %v2908 = vunpack.c.l.b16 %v1420
        %v2909 = vunpack.c.h.b16 %v1420
        %v2910 = vunpack.c.l.b16 %v1421
        %v2911 = vunpack.c.h.b16 %v1421
        %v2912 = vunpack.c.l.b16 %v1422
        %v2913 = vunpack.c.h.b16 %v1422
        %v2914 = vunpack.c.l.b16 %v1423
        %v2915 = vunpack.c.h.b16 %v1423
        %v2916 = vunpack.c.l.b16 %v1424
        %v2917 = vunpack.c.h.b16 %v1424
        %v2918 = vunpack.c.l.b16 %v1425
        %v2919 = vunpack.c.h.b16 %v1425
        %v2920 = vunpack.c.l.b16 %v1426
        %v2921 = vunpack.c.h.b16 %v1426
        %v2922 = vunpack.c.l.b16 %v1427
        %v2923 = vunpack.c.h.b16 %v1427
        %v2924 = vunpack.c.l.b16 %v1428
        %v2925 = vunpack.c.h.b16 %v1428
        %v2926 = vunpack.c.l.b16 %v1429
        %v2927 = vunpack.c.h.b16 %v1429
        %v2928 = vunpack.c.l.b16 %v1430
        %v2929 = vunpack.c.h.b16 %v1430
        %v2930 = vunpack.c.l.b16 %v1431
        %v2931 = vunpack.c.h.b16 %v1431
        %v2932 = vunpack.c.l.b16 %v1432
        %v2933 = vunpack.c.h.b16 %v1432
        %v2934 = vunpack.c.l.b16 %v1433
        %v2935 = vunpack.c.h.b16 %v1433
        %v2936 = vunpack.c.l.b16 %v1434
        %v2937 = vunpack.c.h.b16 %v1434
        %v2938 = vunpack.c.l.b16 %v1435
        %v2939 = vunpack.c.h.b16 %v1435
        %v2940 = vunpack.c.l.b16 %v1436
        %v2941 = vunpack.c.h.b16 %v1436
        %v2942 = vunpack.c.l.b16 %v1437
        %v2943 = vunpack.c.h.b16 %v1437
        %v2944 = vunpack.c.l.b16 %v1438
        %v2945 = vunpack.c.h.b16 %v1438
        %v2946 = vunpack.c.l.b16 %v1439
        %v2947 = vunpack.c.h.b16 %v1439
        %v2948 = vunpack.c.l.b16 %v1440
        %v2949 = vunpack.c.h.b16 %v1440
        %v2950 = vunpack.c.l.b16 %v1441
        %v2951 = vunpack.c.h.b16 %v1441
        %v2952 = vunpack.c.l.b16 %v1442
        %v2953 = vunpack.c.h.b16 %v1442
        %v2954 = vunpack.c.l.b16 %v1443
        %v2955 = vunpack.c.h.b16 %v1443
        %v2956 = vunpack.c.l.b16 %v1444
        %v2957 = vunpack.c.h.b16 %v1444
        %v2958 = vunpack.c.l.b16 %v1445
        %v2959 = vunpack.c.h.b16 %v1445
        %v2960 = vunpack.c.l.b16 %v1446
        %v2961 = vunpack.c.h.b16 %v1446
        %v2962 = vunpack.c.l.b16 %v1447
        %v2963 = vunpack.c.h.b16 %v1447
        %v2964 = vunpack.c.l.b16 %v1448
        %v2965 = vunpack.c.h.b16 %v1448
        %v2966 = vunpack.c.l.b16 %v1449
        %v2967 = vunpack.c.h.b16 %v1449
        %v2968 = vunpack.c.l.b16 %v1450
        %v2969 = vunpack.c.h.b16 %v1450
        %v2970 = vunpack.c.l.b16 %v1451
        %v2971 = vunpack.c.h.b16 %v1451
        %v2972 = vunpack.c.l.b16 %v1452
        %v2973 = vunpack.c.h.b16 %v1452
        %v2974 = vunpack.c.l.b16 %v1453
        %v2975 = vunpack.c.h.b16 %v1453
        %v2976 = vunpack.c.l.b16 %v1454
        %v2977 = vunpack.c.h.b16 %v1454
        %v2978 = vunpack.c.l.b16 %v1455
        %v2979 = vunpack.c.h.b16 %v1455
        %v2980 = vunpack.c.l.b16 %v1456
        %v2981 = vunpack.c.h.b16 %v1456
        %v2982 = vunpack.c.l.b16 %v1457
        %v2983 = vunpack.c.h.b16 %v1457
        %v2984 = vunpack.c.l.b16 %v1458
        %v2985 = vunpack.c.h.b16 %v1458
        %v2986 = vunpack.c.l.b16 %v1459
        %v2987 = vunpack.c.h.b16 %v1459
        %v2988 = vunpack.c.l.b16 %v1460
        %v2989 = vunpack.c.h.b16 %v1460
        %v2990 = vunpack.c.l.b16 %v1461
        %v2991 = vunpack.c.h.b16 %v1461
        %v2992 = vunpack.c.l.b16 %v1462
        %v2993 = vunpack.c.h.b16 %v1462
        %v2994 = vunpack.c.l.b16 %v1463
        %v2995 = vunpack.c.h.b16 %v1463
        %v2996 = vunpack.c.l.b16 %v1464
        %v2997 = vunpack.c.h.b16 %v1464
        %v2998 = vunpack.c.l.b16 %v1465
        %v2999 = vunpack.c.h.b16 %v1465
        %v3000 = vunpack.c.l.b16 %v1466
        %v3001 = vunpack.c.h.b16 %v1466
        %v3002 = vunpack.c.l.b16 %v1467
        %v3003 = vunpack.c.h.b16 %v1467
        %v3004 = vunpack.c.l.b16 %v1468
        %v3005 = vunpack.c.h.b16 %v1468
        %v3006 = vunpack.c.l.b16 %v1469
        %v3007 = vunpack.c.h.b16 %v1469
        %v3008 = vunpack.c.l.b16 %v1470
        %v3009 = vunpack.c.h.b16 %v1470
        %v3010 = vunpack.c.l.b16 %v1471
        %v3011 = vunpack.c.h.b16 %v1471
        %v3012 = vunpack.c.l.b16 %v1472
        %v3013 = vunpack.c.h.b16 %v1472
        %v3014 = vunpack.c.l.b16 %v1473
        %v3015 = vunpack.c.h.b16 %v1473
        %v3016 = vunpack.c.l.b16 %v1474
        %v3017 = vunpack.c.h.b16 %v1474
        %v3018 = vunpack.c.l.b16 %v1475
        %v3019 = vunpack.c.h.b16 %v1475
        %v3020 = vunpack.c.l.b16 %v1476
        %v3021 = vunpack.c.h.b16 %v1476
        %v3022 = vunpack.c.l.b16 %v1477
        %v3023 = vunpack.c.h.b16 %v1477
        %v3024 = vunpack.c.l.b16 %v1478
        %v3025 = vunpack.c.h.b16 %v1478
        %v3026 = vunpack.c.l.b16 %v1479
        %v3027 = vunpack.c.h.b16 %v1479
        %v3028 = vunpack.c.l.b16 %v1480
        %v3029 = vunpack.c.h.b16 %v1480
        %v3030 = vunpack.c.l.b16 %v1481
        %v3031 = vunpack.c.h.b16 %v1481
        %v3032 = vunpack.c.l.b16 %v1482
        %v3033 = vunpack.c.h.b16 %v1482
        %v3034 = vunpack.c.l.b16 %v1483
        %v3035 = vunpack.c.h.b16 %v1483
        %v3036 = vunpack.c.l.b16 %v1484
        %v3037 = vunpack.c.h.b16 %v1484
        %v3038 = vunpack.c.l.b16 %v1485
        %v3039 = vunpack.c.h.b16 %v1485
        %v3040 = vunpack.c.l.b16 %v1486
        %v3041 = vunpack.c.h.b16 %v1486
        %v3042 = vunpack.c.l.b16 %v1487
        %v3043 = vunpack.c.h.b16 %v1487
        %v3044 = vunpack.c.l.b16 %v1488
        %v3045 = vunpack.c.h.b16 %v1488
        %v3046 = vunpack.c.l.b16 %v1489
        %v3047 = vunpack.c.h.b16 %v1489
        %v3048 = vunpack.c.l.b16 %v1490
        %v3049 = vunpack.c.h.b16 %v1490
        %v3050 = vunpack.c.l.b16 %v1491
        %v3051 = vunpack.c.h.b16 %v1491
        %v3052 = vunpack.c.l.b16 %v1492
        %v3053 = vunpack.c.h.b16 %v1492
        %v3054 = vunpack.c.l.b16 %v1493
        %v3055 = vunpack.c.h.b16 %v1493
        %v3056 = vunpack.c.l.b16 %v1494
        %v3057 = vunpack.c.h.b16 %v1494
        %v3058 = vunpack.c.l.b16 %v1495
        %v3059 = vunpack.c.h.b16 %v1495
        %v3060 = vunpack.c.l.b16 %v1496
        %v3061 = vunpack.c.h.b16 %v1496
        %v3062 = vunpack.c.l.b16 %v1497
        %v3063 = vunpack.c.h.b16 %v1497
        %v3064 = vunpack.c.l.b16 %v1498
        %v3065 = vunpack.c.h.b16 %v1498
        %v3066 = vunpack.c.l.b16 %v1499
        %v3067 = vunpack.c.h.b16 %v1499
        %v3068 = vunpack.c.l.b16 %v1500
        %v3069 = vunpack.c.h.b16 %v1500
        %v3070 = vunpack.c.l.b16 %v1501
        %v3071 = vunpack.c.h.b16 %v1501
        %v3072 = vunpack.c.l.b16 %v1502
        %v3073 = vunpack.c.h.b16 %v1502
        %v3074 = vunpack.c.l.b16 %v1503
        %v3075 = vunpack.c.h.b16 %v1503
        %v3076 = vunpack.c.l.b16 %v1504
        %v3077 = vunpack.c.h.b16 %v1504
        %v3078 = vunpack.c.l.b16 %v1505
        %v3079 = vunpack.c.h.b16 %v1505
        %v3080 = vunpack.c.l.b16 %v1506
        %v3081 = vunpack.c.h.b16 %v1506
        %v3082 = vunpack.c.l.b16 %v1507
        %v3083 = vunpack.c.h.b16 %v1507
        %v3084 = vunpack.c.l.b16 %v1508
        %v3085 = vunpack.c.h.b16 %v1508
        %v3086 = vunpack.c.l.b16 %v1509
        %v3087 = vunpack.c.h.b16 %v1509
        %v3088 = vpack.c.b16 %v2072, %v2064
        %v3089 = vpack.c.b16 %v2073, %v2065
        %v3090 = vpack.c.b16 %v2074, %v2066
        %v3091 = vpack.c.b16 %v2075, %v2067
        %v3092 = vpack.c.b16 %v2076, %v2068
        %v3093 = vpack.c.b16 %v2077, %v2069
        %v3094 = vpack.c.b16 %v2078, %v2070
        %v3095 = vpack.c.b16 %v2079, %v2071
        %v3096 = vpack.c.b16 %v2088, %v2080
        %v3097 = vpack.c.b16 %v2089, %v2081
        %v3098 = vpack.c.b16 %v2090, %v2082
        %v3099 = vpack.c.b16 %v2091, %v2083
        %v3100 = vpack.c.b16 %v2092, %v2084
        %v3101 = vpack.c.b16 %v2093, %v2085
        %v3102 = vpack.c.b16 %v2094, %v2086
        %v3103 = vpack.c.b16 %v2095, %v2087
        %v3104 = vpack.c.b16 %v2104, %v2096
        %v3105 = vpack.c.b16 %v2105, %v2097
        %v3106 = vpack.c.b16 %v2106, %v2098
        %v3107 = vpack.c.b16 %v2107, %v2099
        %v3108 = vpack.c.b16 %v2108, %v2100
        %v3109 = vpack.c.b16 %v2109, %v2101
        %v3110 = vpack.c.b16 %v2110, %v2102
        %v3111 = vpack.c.b16 %v2111, %v2103
        %v3112 = vpack.c.b16 %v2120, %v2112
        %v3113 = vpack.c.b16 %v2121, %v2113
        %v3114 = vpack.c.b16 %v2122, %v2114
        %v3115 = vpack.c.b16 %v2123, %v2115
        %v3116 = vpack.c.b16 %v2124, %v2116
        %v3117 = vpack.c.b16 %v2125, %v2117
        %v3118 = vpack.c.b16 %v2126, %v2118
        %v3119 = vpack.c.b16 %v2127, %v2119
        %v3120 = vpack.c.b16 %v2136, %v2128
        %v3121 = vpack.c.b16 %v2137, %v2129
        %v3122 = vpack.c.b16 %v2138, %v2130
        %v3123 = vpack.c.b16 %v2139, %v2131
        %v3124 = vpack.c.b16 %v2140, %v2132
        %v3125 = vpack.c.b16 %v2141, %v2133
        %v3126 = vpack.c.b16 %v2142, %v2134
        %v3127 = vpack.c.b16 %v2143, %v2135
        %v3128 = vpack.c.b16 %v2152, %v2144
        %v3129 = vpack.c.b16 %v2153, %v2145
        %v3130 = vpack.c.b16 %v2154, %v2146
        %v3131 = vpack.c.b16 %v2155, %v2147
        %v3132 = vpack.c.b16 %v2156, %v2148
        %v3133 = vpack.c.b16 %v2157, %v2149
        %v3134 = vpack.c.b16 %v2158, %v2150
        %v3135 = vpack.c.b16 %v2159, %v2151
        %v3136 = vpack.c.b16 %v2168, %v2160
        %v3137 = vpack.c.b16 %v2169, %v2161
        %v3138 = vpack.c.b16 %v2170, %v2162
        %v3139 = vpack.c.b16 %v2171, %v2163
        %v3140 = vpack.c.b16 %v2172, %v2164
        %v3141 = vpack.c.b16 %v2173, %v2165
        %v3142 = vpack.c.b16 %v2174, %v2166
        %v3143 = vpack.c.b16 %v2175, %v2167
        %v3144 = vpack.c.b16 %v2184, %v2176
        %v3145 = vpack.c.b16 %v2185, %v2177
        %v3146 = vpack.c.b16 %v2186, %v2178
        %v3147 = vpack.c.b16 %v2187, %v2179
        %v3148 = vpack.c.b16 %v2188, %v2180
        %v3149 = vpack.c.b16 %v2189, %v2181
        %v3150 = vpack.c.b16 %v2190, %v2182
        %v3151 = vpack.c.b16 %v2191, %v2183
        %v3152 = vpack.c.b16 %v2200, %v2192
        %v3153 = vpack.c.b16 %v2201, %v2193
        %v3154 = vpack.c.b16 %v2202, %v2194
        %v3155 = vpack.c.b16 %v2203, %v2195
        %v3156 = vpack.c.b16 %v2204, %v2196
        %v3157 = vpack.c.b16 %v2205, %v2197
        %v3158 = vpack.c.b16 %v2206, %v2198
        %v3159 = vpack.c.b16 %v2207, %v2199
        %v3160 = vpack.c.b16 %v2216, %v2208
        %v3161 = vpack.c.b16 %v2217, %v2209
        %v3162 = vpack.c.b16 %v2218, %v2210
        %v3163 = vpack.c.b16 %v2219, %v2211
        %v3164 = vpack.c.b16 %v2220, %v2212
        %v3165 = vpack.c.b16 %v2221, %v2213
        %v3166 = vpack.c.b16 %v2222, %v2214
        %v3167 = vpack.c.b16 %v2223, %v2215
        %v3168 = vpack.c.b16 %v2232, %v2224
        %v3169 = vpack.c.b16 %v2233, %v2225
        %v3170 = vpack.c.b16 %v2234, %v2226
        %v3171 = vpack.c.b16 %v2235, %v2227
        %v3172 = vpack.c.b16 %v2236, %v2228
        %v3173 = vpack.c.b16 %v2237, %v2229
        %v3174 = vpack.c.b16 %v2238, %v2230
        %v3175 = vpack.c.b16 %v2239, %v2231
        %v3176 = vpack.c.b16 %v2248, %v2240
        %v3177 = vpack.c.b16 %v2249, %v2241
        %v3178 = vpack.c.b16 %v2250, %v2242
        %v3179 = vpack.c.b16 %v2251, %v2243
        %v3180 = vpack.c.b16 %v2252, %v2244
        %v3181 = vpack.c.b16 %v2253, %v2245
        %v3182 = vpack.c.b16 %v2254, %v2246
        %v3183 = vpack.c.b16 %v2255, %v2247
        %v3184 = vpack.c.b16 %v2264, %v2256
        %v3185 = vpack.c.b16 %v2265, %v2257
        %v3186 = vpack.c.b16 %v2266, %v2258
        %v3187 = vpack.c.b16 %v2267, %v2259
        %v3188 = vpack.c.b16 %v2268, %v2260
        %v3189 = vpack.c.b16 %v2269, %v2261
        %v3190 = vpack.c.b16 %v2270, %v2262
        %v3191 = vpack.c.b16 %v2271, %v2263
        %v3192 = vpack.c.b16 %v2280, %v2272
        %v3193 = vpack.c.b16 %v2281, %v2273
        %v3194 = vpack.c.b16 %v2282, %v2274
        %v3195 = vpack.c.b16 %v2283, %v2275
        %v3196 = vpack.c.b16 %v2284, %v2276
        %v3197 = vpack.c.b16 %v2285, %v2277
        %v3198 = vpack.c.b16 %v2286, %v2278
        %v3199 = vpack.c.b16 %v2287, %v2279
        %v3200 = vpack.c.b16 %v2296, %v2288
        %v3201 = vpack.c.b16 %v2297, %v2289
        %v3202 = vpack.c.b16 %v2298, %v2290
        %v3203 = vpack.c.b16 %v2299, %v2291
        %v3204 = vpack.c.b16 %v2300, %v2292
        %v3205 = vpack.c.b16 %v2301, %v2293
        %v3206 = vpack.c.b16 %v2302, %v2294
        %v3207 = vpack.c.b16 %v2303, %v2295
        %v3208 = vpack.c.b16 %v2312, %v2304
        %v3209 = vpack.c.b16 %v2313, %v2305
        %v3210 = vpack.c.b16 %v2314, %v2306
        %v3211 = vpack.c.b16 %v2315, %v2307
        %v3212 = vpack.c.b16 %v2316, %v2308
        %v3213 = vpack.c.b16 %v2317, %v2309
        %v3214 = vpack.c.b16 %v2318, %v2310
        %v3215 = vpack.c.b16 %v2319, %v2311
        %v3216 = vpack.c.b16 %v2328, %v2320
        %v3217 = vpack.c.b16 %v2329, %v2321
        %v3218 = vpack.c.b16 %v2330, %v2322
        %v3219 = vpack.c.b16 %v2331, %v2323
        %v3220 = vpack.c.b16 %v2332, %v2324
        %v3221 = vpack.c.b16 %v2333, %v2325
        %v3222 = vpack.c.b16 %v2334, %v2326
        %v3223 = vpack.c.b16 %v2335, %v2327
        %v3224 = vpack.c.b16 %v2344, %v2336
        %v3225 = vpack.c.b16 %v2345, %v2337
        %v3226 = vpack.c.b16 %v2346, %v2338
        %v3227 = vpack.c.b16 %v2347, %v2339
        %v3228 = vpack.c.b16 %v2348, %v2340
        %v3229 = vpack.c.b16 %v2349, %v2341
        %v3230 = vpack.c.b16 %v2350, %v2342
        %v3231 = vpack.c.b16 %v2351, %v2343
        %v3232 = vpack.c.b16 %v2360, %v2352
        %v3233 = vpack.c.b16 %v2361, %v2353
        %v3234 = vpack.c.b16 %v2362, %v2354
        %v3235 = vpack.c.b16 %v2363, %v2355
        %v3236 = vpack.c.b16 %v2364, %v2356
        %v3237 = vpack.c.b16 %v2365, %v2357
        %v3238 = vpack.c.b16 %v2366, %v2358
        %v3239 = vpack.c.b16 %v2367, %v2359
        %v3240 = vpack.c.b16 %v2376, %v2368
        %v3241 = vpack.c.b16 %v2377, %v2369
        %v3242 = vpack.c.b16 %v2378, %v2370
        %v3243 = vpack.c.b16 %v2379, %v2371
        %v3244 = vpack.c.b16 %v2380, %v2372
        %v3245 = vpack.c.b16 %v2381, %v2373
        %v3246 = vpack.c.b16 %v2382, %v2374
        %v3247 = vpack.c.b16 %v2383, %v2375
        %v3248 = vpack.c.b16 %v2392, %v2384
        %v3249 = vpack.c.b16 %v2393, %v2385
        %v3250 = vpack.c.b16 %v2394, %v2386
        %v3251 = vpack.c.b16 %v2395, %v2387
        %v3252 = vpack.c.b16 %v2396, %v2388
        %v3253 = vpack.c.b16 %v2397, %v2389
        %v3254 = vpack.c.b16 %v2398, %v2390
        %v3255 = vpack.c.b16 %v2399, %v2391
        %v3256 = vpack.c.b16 %v2408, %v2400
        %v3257 = vpack.c.b16 %v2409, %v2401
        %v3258 = vpack.c.b16 %v2410, %v2402
        %v3259 = vpack.c.b16 %v2411, %v2403
        %v3260 = vpack.c.b16 %v2412, %v2404
        %v3261 = vpack.c.b16 %v2413, %v2405
        %v3262 = vpack.c.b16 %v2414, %v2406
        %v3263 = vpack.c.b16 %v2415, %v2407
        %v3264 = vpack.c.b16 %v2424, %v2416
        %v3265 = vpack.c.b16 %v2425, %v2417
        %v3266 = vpack.c.b16 %v2426, %v2418
        %v3267 = vpack.c.b16 %v2427, %v2419
        %v3268 = vpack.c.b16 %v2428, %v2420
        %v3269 = vpack.c.b16 %v2429, %v2421
        %v3270 = vpack.c.b16 %v2430, %v2422
        %v3271 = vpack.c.b16 %v2431, %v2423
        %v3272 = vpack.c.b16 %v2440, %v2432
        %v3273 = vpack.c.b16 %v2441, %v2433
        %v3274 = vpack.c.b16 %v2442, %v2434
        %v3275 = vpack.c.b16 %v2443, %v2435
        %v3276 = vpack.c.b16 %v2444, %v2436
        %v3277 = vpack.c.b16 %v2445, %v2437
        %v3278 = vpack.c.b16 %v2446, %v2438
        %v3279 = vpack.c.b16 %v2447, %v2439
        %v3280 = vpack.c.b16 %v2456, %v2448
        %v3281 = vpack.c.b16 %v2457, %v2449
        %v3282 = vpack.c.b16 %v2458, %v2450
        %v3283 = vpack.c.b16 %v2459, %v2451
        %v3284 = vpack.c.b16 %v2460, %v2452
        %v3285 = vpack.c.b16 %v2461, %v2453
        %v3286 = vpack.c.b16 %v2462, %v2454
        %v3287 = vpack.c.b16 %v2463, %v2455
        %v3288 = vpack.c.b16 %v2472, %v2464
        %v3289 = vpack.c.b16 %v2473, %v2465
        %v3290 = vpack.c.b16 %v2474, %v2466
        %v3291 = vpack.c.b16 %v2475, %v2467
        %v3292 = vpack.c.b16 %v2476, %v2468
        %v3293 = vpack.c.b16 %v2477, %v2469
        %v3294 = vpack.c.b16 %v2478, %v2470
        %v3295 = vpack.c.b16 %v2479, %v2471
        %v3296 = vpack.c.b16 %v2488, %v2480
        %v3297 = vpack.c.b16 %v2489, %v2481
        %v3298 = vpack.c.b16 %v2490, %v2482
        %v3299 = vpack.c.b16 %v2491, %v2483
        %v3300 = vpack.c.b16 %v2492, %v2484
        %v3301 = vpack.c.b16 %v2493, %v2485
        %v3302 = vpack.c.b16 %v2494, %v2486
        %v3303 = vpack.c.b16 %v2495, %v2487
        %v3304 = vpack.c.b16 %v2504, %v2496
        %v3305 = vpack.c.b16 %v2505, %v2497
        %v3306 = vpack.c.b16 %v2506, %v2498
        %v3307 = vpack.c.b16 %v2507, %v2499
        %v3308 = vpack.c.b16 %v2508, %v2500
        %v3309 = vpack.c.b16 %v2509, %v2501
        %v3310 = vpack.c.b16 %v2510, %v2502
        %v3311 = vpack.c.b16 %v2511, %v2503
        %v3312 = vpack.c.b16 %v2520, %v2512
        %v3313 = vpack.c.b16 %v2521, %v2513
        %v3314 = vpack.c.b16 %v2522, %v2514
        %v3315 = vpack.c.b16 %v2523, %v2515
        %v3316 = vpack.c.b16 %v2524, %v2516
        %v3317 = vpack.c.b16 %v2525, %v2517
        %v3318 = vpack.c.b16 %v2526, %v2518
        %v3319 = vpack.c.b16 %v2527, %v2519
        %v3320 = vpack.c.b16 %v2536, %v2528
        %v3321 = vpack.c.b16 %v2537, %v2529
        %v3322 = vpack.c.b16 %v2538, %v2530
        %v3323 = vpack.c.b16 %v2539, %v2531
        %v3324 = vpack.c.b16 %v2540, %v2532
        %v3325 = vpack.c.b16 %v2541, %v2533
        %v3326 = vpack.c.b16 %v2542, %v2534
        %v3327 = vpack.c.b16 %v2543, %v2535
        %v3328 = vpack.c.b16 %v2552, %v2544
        %v3329 = vpack.c.b16 %v2553, %v2545
        %v3330 = vpack.c.b16 %v2554, %v2546
        %v3331 = vpack.c.b16 %v2555, %v2547
        %v3332 = vpack.c.b16 %v2556, %v2548
        %v3333 = vpack.c.b16 %v2557, %v2549
        %v3334 = vpack.c.b16 %v2558, %v2550
        %v3335 = vpack.c.b16 %v2559, %v2551
        %v3336 = vpack.c.b16 %v2568, %v2560
        %v3337 = vpack.c.b16 %v2569, %v2561
        %v3338 = vpack.c.b16 %v2570, %v2562
        %v3339 = vpack.c.b16 %v2571, %v2563
        %v3340 = vpack.c.b16 %v2572, %v2564
        %v3341 = vpack.c.b16 %v2573, %v2565
        %v3342 = vpack.c.b16 %v2574, %v2566
        %v3343 = vpack.c.b16 %v2575, %v2567
        %v3344 = vpack.c.b16 %v2584, %v2576
        %v3345 = vpack.c.b16 %v2585, %v2577
        %v3346 = vpack.c.b16 %v2586, %v2578
        %v3347 = vpack.c.b16 %v2587, %v2579
        %v3348 = vpack.c.b16 %v2588, %v2580
        %v3349 = vpack.c.b16 %v2589, %v2581
        %v3350 = vpack.c.b16 %v2590, %v2582
        %v3351 = vpack.c.b16 %v2591, %v2583
        %v3352 = vpack.c.b16 %v2600, %v2592
        %v3353 = vpack.c.b16 %v2601, %v2593
        %v3354 = vpack.c.b16 %v2602, %v2594
        %v3355 = vpack.c.b16 %v2603, %v2595
        %v3356 = vpack.c.b16 %v2604, %v2596
        %v3357 = vpack.c.b16 %v2605, %v2597
        %v3358 = vpack.c.b16 %v2606, %v2598
        %v3359 = vpack.c.b16 %v2607, %v2599
        %v3360 = vpack.c.b16 %v2616, %v2608
        %v3361 = vpack.c.b16 %v2617, %v2609
        %v3362 = vpack.c.b16 %v2618, %v2610
        %v3363 = vpack.c.b16 %v2619, %v2611
        %v3364 = vpack.c.b16 %v2620, %v2612
        %v3365 = vpack.c.b16 %v2621, %v2613
        %v3366 = vpack.c.b16 %v2622, %v2614
        %v3367 = vpack.c.b16 %v2623, %v2615
        %v3368 = vpack.c.b16 %v2632, %v2624
        %v3369 = vpack.c.b16 %v2633, %v2625
        %v3370 = vpack.c.b16 %v2634, %v2626
        %v3371 = vpack.c.b16 %v2635, %v2627
        %v3372 = vpack.c.b16 %v2636, %v2628
        %v3373 = vpack.c.b16 %v2637, %v2629
        %v3374 = vpack.c.b16 %v2638, %v2630
        %v3375 = vpack.c.b16 %v2639, %v2631
        %v3376 = vpack.c.b16 %v2648, %v2640
        %v3377 = vpack.c.b16 %v2649, %v2641
        %v3378 = vpack.c.b16 %v2650, %v2642
        %v3379 = vpack.c.b16 %v2651, %v2643
        %v3380 = vpack.c.b16 %v2652, %v2644
        %v3381 = vpack.c.b16 %v2653, %v2645
        %v3382 = vpack.c.b16 %v2654, %v2646
        %v3383 = vpack.c.b16 %v2655, %v2647
        %v3384 = vpack.c.b16 %v2664, %v2656
        %v3385 = vpack.c.b16 %v2665, %v2657
        %v3386 = vpack.c.b16 %v2666, %v2658
        %v3387 = vpack.c.b16 %v2667, %v2659
        %v3388 = vpack.c.b16 %v2668, %v2660
        %v3389 = vpack.c.b16 %v2669, %v2661
        %v3390 = vpack.c.b16 %v2670, %v2662
        %v3391 = vpack.c.b16 %v2671, %v2663
        %v3392 = vpack.c.b16 %v2680, %v2672
        %v3393 = vpack.c.b16 %v2681, %v2673
        %v3394 = vpack.c.b16 %v2682, %v2674
        %v3395 = vpack.c.b16 %v2683, %v2675
        %v3396 = vpack.c.b16 %v2684, %v2676
        %v3397 = vpack.c.b16 %v2685, %v2677
        %v3398 = vpack.c.b16 %v2686, %v2678
        %v3399 = vpack.c.b16 %v2687, %v2679
        %v3400 = vpack.c.b16 %v2696, %v2688
        %v3401 = vpack.c.b16 %v2697, %v2689
        %v3402 = vpack.c.b16 %v2698, %v2690
        %v3403 = vpack.c.b16 %v2699, %v2691
        %v3404 = vpack.c.b16 %v2700, %v2692
        %v3405 = vpack.c.b16 %v2701, %v2693
        %v3406 = vpack.c.b16 %v2702, %v2694
        %v3407 = vpack.c.b16 %v2703, %v2695
        %v3408 = vpack.c.b16 %v2712, %v2704
        %v3409 = vpack.c.b16 %v2713, %v2705
        %v3410 = vpack.c.b16 %v2714, %v2706
        %v3411 = vpack.c.b16 %v2715, %v2707
        %v3412 = vpack.c.b16 %v2716, %v2708
        %v3413 = vpack.c.b16 %v2717, %v2709
        %v3414 = vpack.c.b16 %v2718, %v2710
        %v3415 = vpack.c.b16 %v2719, %v2711
        %v3416 = vpack.c.b16 %v2728, %v2720
        %v3417 = vpack.c.b16 %v2729, %v2721
        %v3418 = vpack.c.b16 %v2730, %v2722
        %v3419 = vpack.c.b16 %v2731, %v2723
        %v3420 = vpack.c.b16 %v2732, %v2724
        %v3421 = vpack.c.b16 %v2733, %v2725
        %v3422 = vpack.c.b16 %v2734, %v2726
        %v3423 = vpack.c.b16 %v2735, %v2727
        %v3424 = vpack.c.b16 %v2744, %v2736
        %v3425 = vpack.c.b16 %v2745, %v2737
        %v3426 = vpack.c.b16 %v2746, %v2738
        %v3427 = vpack.c.b16 %v2747, %v2739
        %v3428 = vpack.c.b16 %v2748, %v2740
        %v3429 = vpack.c.b16 %v2749, %v2741
        %v3430 = vpack.c.b16 %v2750, %v2742
        %v3431 = vpack.c.b16 %v2751, %v2743
        %v3432 = vpack.c.b16 %v2760, %v2752
        %v3433 = vpack.c.b16 %v2761, %v2753
        %v3434 = vpack.c.b16 %v2762, %v2754
        %v3435 = vpack.c.b16 %v2763, %v2755
        %v3436 = vpack.c.b16 %v2764, %v2756
        %v3437 = vpack.c.b16 %v2765, %v2757
        %v3438 = vpack.c.b16 %v2766, %v2758
        %v3439 = vpack.c.b16 %v2767, %v2759
        %v3440 = vpack.c.b16 %v2776, %v2768
        %v3441 = vpack.c.b16 %v2777, %v2769
        %v3442 = vpack.c.b16 %v2778, %v2770
        %v3443 = vpack.c.b16 %v2779, %v2771
        %v3444 = vpack.c.b16 %v2780, %v2772
        %v3445 = vpack.c.b16 %v2781, %v2773
        %v3446 = vpack.c.b16 %v2782, %v2774
        %v3447 = vpack.c.b16 %v2783, %v2775
        %v3448 = vpack.c.b16 %v2792, %v2784
        %v3449 = vpack.c.b16 %v2793, %v2785
        %v3450 = vpack.c.b16 %v2794, %v2786
        %v3451 = vpack.c.b16 %v2795, %v2787
        %v3452 = vpack.c.b16 %v2796, %v2788
        %v3453 = vpack.c.b16 %v2797, %v2789
        %v3454 = vpack.c.b16 %v2798, %v2790
        %v3455 = vpack.c.b16 %v2799, %v2791
        %v3456 = vpack.c.b16 %v2808, %v2800
        %v3457 = vpack.c.b16 %v2809, %v2801
        %v3458 = vpack.c.b16 %v2810, %v2802
        %v3459 = vpack.c.b16 %v2811, %v2803
        %v3460 = vpack.c.b16 %v2812, %v2804
        %v3461 = vpack.c.b16 %v2813, %v2805
        %v3462 = vpack.c.b16 %v2814, %v2806
        %v3463 = vpack.c.b16 %v2815, %v2807
        %v3464 = vpack.c.b16 %v2824, %v2816
        %v3465 = vpack.c.b16 %v2825, %v2817
        %v3466 = vpack.c.b16 %v2826, %v2818
        %v3467 = vpack.c.b16 %v2827, %v2819
        %v3468 = vpack.c.b16 %v2828, %v2820
        %v3469 = vpack.c.b16 %v2829, %v2821
        %v3470 = vpack.c.b16 %v2830, %v2822
        %v3471 = vpack.c.b16 %v2831, %v2823
        %v3472 = vpack.c.b16 %v2840, %v2832
        %v3473 = vpack.c.b16 %v2841, %v2833
        %v3474 = vpack.c.b16 %v2842, %v2834
        %v3475 = vpack.c.b16 %v2843, %v2835
        %v3476 = vpack.c.b16 %v2844, %v2836
        %v3477 = vpack.c.b16 %v2845, %v2837
        %v3478 = vpack.c.b16 %v2846, %v2838
        %v3479 = vpack.c.b16 %v2847, %v2839
        %v3480 = vpack.c.b16 %v2856, %v2848
        %v3481 = vpack.c.b16 %v2857, %v2849
        %v3482 = vpack.c.b16 %v2858, %v2850
        %v3483 = vpack.c.b16 %v2859, %v2851
        %v3484 = vpack.c.b16 %v2860, %v2852
        %v3485 = vpack.c.b16 %v2861, %v2853
        %v3486 = vpack.c.b16 %v2862, %v2854
        %v3487 = vpack.c.b16 %v2863, %v2855
        %v3488 = vpack.c.b16 %v2872, %v2864
        %v3489 = vpack.c.b16 %v2873, %v2865
        %v3490 = vpack.c.b16 %v2874, %v2866
        %v3491 = vpack.c.b16 %v2875, %v2867
        %v3492 = vpack.c.b16 %v2876, %v2868
        %v3493 = vpack.c.b16 %v2877, %v2869
        %v3494 = vpack.c.b16 %v2878, %v2870
        %v3495 = vpack.c.b16 %v2879, %v2871
        %v3496 = vpack.c.b16 %v2888, %v2880
        %v3497 = vpack.c.b16 %v2889, %v2881
        %v3498 = vpack.c.b16 %v2890, %v2882
        %v3499 = vpack.c.b16 %v2891, %v2883
        %v3500 = vpack.c.b16 %v2892, %v2884
        %v3501 = vpack.c.b16 %v2893, %v2885
        %v3502 = vpack.c.b16 %v2894, %v2886
        %v3503 = vpack.c.b16 %v2895, %v2887
        %v3504 = vpack.c.b16 %v2904, %v2896
        %v3505 = vpack.c.b16 %v2905, %v2897
        %v3506 = vpack.c.b16 %v2906, %v2898
        %v3507 = vpack.c.b16 %v2907, %v2899
        %v3508 = vpack.c.b16 %v2908, %v2900
        %v3509 = vpack.c.b16 %v2909, %v2901
        %v3510 = vpack.c.b16 %v2910, %v2902
        %v3511 = vpack.c.b16 %v2911, %v2903
        %v3512 = vpack.c.b16 %v2920, %v2912
        %v3513 = vpack.c.b16 %v2921, %v2913
        %v3514 = vpack.c.b16 %v2922, %v2914
        %v3515 = vpack.c.b16 %v2923, %v2915
        %v3516 = vpack.c.b16 %v2924, %v2916
        %v3517 = vpack.c.b16 %v2925, %v2917
        %v3518 = vpack.c.b16 %v2926, %v2918
        %v3519 = vpack.c.b16 %v2927, %v2919
        %v3520 = vpack.c.b16 %v2936, %v2928
        %v3521 = vpack.c.b16 %v2937, %v2929
        %v3522 = vpack.c.b16 %v2938, %v2930
        %v3523 = vpack.c.b16 %v2939, %v2931
        %v3524 = vpack.c.b16 %v2940, %v2932
        %v3525 = vpack.c.b16 %v2941, %v2933
        %v3526 = vpack.c.b16 %v2942, %v2934
        %v3527 = vpack.c.b16 %v2943, %v2935
        %v3528 = vpack.c.b16 %v2952, %v2944
        %v3529 = vpack.c.b16 %v2953, %v2945
        %v3530 = vpack.c.b16 %v2954, %v2946
        %v3531 = vpack.c.b16 %v2955, %v2947
        %v3532 = vpack.c.b16 %v2956, %v2948
        %v3533 = vpack.c.b16 %v2957, %v2949
        %v3534 = vpack.c.b16 %v2958, %v2950
        %v3535 = vpack.c.b16 %v2959, %v2951
        %v3536 = vpack.c.b16 %v2968, %v2960
        %v3537 = vpack.c.b16 %v2969, %v2961
        %v3538 = vpack.c.b16 %v2970, %v2962
        %v3539 = vpack.c.b16 %v2971, %v2963
        %v3540 = vpack.c.b16 %v2972, %v2964
        %v3541 = vpack.c.b16 %v2973, %v2965
        %v3542 = vpack.c.b16 %v2974, %v2966
        %v3543 = vpack.c.b16 %v2975, %v2967
        %v3544 = vpack.c.b16 %v2984, %v2976
        %v3545 = vpack.c.b16 %v2985, %v2977
        %v3546 = vpack.c.b16 %v2986, %v2978
        %v3547 = vpack.c.b16 %v2987, %v2979
        %v3548 = vpack.c.b16 %v2988, %v2980
        %v3549 = vpack.c.b16 %v2989, %v2981
        %v3550 = vpack.c.b16 %v2990, %v2982
        %v3551 = vpack.c.b16 %v2991, %v2983
        %v3552 = vpack.c.b16 %v3000, %v2992
        %v3553 = vpack.c.b16 %v3001, %v2993
        %v3554 = vpack.c.b16 %v3002, %v2994
        %v3555 = vpack.c.b16 %v3003, %v2995
        %v3556 = vpack.c.b16 %v3004, %v2996
        %v3557 = vpack.c.b16 %v3005, %v2997
        %v3558 = vpack.c.b16 %v3006, %v2998
        %v3559 = vpack.c.b16 %v3007, %v2999
        %v3560 = vpack.c.b16 %v3016, %v3008
        %v3561 = vpack.c.b16 %v3017, %v3009
        %v3562 = vpack.c.b16 %v3018, %v3010
        %v3563 = vpack.c.b16 %v3019, %v3011
        %v3564 = vpack.c.b16 %v3020, %v3012
        %v3565 = vpack.c.b16 %v3021, %v3013
        %v3566 = vpack.c.b16 %v3022, %v3014
        %v3567 = vpack.c.b16 %v3023, %v3015
        %v3568 = vpack.c.b16 %v3032, %v3024
        %v3569 = vpack.c.b16 %v3033, %v3025
        %v3570 = vpack.c.b16 %v3034, %v3026
        %v3571 = vpack.c.b16 %v3035, %v3027
        %v3572 = vpack.c.b16 %v3036, %v3028
        %v3573 = vpack.c.b16 %v3037, %v3029
        %v3574 = vpack.c.b16 %v3038, %v3030
        %v3575 = vpack.c.b16 %v3039, %v3031
        %v3576 = vpack.c.b16 %v3048, %v3040
        %v3577 = vpack.c.b16 %v3049, %v3041
        %v3578 = vpack.c.b16 %v3050, %v3042
        %v3579 = vpack.c.b16 %v3051, %v3043
        %v3580 = vpack.c.b16 %v3052, %v3044
        %v3581 = vpack.c.b16 %v3053, %v3045
        %v3582 = vpack.c.b16 %v3054, %v3046
        %v3583 = vpack.c.b16 %v3055, %v3047
        %v3584 = vpack.c.b16 %v3064, %v3056
        %v3585 = vpack.c.b16 %v3065, %v3057
        %v3586 = vpack.c.b16 %v3066, %v3058
        %v3587 = vpack.c.b16 %v3067, %v3059
        %v3588 = vpack.c.b16 %v3068, %v3060
        %v3589 = vpack.c.b16 %v3069, %v3061
        %v3590 = vpack.c.b16 %v3070, %v3062
        %v3591 = vpack.c.b16 %v3071, %v3063
        %v3592 = vpack.c.b16 %v3080, %v3072
        %v3593 = vpack.c.b16 %v3081, %v3073
        %v3594 = vpack.c.b16 %v3082, %v3074
        %v3595 = vpack.c.b16 %v3083, %v3075
        %v3596 = vpack.c.b16 %v3084, %v3076
        %v3597 = vpack.c.b16 %v3085, %v3077
        %v3598 = vpack.c.b16 %v3086, %v3078
        %v3599 = vpack.c.b16 %v3087, %v3079
        %4112 = vmatprep.subr.bf16.mxu0 %v3089
        %4113 = vmatpush1.bf16.msra.mxu0 %v3088
        %4114 = vmatprep.subr.bf16.mxu0 %v3097
        %4115 = vmatpush1.bf16.msra.mxu0 %v3096
        %4116 = vmatprep.subr.bf16.mxu0 %v3105
        %4117 = vmatpush1.bf16.msra.mxu0 %v3104
        %4118 = vmatprep.subr.bf16.mxu0 %v3113
        %4119 = vmatpush1.bf16.msra.mxu0 %v3112
        %4120 = vmatprep.subr.bf16.mxu0 %v3121
        %4121 = vmatpush1.bf16.msra.mxu0 %v3120
        %4122 = vmatprep.subr.bf16.mxu0 %v3129
        %4123 = vmatpush1.bf16.msra.mxu0 %v3128
        %4124 = vmatprep.subr.bf16.mxu0 %v3137
        %4125 = vmatpush1.bf16.msra.mxu0 %v3136
        %4126 = vmatprep.subr.bf16.mxu0 %v3145
        %4127 = vmatpush1.bf16.msra.mxu0 %v3144
        %4128 = vmatprep.subr.bf16.mxu0 %v3153
        %4129 = vmatpush1.bf16.msra.mxu0 %v3152
        %4130 = vmatprep.subr.bf16.mxu0 %v3161
        %4131 = vmatpush1.bf16.msra.mxu0 %v3160
        %4132 = vmatprep.subr.bf16.mxu0 %v3169
        %4133 = vmatpush1.bf16.msra.mxu0 %v3168
        %4134 = vmatprep.subr.bf16.mxu0 %v3177
        %4135 = vmatpush1.bf16.msra.mxu0 %v3176
        %4136 = vmatprep.subr.bf16.mxu0 %v3185
        %4137 = vmatpush1.bf16.msra.mxu0 %v3184
        %4138 = vmatprep.subr.bf16.mxu0 %v3193
        %4139 = vmatpush1.bf16.msra.mxu0 %v3192
        %4140 = vmatprep.subr.bf16.mxu0 %v3201
        %4141 = vmatpush1.bf16.msra.mxu0 %v3200
        %4142 = vmatprep.subr.bf16.mxu0 %v3209
        %4143 = vmatpush1.bf16.msra.mxu0 %v3208
        %4144 = vmatprep.mubr.bf16.mxu0 %v991
        %4145 = vmatmul.mubr.bf16.gmra.mrb[0].mxu0 %v990
        %v4146 = vpop.f32.mrb[0].mxu0
        %v4147 = vadd.f32 %v1515, %v4146
        %v4148 = vpop.f32.mrb[0].mxu0
        %v4149 = vadd.f32 %v1519, %v4148
        %v4150 = vpop.f32.mrb[0].mxu0
        %v4151 = vpop.f32.mrb[0].mxu0
        %4152 = vdwg.mxu0
        %4153 = vmatprep.subr.bf16.mxu0 %v3217
        %4154 = vmatpush1.bf16.msra.mxu0 %v3216
        %4155 = vmatprep.subr.bf16.mxu0 %v3225
        %4156 = vmatpush1.bf16.msra.mxu0 %v3224
        %4157 = vmatprep.subr.bf16.mxu0 %v3233
        %4158 = vmatpush1.bf16.msra.mxu0 %v3232
        %4159 = vmatprep.subr.bf16.mxu0 %v3241
        %4160 = vmatpush1.bf16.msra.mxu0 %v3240
        %4161 = vmatprep.subr.bf16.mxu0 %v3249
        %4162 = vmatpush1.bf16.msra.mxu0 %v3248
        %4163 = vmatprep.subr.bf16.mxu0 %v3257
        %4164 = vmatpush1.bf16.msra.mxu0 %v3256
        %4165 = vmatprep.subr.bf16.mxu0 %v3265
        %4166 = vmatpush1.bf16.msra.mxu0 %v3264
        %4167 = vmatprep.subr.bf16.mxu0 %v3273
        %4168 = vmatpush1.bf16.msra.mxu0 %v3272
        %4169 = vmatprep.subr.bf16.mxu0 %v3281
        %4170 = vmatpush1.bf16.msra.mxu0 %v3280
        %4171 = vmatprep.subr.bf16.mxu0 %v3289
        %4172 = vmatpush1.bf16.msra.mxu0 %v3288
        %4173 = vmatprep.subr.bf16.mxu0 %v3297
        %4174 = vmatpush1.bf16.msra.mxu0 %v3296
        %4175 = vmatprep.subr.bf16.mxu0 %v3305
        %4176 = vmatpush1.bf16.msra.mxu0 %v3304
        %4177 = vmatprep.subr.bf16.mxu0 %v3313
        %4178 = vmatpush1.bf16.msra.mxu0 %v3312
        %4179 = vmatprep.subr.bf16.mxu0 %v3321
        %4180 = vmatpush1.bf16.msra.mxu0 %v3320
        %4181 = vmatprep.subr.bf16.mxu0 %v3329
        %4182 = vmatpush1.bf16.msra.mxu0 %v3328
        %4183 = vmatprep.subr.bf16.mxu0 %v3337
        %4184 = vmatpush1.bf16.msra.mxu0 %v3336
        %4185 = vmatprep.mubr.bf16.mxu0 %v993
        %4186 = vmatmul.mubr.bf16.gmra.mrb[0].mxu0 %v992
        %v4187 = vpop.f32.mrb[0].mxu0
        %v4188 = vadd.f32 %v4147, %v4187
        %v4189 = vpop.f32.mrb[0].mxu0
        %v4190 = vadd.f32 %v4149, %v4189
        %v4191 = vpop.f32.mrb[0].mxu0
        %v4192 = vpop.f32.mrb[0].mxu0
        %4193 = vdwg.mxu0
        %4194 = vmatprep.subr.bf16.mxu0 %v3345
        %4195 = vmatpush1.bf16.msra.mxu0 %v3344
        %4196 = vmatprep.subr.bf16.mxu0 %v3353
        %4197 = vmatpush1.bf16.msra.mxu0 %v3352
        %4198 = vmatprep.subr.bf16.mxu0 %v3361
        %4199 = vmatpush1.bf16.msra.mxu0 %v3360
        %4200 = vmatprep.subr.bf16.mxu0 %v3369
        %4201 = vmatpush1.bf16.msra.mxu0 %v3368
        %4202 = vmatprep.subr.bf16.mxu0 %v3377
        %4203 = vmatpush1.bf16.msra.mxu0 %v3376
        %4204 = vmatprep.subr.bf16.mxu0 %v3385
        %4205 = vmatpush1.bf16.msra.mxu0 %v3384
        %4206 = vmatprep.subr.bf16.mxu0 %v3393
        %4207 = vmatpush1.bf16.msra.mxu0 %v3392
        %4208 = vmatprep.subr.bf16.mxu0 %v3401
        %4209 = vmatpush1.bf16.msra.mxu0 %v3400
        %4210 = vmatprep.subr.bf16.mxu0 %v3409
        %4211 = vmatpush1.bf16.msra.mxu0 %v3408
        %4212 = vmatprep.subr.bf16.mxu0 %v3417
        %4213 = vmatpush1.bf16.msra.mxu0 %v3416
        %4214 = vmatprep.subr.bf16.mxu0 %v3425
        %4215 = vmatpush1.bf16.msra.mxu0 %v3424
        %4216 = vmatprep.subr.bf16.mxu0 %v3433
        %4217 = vmatpush1.bf16.msra.mxu0 %v3432
        %4218 = vmatprep.subr.bf16.mxu0 %v3441
        %4219 = vmatpush1.bf16.msra.mxu0 %v3440
        %4220 = vmatprep.subr.bf16.mxu0 %v3449
        %4221 = vmatpush1.bf16.msra.mxu0 %v3448
        %4222 = vmatprep.subr.bf16.mxu0 %v3457
        %4223 = vmatpush1.bf16.msra.mxu0 %v3456
        %4224 = vmatprep.subr.bf16.mxu0 %v3465
        %4225 = vmatpush1.bf16.msra.mxu0 %v3464
        %4226 = vmatprep.mubr.bf16.mxu0 %v995
        %4227 = vmatmul.mubr.bf16.gmra.mrb[0].mxu0 %v994
        %v4228 = vpop.f32.mrb[0].mxu0
        %v4229 = vadd.f32 %v4188, %v4228
        %v4230 = vpop.f32.mrb[0].mxu0
        %v4231 = vadd.f32 %v4190, %v4230
        %v4232 = vpop.f32.mrb[0].mxu0
        %v4233 = vpop.f32.mrb[0].mxu0
        %4234 = vdwg.mxu0
        %4235 = vmatprep.subr.bf16.mxu0 %v3473
        %4236 = vmatpush1.bf16.msra.mxu0 %v3472
        %4237 = vmatprep.subr.bf16.mxu0 %v3481
        %4238 = vmatpush1.bf16.msra.mxu0 %v3480
        %4239 = vmatprep.subr.bf16.mxu0 %v3489
        %4240 = vmatpush1.bf16.msra.mxu0 %v3488
        %4241 = vmatprep.subr.bf16.mxu0 %v3497
        %4242 = vmatpush1.bf16.msra.mxu0 %v3496
        %4243 = vmatprep.subr.bf16.mxu0 %v3505
        %4244 = vmatpush1.bf16.msra.mxu0 %v3504
        %4245 = vmatprep.subr.bf16.mxu0 %v3513
        %4246 = vmatpush1.bf16.msra.mxu0 %v3512
        %4247 = vmatprep.subr.bf16.mxu0 %v3521
        %4248 = vmatpush1.bf16.msra.mxu0 %v3520
        %4249 = vmatprep.subr.bf16.mxu0 %v3529
        %4250 = vmatpush1.bf16.msra.mxu0 %v3528
        %4251 = vmatprep.subr.bf16.mxu0 %v3537
        %4252 = vmatpush1.bf16.msra.mxu0 %v3536
        %4253 = vmatprep.subr.bf16.mxu0 %v3545
        %4254 = vmatpush1.bf16.msra.mxu0 %v3544
        %4255 = vmatprep.subr.bf16.mxu0 %v3553
        %4256 = vmatpush1.bf16.msra.mxu0 %v3552
        %4257 = vmatprep.subr.bf16.mxu0 %v3561
        %4258 = vmatpush1.bf16.msra.mxu0 %v3560
        %4259 = vmatprep.subr.bf16.mxu0 %v3569
        %4260 = vmatpush1.bf16.msra.mxu0 %v3568
        %4261 = vmatprep.subr.bf16.mxu0 %v3577
        %4262 = vmatpush1.bf16.msra.mxu0 %v3576
        %4263 = vmatprep.subr.bf16.mxu0 %v3585
        %4264 = vmatpush1.bf16.msra.mxu0 %v3584
        %4265 = vmatprep.subr.bf16.mxu0 %v3593
        %4266 = vmatpush1.bf16.msra.mxu0 %v3592
        %4267 = vmatprep.mubr.bf16.mxu0 %v997
        %4268 = vmatmul.mubr.bf16.gmra.mrb[0].mxu0 %v996
        %v4269 = vpop.f32.mrb[0].mxu0
        %v4270 = vadd.f32 %v4229, %v4269
        %v4271 = vpop.f32.mrb[0].mxu0
        %v4272 = vadd.f32 %v4231, %v4271
        %v4273 = vpop.f32.mrb[0].mxu0
        %v4274 = vpop.f32.mrb[0].mxu0
        %4275 = vdwg.mxu0
        %4276 = vmatprep.subr.bf16.mxu0 %v3091
        %4277 = vmatpush1.bf16.msra.mxu0 %v3090
        %4278 = vmatprep.subr.bf16.mxu0 %v3099
        %4279 = vmatpush1.bf16.msra.mxu0 %v3098
        %4280 = vmatprep.subr.bf16.mxu0 %v3107
        %4281 = vmatpush1.bf16.msra.mxu0 %v3106
        %4282 = vmatprep.subr.bf16.mxu0 %v3115
        %4283 = vmatpush1.bf16.msra.mxu0 %v3114
        %4284 = vmatprep.subr.bf16.mxu0 %v3123
        %4285 = vmatpush1.bf16.msra.mxu0 %v3122
        %4286 = vmatprep.subr.bf16.mxu0 %v3131
        %4287 = vmatpush1.bf16.msra.mxu0 %v3130
        %4288 = vmatprep.subr.bf16.mxu0 %v3139
        %4289 = vmatpush1.bf16.msra.mxu0 %v3138
        %4290 = vmatprep.subr.bf16.mxu0 %v3147
        %4291 = vmatpush1.bf16.msra.mxu0 %v3146
        %4292 = vmatprep.subr.bf16.mxu0 %v3155
        %4293 = vmatpush1.bf16.msra.mxu0 %v3154
        %4294 = vmatprep.subr.bf16.mxu0 %v3163
        %4295 = vmatpush1.bf16.msra.mxu0 %v3162
        %4296 = vmatprep.subr.bf16.mxu0 %v3171
        %4297 = vmatpush1.bf16.msra.mxu0 %v3170
        %4298 = vmatprep.subr.bf16.mxu0 %v3179
        %4299 = vmatpush1.bf16.msra.mxu0 %v3178
        %4300 = vmatprep.subr.bf16.mxu0 %v3187
        %4301 = vmatpush1.bf16.msra.mxu0 %v3186
        %4302 = vmatprep.subr.bf16.mxu0 %v3195
        %4303 = vmatpush1.bf16.msra.mxu0 %v3194
        %4304 = vmatprep.subr.bf16.mxu0 %v3203
        %4305 = vmatpush1.bf16.msra.mxu0 %v3202
        %4306 = vmatprep.subr.bf16.mxu0 %v3211
        %4307 = vmatpush1.bf16.msra.mxu0 %v3210
        %4308 = vmatprep.mubr.bf16.mxu0 %v991
        %4309 = vmatmul.mubr.bf16.gmra.mrb[0].mxu0 %v990
        %v4310 = vpop.f32.mrb[0].mxu0
        %v4311 = vadd.f32 %v1523, %v4310
        %v4312 = vpop.f32.mrb[0].mxu0
        %v4313 = vadd.f32 %v1527, %v4312
        %v4314 = vpop.f32.mrb[0].mxu0
        %v4315 = vpop.f32.mrb[0].mxu0
        %4316 = vdwg.mxu0
        %4317 = vmatprep.subr.bf16.mxu0 %v3219
        %4318 = vmatpush1.bf16.msra.mxu0 %v3218
        %4319 = vmatprep.subr.bf16.mxu0 %v3227
        %4320 = vmatpush1.bf16.msra.mxu0 %v3226
        %4321 = vmatprep.subr.bf16.mxu0 %v3235
        %4322 = vmatpush1.bf16.msra.mxu0 %v3234
        %4323 = vmatprep.subr.bf16.mxu0 %v3243
        %4324 = vmatpush1.bf16.msra.mxu0 %v3242
        %4325 = vmatprep.subr.bf16.mxu0 %v3251
        %4326 = vmatpush1.bf16.msra.mxu0 %v3250
        %4327 = vmatprep.subr.bf16.mxu0 %v3259
        %4328 = vmatpush1.bf16.msra.mxu0 %v3258
        %4329 = vmatprep.subr.bf16.mxu0 %v3267
        %4330 = vmatpush1.bf16.msra.mxu0 %v3266
        %4331 = vmatprep.subr.bf16.mxu0 %v3275
        %4332 = vmatpush1.bf16.msra.mxu0 %v3274
        %4333 = vmatprep.subr.bf16.mxu0 %v3283
        %4334 = vmatpush1.bf16.msra.mxu0 %v3282
        %4335 = vmatprep.subr.bf16.mxu0 %v3291
        %4336 = vmatpush1.bf16.msra.mxu0 %v3290
        %4337 = vmatprep.subr.bf16.mxu0 %v3299
        %4338 = vmatpush1.bf16.msra.mxu0 %v3298
        %4339 = vmatprep.subr.bf16.mxu0 %v3307
        %4340 = vmatpush1.bf16.msra.mxu0 %v3306
        %4341 = vmatprep.subr.bf16.mxu0 %v3315
        %4342 = vmatpush1.bf16.msra.mxu0 %v3314
        %4343 = vmatprep.subr.bf16.mxu0 %v3323
        %4344 = vmatpush1.bf16.msra.mxu0 %v3322
        %4345 = vmatprep.subr.bf16.mxu0 %v3331
        %4346 = vmatpush1.bf16.msra.mxu0 %v3330
        %4347 = vmatprep.subr.bf16.mxu0 %v3339
        %4348 = vmatpush1.bf16.msra.mxu0 %v3338
        %4349 = vmatprep.mubr.bf16.mxu0 %v993
        %4350 = vmatmul.mubr.bf16.gmra.mrb[0].mxu0 %v992
        %v4351 = vpop.f32.mrb[0].mxu0
        %v4352 = vadd.f32 %v4311, %v4351
        %v4353 = vpop.f32.mrb[0].mxu0
        %v4354 = vadd.f32 %v4313, %v4353
        %v4355 = vpop.f32.mrb[0].mxu0
        %v4356 = vpop.f32.mrb[0].mxu0
        %4357 = vdwg.mxu0
        %4358 = vmatprep.subr.bf16.mxu0 %v3347
        %4359 = vmatpush1.bf16.msra.mxu0 %v3346
        %4360 = vmatprep.subr.bf16.mxu0 %v3355
        %4361 = vmatpush1.bf16.msra.mxu0 %v3354
        %4362 = vmatprep.subr.bf16.mxu0 %v3363
        %4363 = vmatpush1.bf16.msra.mxu0 %v3362
        %4364 = vmatprep.subr.bf16.mxu0 %v3371
        %4365 = vmatpush1.bf16.msra.mxu0 %v3370
        %4366 = vmatprep.subr.bf16.mxu0 %v3379
        %4367 = vmatpush1.bf16.msra.mxu0 %v3378
        %4368 = vmatprep.subr.bf16.mxu0 %v3387
        %4369 = vmatpush1.bf16.msra.mxu0 %v3386
        %4370 = vmatprep.subr.bf16.mxu0 %v3395
        %4371 = vmatpush1.bf16.msra.mxu0 %v3394
        %4372 = vmatprep.subr.bf16.mxu0 %v3403
        %4373 = vmatpush1.bf16.msra.mxu0 %v3402
        %4374 = vmatprep.subr.bf16.mxu0 %v3411
        %4375 = vmatpush1.bf16.msra.mxu0 %v3410
        %4376 = vmatprep.subr.bf16.mxu0 %v3419
        %4377 = vmatpush1.bf16.msra.mxu0 %v3418
        %4378 = vmatprep.subr.bf16.mxu0 %v3427
        %4379 = vmatpush1.bf16.msra.mxu0 %v3426
        %4380 = vmatprep.subr.bf16.mxu0 %v3435
        %4381 = vmatpush1.bf16.msra.mxu0 %v3434
        %4382 = vmatprep.subr.bf16.mxu0 %v3443
        %4383 = vmatpush1.bf16.msra.mxu0 %v3442
        %4384 = vmatprep.subr.bf16.mxu0 %v3451
        %4385 = vmatpush1.bf16.msra.mxu0 %v3450
        %4386 = vmatprep.subr.bf16.mxu0 %v3459
        %4387 = vmatpush1.bf16.msra.mxu0 %v3458
        %4388 = vmatprep.subr.bf16.mxu0 %v3467
        %4389 = vmatpush1.bf16.msra.mxu0 %v3466
        %4390 = vmatprep.mubr.bf16.mxu0 %v995
        %4391 = vmatmul.mubr.bf16.gmra.mrb[0].mxu0 %v994
        %v4392 = vpop.f32.mrb[0].mxu0
        %v4393 = vadd.f32 %v4352, %v4392
        %v4394 = vpop.f32.mrb[0].mxu0
        %v4395 = vadd.f32 %v4354, %v4394
        %v4396 = vpop.f32.mrb[0].mxu0
        %v4397 = vpop.f32.mrb[0].mxu0
        %4398 = vdwg.mxu0
        %4399 = vmatprep.subr.bf16.mxu0 %v3475
        %4400 = vmatpush1.bf16.msra.mxu0 %v3474
        %4401 = vmatprep.subr.bf16.mxu0 %v3483
        %4402 = vmatpush1.bf16.msra.mxu0 %v3482
        %4403 = vmatprep.subr.bf16.mxu0 %v3491
        %4404 = vmatpush1.bf16.msra.mxu0 %v3490
        %4405 = vmatprep.subr.bf16.mxu0 %v3499
        %4406 = vmatpush1.bf16.msra.mxu0 %v3498
        %4407 = vmatprep.subr.bf16.mxu0 %v3507
        %4408 = vmatpush1.bf16.msra.mxu0 %v3506
        %4409 = vmatprep.subr.bf16.mxu0 %v3515
        %4410 = vmatpush1.bf16.msra.mxu0 %v3514
        %4411 = vmatprep.subr.bf16.mxu0 %v3523
        %4412 = vmatpush1.bf16.msra.mxu0 %v3522
        %4413 = vmatprep.subr.bf16.mxu0 %v3531
        %4414 = vmatpush1.bf16.msra.mxu0 %v3530
        %4415 = vmatprep.subr.bf16.mxu0 %v3539
        %4416 = vmatpush1.bf16.msra.mxu0 %v3538
        %4417 = vmatprep.subr.bf16.mxu0 %v3547
        %4418 = vmatpush1.bf16.msra.mxu0 %v3546
        %4419 = vmatprep.subr.bf16.mxu0 %v3555
        %4420 = vmatpush1.bf16.msra.mxu0 %v3554
        %4421 = vmatprep.subr.bf16.mxu0 %v3563
        %4422 = vmatpush1.bf16.msra.mxu0 %v3562
        %4423 = vmatprep.subr.bf16.mxu0 %v3571
        %4424 = vmatpush1.bf16.msra.mxu0 %v3570
        %4425 = vmatprep.subr.bf16.mxu0 %v3579
        %4426 = vmatpush1.bf16.msra.mxu0 %v3578
        %4427 = vmatprep.subr.bf16.mxu0 %v3587
        %4428 = vmatpush1.bf16.msra.mxu0 %v3586
        %4429 = vmatprep.subr.bf16.mxu0 %v3595
        %4430 = vmatpush1.bf16.msra.mxu0 %v3594
        %4431 = vmatprep.mubr.bf16.mxu0 %v997
        %4432 = vmatmul.mubr.bf16.gmra.mrb[0].mxu0 %v996
        %v4433 = vpop.f32.mrb[0].mxu0
        %v4434 = vadd.f32 %v4393, %v4433
        %v4435 = vpop.f32.mrb[0].mxu0
        %v4436 = vadd.f32 %v4395, %v4435
        %v4437 = vpop.f32.mrb[0].mxu0
        %v4438 = vpop.f32.mrb[0].mxu0
        %4439 = vdwg.mxu0
        %4440 = vmatprep.subr.bf16.mxu0 %v3093
        %4441 = vmatpush1.bf16.msra.mxu0 %v3092
        %4442 = vmatprep.subr.bf16.mxu0 %v3101
        %4443 = vmatpush1.bf16.msra.mxu0 %v3100
        %4444 = vmatprep.subr.bf16.mxu0 %v3109
        %4445 = vmatpush1.bf16.msra.mxu0 %v3108
        %4446 = vmatprep.subr.bf16.mxu0 %v3117
        %4447 = vmatpush1.bf16.msra.mxu0 %v3116
        %4448 = vmatprep.subr.bf16.mxu0 %v3125
        %4449 = vmatpush1.bf16.msra.mxu0 %v3124
        %4450 = vmatprep.subr.bf16.mxu0 %v3133
        %4451 = vmatpush1.bf16.msra.mxu0 %v3132
        %4452 = vmatprep.subr.bf16.mxu0 %v3141
        %4453 = vmatpush1.bf16.msra.mxu0 %v3140
        %4454 = vmatprep.subr.bf16.mxu0 %v3149
        %4455 = vmatpush1.bf16.msra.mxu0 %v3148
        %4456 = vmatprep.subr.bf16.mxu0 %v3157
        %4457 = vmatpush1.bf16.msra.mxu0 %v3156
        %4458 = vmatprep.subr.bf16.mxu0 %v3165
        %4459 = vmatpush1.bf16.msra.mxu0 %v3164
        %4460 = vmatprep.subr.bf16.mxu0 %v3173
        %4461 = vmatpush1.bf16.msra.mxu0 %v3172
        %4462 = vmatprep.subr.bf16.mxu0 %v3181
        %4463 = vmatpush1.bf16.msra.mxu0 %v3180
        %4464 = vmatprep.subr.bf16.mxu0 %v3189
        %4465 = vmatpush1.bf16.msra.mxu0 %v3188
        %4466 = vmatprep.subr.bf16.mxu0 %v3197
        %4467 = vmatpush1.bf16.msra.mxu0 %v3196
        %4468 = vmatprep.subr.bf16.mxu0 %v3205
        %4469 = vmatpush1.bf16.msra.mxu0 %v3204
        %4470 = vmatprep.subr.bf16.mxu0 %v3213
        %4471 = vmatpush1.bf16.msra.mxu0 %v3212
        %4472 = vmatprep.mubr.bf16.mxu0 %v991
        %4473 = vmatmul.mubr.bf16.gmra.mrb[0].mxu0 %v990
        %v4474 = vpop.f32.mrb[0].mxu0
        %v4475 = vadd.f32 %v1531, %v4474
        %v4476 = vpop.f32.mrb[0].mxu0
        %v4477 = vadd.f32 %v1535, %v4476
        %v4478 = vpop.f32.mrb[0].mxu0
        %v4479 = vpop.f32.mrb[0].mxu0
        %4480 = vdwg.mxu0
        %4481 = vmatprep.subr.bf16.mxu0 %v3221
        %4482 = vmatpush1.bf16.msra.mxu0 %v3220
        %4483 = vmatprep.subr.bf16.mxu0 %v3229
        %4484 = vmatpush1.bf16.msra.mxu0 %v3228
        %4485 = vmatprep.subr.bf16.mxu0 %v3237
        %4486 = vmatpush1.bf16.msra.mxu0 %v3236
        %4487 = vmatprep.subr.bf16.mxu0 %v3245
        %4488 = vmatpush1.bf16.msra.mxu0 %v3244
        %4489 = vmatprep.subr.bf16.mxu0 %v3253
        %4490 = vmatpush1.bf16.msra.mxu0 %v3252
        %4491 = vmatprep.subr.bf16.mxu0 %v3261
        %4492 = vmatpush1.bf16.msra.mxu0 %v3260
        %4493 = vmatprep.subr.bf16.mxu0 %v3269
        %4494 = vmatpush1.bf16.msra.mxu0 %v3268
        %4495 = vmatprep.subr.bf16.mxu0 %v3277
        %4496 = vmatpush1.bf16.msra.mxu0 %v3276
        %4497 = vmatprep.subr.bf16.mxu0 %v3285
        %4498 = vmatpush1.bf16.msra.mxu0 %v3284
        %4499 = vmatprep.subr.bf16.mxu0 %v3293
        %4500 = vmatpush1.bf16.msra.mxu0 %v3292
        %4501 = vmatprep.subr.bf16.mxu0 %v3301
        %4502 = vmatpush1.bf16.msra.mxu0 %v3300
        %4503 = vmatprep.subr.bf16.mxu0 %v3309
        %4504 = vmatpush1.bf16.msra.mxu0 %v3308
        %4505 = vmatprep.subr.bf16.mxu0 %v3317
        %4506 = vmatpush1.bf16.msra.mxu0 %v3316
        %4507 = vmatprep.subr.bf16.mxu0 %v3325
        %4508 = vmatpush1.bf16.msra.mxu0 %v3324
        %4509 = vmatprep.subr.bf16.mxu0 %v3333
        %4510 = vmatpush1.bf16.msra.mxu0 %v3332
        %4511 = vmatprep.subr.bf16.mxu0 %v3341
        %4512 = vmatpush1.bf16.msra.mxu0 %v3340
        %4513 = vmatprep.mubr.bf16.mxu0 %v993
        %4514 = vmatmul.mubr.bf16.gmra.mrb[0].mxu0 %v992
        %v4515 = vpop.f32.mrb[0].mxu0
        %v4516 = vadd.f32 %v4475, %v4515
        %v4517 = vpop.f32.mrb[0].mxu0
        %v4518 = vadd.f32 %v4477, %v4517
        %v4519 = vpop.f32.mrb[0].mxu0
        %v4520 = vpop.f32.mrb[0].mxu0
        %4521 = vdwg.mxu0
        %4522 = vmatprep.subr.bf16.mxu0 %v3349
        %4523 = vmatpush1.bf16.msra.mxu0 %v3348
        %4524 = vmatprep.subr.bf16.mxu0 %v3357
        %4525 = vmatpush1.bf16.msra.mxu0 %v3356
        %4526 = vmatprep.subr.bf16.mxu0 %v3365
        %4527 = vmatpush1.bf16.msra.mxu0 %v3364
        %4528 = vmatprep.subr.bf16.mxu0 %v3373
        %4529 = vmatpush1.bf16.msra.mxu0 %v3372
        %4530 = vmatprep.subr.bf16.mxu0 %v3381
        %4531 = vmatpush1.bf16.msra.mxu0 %v3380
        %4532 = vmatprep.subr.bf16.mxu0 %v3389
        %4533 = vmatpush1.bf16.msra.mxu0 %v3388
        %4534 = vmatprep.subr.bf16.mxu0 %v3397
        %4535 = vmatpush1.bf16.msra.mxu0 %v3396
        %4536 = vmatprep.subr.bf16.mxu0 %v3405
        %4537 = vmatpush1.bf16.msra.mxu0 %v3404
        %4538 = vmatprep.subr.bf16.mxu0 %v3413
        %4539 = vmatpush1.bf16.msra.mxu0 %v3412
        %4540 = vmatprep.subr.bf16.mxu0 %v3421
        %4541 = vmatpush1.bf16.msra.mxu0 %v3420
        %4542 = vmatprep.subr.bf16.mxu0 %v3429
        %4543 = vmatpush1.bf16.msra.mxu0 %v3428
        %4544 = vmatprep.subr.bf16.mxu0 %v3437
        %4545 = vmatpush1.bf16.msra.mxu0 %v3436
        %4546 = vmatprep.subr.bf16.mxu0 %v3445
        %4547 = vmatpush1.bf16.msra.mxu0 %v3444
        %4548 = vmatprep.subr.bf16.mxu0 %v3453
        %4549 = vmatpush1.bf16.msra.mxu0 %v3452
        %4550 = vmatprep.subr.bf16.mxu0 %v3461
        %4551 = vmatpush1.bf16.msra.mxu0 %v3460
        %4552 = vmatprep.subr.bf16.mxu0 %v3469
        %4553 = vmatpush1.bf16.msra.mxu0 %v3468
        %4554 = vmatprep.mubr.bf16.mxu0 %v995
        %4555 = vmatmul.mubr.bf16.gmra.mrb[0].mxu0 %v994
        %v4556 = vpop.f32.mrb[0].mxu0
        %v4557 = vadd.f32 %v4516, %v4556
        %v4558 = vpop.f32.mrb[0].mxu0
        %v4559 = vadd.f32 %v4518, %v4558
        %v4560 = vpop.f32.mrb[0].mxu0
        %v4561 = vpop.f32.mrb[0].mxu0
        %4562 = vdwg.mxu0
        %4563 = vmatprep.subr.bf16.mxu0 %v3477
        %4564 = vmatpush1.bf16.msra.mxu0 %v3476
        %4565 = vmatprep.subr.bf16.mxu0 %v3485
        %4566 = vmatpush1.bf16.msra.mxu0 %v3484
        %4567 = vmatprep.subr.bf16.mxu0 %v3493
        %4568 = vmatpush1.bf16.msra.mxu0 %v3492
        %4569 = vmatprep.subr.bf16.mxu0 %v3501
        %4570 = vmatpush1.bf16.msra.mxu0 %v3500
        %4571 = vmatprep.subr.bf16.mxu0 %v3509
        %4572 = vmatpush1.bf16.msra.mxu0 %v3508
        %4573 = vmatprep.subr.bf16.mxu0 %v3517
        %4574 = vmatpush1.bf16.msra.mxu0 %v3516
        %4575 = vmatprep.subr.bf16.mxu0 %v3525
        %4576 = vmatpush1.bf16.msra.mxu0 %v3524
        %4577 = vmatprep.subr.bf16.mxu0 %v3533
        %4578 = vmatpush1.bf16.msra.mxu0 %v3532
        %4579 = vmatprep.subr.bf16.mxu0 %v3541
        %4580 = vmatpush1.bf16.msra.mxu0 %v3540
        %4581 = vmatprep.subr.bf16.mxu0 %v3549
        %4582 = vmatpush1.bf16.msra.mxu0 %v3548
        %4583 = vmatprep.subr.bf16.mxu0 %v3557
        %4584 = vmatpush1.bf16.msra.mxu0 %v3556
        %4585 = vmatprep.subr.bf16.mxu0 %v3565
        %4586 = vmatpush1.bf16.msra.mxu0 %v3564
        %4587 = vmatprep.subr.bf16.mxu0 %v3573
        %4588 = vmatpush1.bf16.msra.mxu0 %v3572
        %4589 = vmatprep.subr.bf16.mxu0 %v3581
        %4590 = vmatpush1.bf16.msra.mxu0 %v3580
        %4591 = vmatprep.subr.bf16.mxu0 %v3589
        %4592 = vmatpush1.bf16.msra.mxu0 %v3588
        %4593 = vmatprep.subr.bf16.mxu0 %v3597
        %4594 = vmatpush1.bf16.msra.mxu0 %v3596
        %4595 = vmatprep.mubr.bf16.mxu0 %v997
        %4596 = vmatmul.mubr.bf16.gmra.mrb[0].mxu0 %v996
        %v4597 = vpop.f32.mrb[0].mxu0
        %v4598 = vadd.f32 %v4557, %v4597
        %v4599 = vpop.f32.mrb[0].mxu0
        %v4600 = vadd.f32 %v4559, %v4599
        %v4601 = vpop.f32.mrb[0].mxu0
        %v4602 = vpop.f32.mrb[0].mxu0
        %4603 = vdwg.mxu0
        %4604 = vmatprep.subr.bf16.mxu0 %v3095
        %4605 = vmatpush1.bf16.msra.mxu0 %v3094
        %4606 = vmatprep.subr.bf16.mxu0 %v3103
        %4607 = vmatpush1.bf16.msra.mxu0 %v3102
        %4608 = vmatprep.subr.bf16.mxu0 %v3111
        %4609 = vmatpush1.bf16.msra.mxu0 %v3110
        %4610 = vmatprep.subr.bf16.mxu0 %v3119
        %4611 = vmatpush1.bf16.msra.mxu0 %v3118
        %4612 = vmatprep.subr.bf16.mxu0 %v3127
        %4613 = vmatpush1.bf16.msra.mxu0 %v3126
        %4614 = vmatprep.subr.bf16.mxu0 %v3135
        %4615 = vmatpush1.bf16.msra.mxu0 %v3134
        %4616 = vmatprep.subr.bf16.mxu0 %v3143
        %4617 = vmatpush1.bf16.msra.mxu0 %v3142
        %4618 = vmatprep.subr.bf16.mxu0 %v3151
        %4619 = vmatpush1.bf16.msra.mxu0 %v3150
        %4620 = vmatprep.subr.bf16.mxu0 %v3159
        %4621 = vmatpush1.bf16.msra.mxu0 %v3158
        %4622 = vmatprep.subr.bf16.mxu0 %v3167
        %4623 = vmatpush1.bf16.msra.mxu0 %v3166
        %4624 = vmatprep.subr.bf16.mxu0 %v3175
        %4625 = vmatpush1.bf16.msra.mxu0 %v3174
        %4626 = vmatprep.subr.bf16.mxu0 %v3183
        %4627 = vmatpush1.bf16.msra.mxu0 %v3182
        %4628 = vmatprep.subr.bf16.mxu0 %v3191
        %4629 = vmatpush1.bf16.msra.mxu0 %v3190
        %4630 = vmatprep.subr.bf16.mxu0 %v3199
        %4631 = vmatpush1.bf16.msra.mxu0 %v3198
        %4632 = vmatprep.subr.bf16.mxu0 %v3207
        %4633 = vmatpush1.bf16.msra.mxu0 %v3206
        %4634 = vmatprep.subr.bf16.mxu0 %v3215
        %4635 = vmatpush1.bf16.msra.mxu0 %v3214
        %4636 = vmatprep.mubr.bf16.mxu0 %v991
        %4637 = vmatmul.mubr.bf16.gmra.mrb[0].mxu0 %v990
        %v4638 = vpop.f32.mrb[0].mxu0
        %v4639 = vadd.f32 %v1539, %v4638
        %v4640 = vpop.f32.mrb[0].mxu0
        %v4641 = vadd.f32 %v1543, %v4640
        %v4642 = vpop.f32.mrb[0].mxu0
        %v4643 = vpop.f32.mrb[0].mxu0
        %4644 = vdwg.mxu0
        %4645 = vmatprep.subr.bf16.mxu0 %v3223
        %4646 = vmatpush1.bf16.msra.mxu0 %v3222
        %4647 = vmatprep.subr.bf16.mxu0 %v3231
        %4648 = vmatpush1.bf16.msra.mxu0 %v3230
        %4649 = vmatprep.subr.bf16.mxu0 %v3239
        %4650 = vmatpush1.bf16.msra.mxu0 %v3238
        %4651 = vmatprep.subr.bf16.mxu0 %v3247
        %4652 = vmatpush1.bf16.msra.mxu0 %v3246
        %4653 = vmatprep.subr.bf16.mxu0 %v3255
        %4654 = vmatpush1.bf16.msra.mxu0 %v3254
        %4655 = vmatprep.subr.bf16.mxu0 %v3263
        %4656 = vmatpush1.bf16.msra.mxu0 %v3262
        %4657 = vmatprep.subr.bf16.mxu0 %v3271
        %4658 = vmatpush1.bf16.msra.mxu0 %v3270
        %4659 = vmatprep.subr.bf16.mxu0 %v3279
        %4660 = vmatpush1.bf16.msra.mxu0 %v3278
        %4661 = vmatprep.subr.bf16.mxu0 %v3287
        %4662 = vmatpush1.bf16.msra.mxu0 %v3286
        %4663 = vmatprep.subr.bf16.mxu0 %v3295
        %4664 = vmatpush1.bf16.msra.mxu0 %v3294
        %4665 = vmatprep.subr.bf16.mxu0 %v3303
        %4666 = vmatpush1.bf16.msra.mxu0 %v3302
        %4667 = vmatprep.subr.bf16.mxu0 %v3311
        %4668 = vmatpush1.bf16.msra.mxu0 %v3310
        %4669 = vmatprep.subr.bf16.mxu0 %v3319
        %4670 = vmatpush1.bf16.msra.mxu0 %v3318
        %4671 = vmatprep.subr.bf16.mxu0 %v3327
        %4672 = vmatpush1.bf16.msra.mxu0 %v3326
        %4673 = vmatprep.subr.bf16.mxu0 %v3335
        %4674 = vmatpush1.bf16.msra.mxu0 %v3334
        %4675 = vmatprep.subr.bf16.mxu0 %v3343
        %4676 = vmatpush1.bf16.msra.mxu0 %v3342
        %4677 = vmatprep.mubr.bf16.mxu0 %v993
        %4678 = vmatmul.mubr.bf16.gmra.mrb[0].mxu0 %v992
        %v4679 = vpop.f32.mrb[0].mxu0
        %v4680 = vadd.f32 %v4639, %v4679
        %v4681 = vpop.f32.mrb[0].mxu0
        %v4682 = vadd.f32 %v4641, %v4681
        %v4683 = vpop.f32.mrb[0].mxu0
        %v4684 = vpop.f32.mrb[0].mxu0
        %4685 = vdwg.mxu0
        %4686 = vmatprep.subr.bf16.mxu0 %v3351
        %4687 = vmatpush1.bf16.msra.mxu0 %v3350
        %4688 = vmatprep.subr.bf16.mxu0 %v3359
        %4689 = vmatpush1.bf16.msra.mxu0 %v3358
        %4690 = vmatprep.subr.bf16.mxu0 %v3367
        %4691 = vmatpush1.bf16.msra.mxu0 %v3366
        %4692 = vmatprep.subr.bf16.mxu0 %v3375
        %4693 = vmatpush1.bf16.msra.mxu0 %v3374
        %4694 = vmatprep.subr.bf16.mxu0 %v3383
        %4695 = vmatpush1.bf16.msra.mxu0 %v3382
        %4696 = vmatprep.subr.bf16.mxu0 %v3391
        %4697 = vmatpush1.bf16.msra.mxu0 %v3390
        %4698 = vmatprep.subr.bf16.mxu0 %v3399
        %4699 = vmatpush1.bf16.msra.mxu0 %v3398
        %4700 = vmatprep.subr.bf16.mxu0 %v3407
        %4701 = vmatpush1.bf16.msra.mxu0 %v3406
        %4702 = vmatprep.subr.bf16.mxu0 %v3415
        %4703 = vmatpush1.bf16.msra.mxu0 %v3414
        %4704 = vmatprep.subr.bf16.mxu0 %v3423
        %4705 = vmatpush1.bf16.msra.mxu0 %v3422
        %4706 = vmatprep.subr.bf16.mxu0 %v3431
        %4707 = vmatpush1.bf16.msra.mxu0 %v3430
        %4708 = vmatprep.subr.bf16.mxu0 %v3439
        %4709 = vmatpush1.bf16.msra.mxu0 %v3438
        %4710 = vmatprep.subr.bf16.mxu0 %v3447
        %4711 = vmatpush1.bf16.msra.mxu0 %v3446
        %4712 = vmatprep.subr.bf16.mxu0 %v3455
        %4713 = vmatpush1.bf16.msra.mxu0 %v3454
        %4714 = vmatprep.subr.bf16.mxu0 %v3463
        %4715 = vmatpush1.bf16.msra.mxu0 %v3462
        %4716 = vmatprep.subr.bf16.mxu0 %v3471
        %4717 = vmatpush1.bf16.msra.mxu0 %v3470
        %4718 = vmatprep.mubr.bf16.mxu0 %v995
        %4719 = vmatmul.mubr.bf16.gmra.mrb[0].mxu0 %v994
        %v4720 = vpop.f32.mrb[0].mxu0
        %v4721 = vadd.f32 %v4680, %v4720
        %v4722 = vpop.f32.mrb[0].mxu0
        %v4723 = vadd.f32 %v4682, %v4722
        %v4724 = vpop.f32.mrb[0].mxu0
        %v4725 = vpop.f32.mrb[0].mxu0
        %4726 = vdwg.mxu0
        %4727 = vmatprep.subr.bf16.mxu0 %v3479
        %4728 = vmatpush1.bf16.msra.mxu0 %v3478
        %4729 = vmatprep.subr.bf16.mxu0 %v3487
        %4730 = vmatpush1.bf16.msra.mxu0 %v3486
        %4731 = vmatprep.subr.bf16.mxu0 %v3495
        %4732 = vmatpush1.bf16.msra.mxu0 %v3494
        %4733 = vmatprep.subr.bf16.mxu0 %v3503
        %4734 = vmatpush1.bf16.msra.mxu0 %v3502
        %4735 = vmatprep.subr.bf16.mxu0 %v3511
        %4736 = vmatpush1.bf16.msra.mxu0 %v3510
        %4737 = vmatprep.subr.bf16.mxu0 %v3519
        %4738 = vmatpush1.bf16.msra.mxu0 %v3518
        %4739 = vmatprep.subr.bf16.mxu0 %v3527
        %4740 = vmatpush1.bf16.msra.mxu0 %v3526
        %4741 = vmatprep.subr.bf16.mxu0 %v3535
        %4742 = vmatpush1.bf16.msra.mxu0 %v3534
        %4743 = vmatprep.subr.bf16.mxu0 %v3543
        %4744 = vmatpush1.bf16.msra.mxu0 %v3542
        %4745 = vmatprep.subr.bf16.mxu0 %v3551
        %4746 = vmatpush1.bf16.msra.mxu0 %v3550
        %4747 = vmatprep.subr.bf16.mxu0 %v3559
        %4748 = vmatpush1.bf16.msra.mxu0 %v3558
        %4749 = vmatprep.subr.bf16.mxu0 %v3567
        %4750 = vmatpush1.bf16.msra.mxu0 %v3566
        %4751 = vmatprep.subr.bf16.mxu0 %v3575
        %4752 = vmatpush1.bf16.msra.mxu0 %v3574
        %4753 = vmatprep.subr.bf16.mxu0 %v3583
        %4754 = vmatpush1.bf16.msra.mxu0 %v3582
        %4755 = vmatprep.subr.bf16.mxu0 %v3591
        %4756 = vmatpush1.bf16.msra.mxu0 %v3590
        %4757 = vmatprep.subr.bf16.mxu0 %v3599
        %4758 = vmatpush1.bf16.msra.mxu0 %v3598
        %4759 = vmatprep.mubr.bf16.mxu0 %v997
        %4760 = vmatmul.mubr.bf16.gmra.mrb[0].mxu0 %v996
        %v4761 = vpop.f32.mrb[0].mxu0
        %v4762 = vadd.f32 %v4721, %v4761
        %v4763 = vpop.f32.mrb[0].mxu0
        %v4764 = vadd.f32 %v4723, %v4763
        %v4765 = vpop.f32.mrb[0].mxu0
        %v4766 = vpop.f32.mrb[0].mxu0
        %4767 = vdwg.mxu0
        %vm4768 = vcmp.gt.f32.partialorder %v4270, 0.0
        %vm4769 = vcmp.gt.f32.partialorder %v4272, 0.0
        %vm4770 = vcmp.gt.f32.partialorder %v4434, 0.0
        %vm4771 = vcmp.gt.f32.partialorder %v4436, 0.0
        %vm4772 = vcmp.gt.f32.partialorder %v4598, 0.0
        %vm4773 = vcmp.gt.f32.partialorder %v4600, 0.0
        %vm4774 = vcmp.gt.f32.partialorder %v4762, 0.0
        %vm4775 = vcmp.gt.f32.partialorder %v4764, 0.0
        %v4776 = vmul.f32 %v4270, 0.25
        %v4777 = vmul.f32 %v4272, 0.25
        %v4778 = vmul.f32 %v4434, 0.25
        %v4779 = vmul.f32 %v4436, 0.25
        %v4780 = vmul.f32 %v4598, 0.25
        %v4781 = vmul.f32 %v4600, 0.25
        %v4782 = vmul.f32 %v4762, 0.25
        %v4783 = vmul.f32 %v4764, 0.25
        %v4784 = vsel %vm4768, %v4270, %v4776
        %v4785 = vsel %vm4769, %v4272, %v4777
        %v4786 = vsel %vm4770, %v4434, %v4778
        %v4787 = vsel %vm4771, %v4436, %v4779
        %v4788 = vsel %vm4772, %v4598, %v4780
        %v4789 = vsel %vm4773, %v4600, %v4781
        %v4790 = vsel %vm4774, %v4762, %v4782
        %v4791 = vsel %vm4775, %v4764, %v4783
        %v4792 = vld [vmem:[#allocation11] ss:$4 sm:$0x3]
        %v4794 = vlaneseq
        %v4795 = vshrl.u32 %v4794, 7
        %v4796 = vsub.s32 0, %v4795
        %v4797 = vrot.slane %v4792, %v4796
        %v4798 = vlaneseq
        %v4799 = vshrl.u32 %v4798, 7
        %v4800 = vsub.s32 1, %v4799
        %v4801 = vrot.slane %v4792, %v4800
        %v4804 = vmul.f32 %v4784, %v4797
        %v4805 = vmul.f32 %v4785, %v4801
        %v4806 = vadd.f32 %v4804, 0.0
        %v4807 = vadd.f32 %v4805, 0.0
        %s4808 = scalar_lea.vmem [#allocation11], 1
        %v4809 = vld [vmem:[%s4808] ss:$4 sm:$0x3]
        %v4811 = vlaneseq
        %v4812 = vshrl.u32 %v4811, 7
        %v4813 = vsub.s32 0, %v4812
        %v4814 = vrot.slane %v4809, %v4813
        %v4815 = vlaneseq
        %v4816 = vshrl.u32 %v4815, 7
        %v4817 = vsub.s32 1, %v4816
        %v4818 = vrot.slane %v4809, %v4817
        %v4821 = vmul.f32 %v4786, %v4814
        %v4822 = vmul.f32 %v4787, %v4818
        %v4823 = vadd.f32 %v4806, %v4821
        %v4824 = vadd.f32 %v4807, %v4822
        %s4825 = scalar_lea.vmem [#allocation11], 2
        %v4826 = vld [vmem:[%s4825] ss:$4 sm:$0x3]
        %v4828 = vlaneseq
        %v4829 = vshrl.u32 %v4828, 7
        %v4830 = vsub.s32 0, %v4829
        %v4831 = vrot.slane %v4826, %v4830
        %v4832 = vlaneseq
        %v4833 = vshrl.u32 %v4832, 7
        %v4834 = vsub.s32 1, %v4833
        %v4835 = vrot.slane %v4826, %v4834
        %v4838 = vmul.f32 %v4788, %v4831
        %v4839 = vmul.f32 %v4789, %v4835
        %v4840 = vadd.f32 %v4823, %v4838
        %v4841 = vadd.f32 %v4824, %v4839
        %s4842 = scalar_lea.vmem [#allocation11], 3
        %v4843 = vld [vmem:[%s4842] ss:$4 sm:$0x3]
        %v4845 = vlaneseq
        %v4846 = vshrl.u32 %v4845, 7
        %v4847 = vsub.s32 0, %v4846
        %v4848 = vrot.slane %v4843, %v4847
        %v4849 = vlaneseq
        %v4850 = vshrl.u32 %v4849, 7
        %v4851 = vsub.s32 1, %v4850
        %v4852 = vrot.slane %v4843, %v4851
        %v4855 = vmul.f32 %v4790, %v4848
        %v4856 = vmul.f32 %v4791, %v4852
        %v4857 = vadd.f32 %v4840, %v4855
        %v4858 = vadd.f32 %v4841, %v4856
        %v4859 = vld [vmem:[#allocation13] sm:$0x3]
        %v4861 = vlaneseq
        %v4862 = vshrl.u32 %v4861, 7
        %v4863 = vsub.s32 0, %v4862
        %v4864 = vrot.slane %v4859, %v4863
        %v4865 = vlaneseq
        %v4866 = vshrl.u32 %v4865, 7
        %v4867 = vsub.s32 1, %v4866
        %v4868 = vrot.slane %v4859, %v4867
        %v4871 = vadd.f32 %v4857, %v4864
        %v4872 = vadd.f32 %v4858, %v4868
        %4873 = vst [vmem:[%s372] sm:$0xff] %v4871
        %4874 = vst [vmem:[%s372 + $0x8] sm:$0xff] %v4872
        %s4875 = sand.u32 %s187, 1
        %s4876 = scalar_lea.sflag [#allocation4], %s4875
        %s4877 = sand.u32 %s187, 1
        %s4878 = smul.addr %s4877, 16
        %s4879 = scalar_lea.vmem [#allocation14], %s4878
        // Predicated region
        $region77: #{tpu_custom_call.1} parent=47 // pred_check
          %p4880 = pneg %p197
        $region78: #{tpu_custom_call.1} parent=47 // pred_check_branch
          %4882 = sbr.rel (%p4880) target = $region80
        $region79: #{tpu_custom_call.1} parent=47 // pred_region
          %s4884 = ssub.s32 256, 256
          %4885 = vsyncadd %s4876, %s4884
          %s4886 = smul.addr %s27, 2
          %s4887 = smul.addr %s4886, 128
          %s4888 = scalar_lea.hbm %s7, %s4887
          %s4890 = sshll.u32 %s4879, 4
          %s4891 = int_to_ptr.vmem [resolvable:$true] %s4890
          %4893 = dma.vmem_to_hbm [thread:$0]  %s4891, 256, %s4888, %s4876
        $region80: #{tpu_custom_call.1} parent=47 // pred_fallthru
          _
      $region48: #{tpu_custom_call.1} parent=5 // pred_fallthru
        _
      %p4894 = scmp.le.s32.totalorder 2, %s22
      // Predicated region
      $region81: #{tpu_custom_call.1} parent=5 // pred_check
        %p4895 = pneg %p4894
      $region82: #{tpu_custom_call.1} parent=5 // pred_check_branch
        %4897 = sbr.rel (%p4895) target = $region84
      $region83: #{tpu_custom_call.1} parent=5 // pred_region
        %s4898 = ssub.s32 %s22, 2
        // Predicated region
        $region85: #{tpu_custom_call.1} parent=83 // pred_check
          %p4899 = pneg %p203
        $region86: #{tpu_custom_call.1} parent=83 // pred_check_branch
          %4901 = sbr.rel (%p4899) target = $region88
        $region87: #{tpu_custom_call.1} parent=83 // pred_region
          %s4902 = sand.u32 %s188, 1
          %s4903 = scalar_lea.sflag [#allocation4], %s4902
          %s4904 = sand.u32 %s188, 1
          %s4905 = smul.addr %s4904, 16
          %s4906 = scalar_lea.vmem [#allocation14], %s4905
          %4907 = dma.done %s4903, 256
        $region88: #{tpu_custom_call.1} parent=83 // pred_fallthru
          _
      $region84: #{tpu_custom_call.1} parent=5 // pred_fallthru
        _
    $region6: #{tpu_custom_call.1} parent=1 // loop_footer
      %s26 = sadd.s32 1, %s22
    $region7: #{tpu_custom_call.1} parent=1 // loop_footer_branch
      %21 = sbr.rel target = $region3
    $region8: #{tpu_custom_call.1} parent=1 // loop_exit
      _
    %4908 = vsyncpa [#allocation3], 1
    %s4909 = scalar_lea.sflag [#allocation3], 1
    %4910 = vsyncpa %s4909, 1
    %4911 = vsyncpa [#allocation6], 1
    %4912 = vsyncpa [#allocation9], 1
    %4913 = vsyncpa [#allocation12], 1
    %4914 = vsyncpa [#allocation4], 1
    %s4915 = scalar_lea.sflag [#allocation4], 1
    %4916 = vsyncpa %s4915, 1

</llo_original>
